<compile_context>
chip_gen: v6e
topology: v6e:2x2x1
jax: 0.10.0
libtpu: 0.0.40
codegen_flags: <defaults>
</compile_context>

<pallas_src>
import jax
import jax.numpy as jnp
from jax.experimental import pallas as pl
from jax.experimental.pallas import tpu as pltpu

N = 120    # PhaseMaskLayer hardcodes a 120x120 phase mask
NP = 128   # lane-dense padded size


def _bf16_split(x):
    """Round-to-nearest bf16 hi part + bf16 residual (lo)."""
    hi = x.astype(jnp.bfloat16)
    lo = (x - hi.astype(jnp.float32)).astype(jnp.bfloat16)
    return hi, lo


def _dot3(a_hi, a_lo, b_hi, b_lo):
    """(a_hi+a_lo)@(b_hi+b_lo) ~= hi@hi + hi@lo + lo@hi  (bf16x3, f32 acc)."""
    acc = jnp.dot(a_hi, b_hi, preferred_element_type=jnp.float32)
    acc = acc + jnp.dot(a_hi, b_lo, preferred_element_type=jnp.float32)
    acc = acc + jnp.dot(a_lo, b_hi, preferred_element_type=jnp.float32)
    return acc


def optic_kernel(c_ref, h_ref, m_ref, x_ref, out_ref, field, hstage):
    # c_ref : (8, 256, 256) bf16  [BL1_hi, BL1_lo, BR1_hi, BR1_lo,
    #                              BL2_hi, BL2_lo, BR2_hi, BR2_lo]
    # h_ref : (2, 128, 128) f32   [Hr, Hi]
    # m_ref : (2, 128, 128) f32   this stage's phase mask [Pr, Pi]
    # x_ref : (256, 128)    f32   initial field, vertically stacked [xr; xi]
    # out   : (4, 128, 128) f32   this stage's planes [x_{2s+1}r, x_{2s+1}i, .., ..]
    # field : (256, 128)    f32   carried field / vertical intermediate (scratch)
    # hstage: (128, 256)    f32   horizontal staging buffer for right-multiplies
    s = pl.program_id(0)

    @pl.when(s == 0)
    def _():
        field[...] = x_ref[...]

    def lmul(ci, v):
        # complex (M @ u) as one (256,256)@(256,128) block matmul, 3 bf16 passes
        v_hi, v_lo = _bf16_split(v)
        return _dot3(c_ref[ci], c_ref[ci + 1], v_hi, v_lo)

    def rmul(v, ci):
        # complex (u @ M) as one (128,256)@(256,256) block matmul, 3 bf16 passes
        v_hi, v_lo = _bf16_split(v)
        return _dot3(v_hi, v_lo, c_ref[ci], c_ref[ci + 1])

    # ---- one PropTF: u -> ifftshift(ifft2(H * fft2(fftshift(u)))) ----------
    t = lmul(0, field[...])                  # M1 @ u            (vertical)
    hstage[:, :NP] = t[:NP, :]               # restack to [tr | ti]
    hstage[:, NP:] = t[NP:, :]
    a = rmul(hstage[...], 2)                 # ... @ M1^T  -> U1 = [ar | ai]
    ar = a[:, :NP]
    ai = a[:, NP:]
    hr = h_ref[0]
    hi = h_ref[1]
    field[:NP, :] = hr * ar - hi * ai        # U2 = H * U1  (back to vertical)
    field[NP:, :] = hr * ai + hi * ar
    t2 = lmul(4, field[...])                 # M2 @ U2
    hstage[:, :NP] = t2[:NP, :]
    hstage[:, NP:] = t2[NP:, :]
    r = rmul(hstage[...], 6)                 # ... @ M2^T  -> x_{2s+1}
    xr = r[:, :NP]
    xi = r[:, NP:]

    out_ref[0] = xr
    out_ref[1] = xi

    @pl.when(s < 3)
    def _():                                 # phase mask: x_{2s+2} = x * exp(-iW)
        pr = m_ref[0]
        pi = m_ref[1]
        yr = xr * pr - xi * pi
        yi = xr * pi + xi * pr
        out_ref[2] = yr
        out_ref[3] = yi
        field[:NP, :] = yr                   # carry masked field to next stage
        field[NP:, :] = yi

    @pl.when(s == 3)
    def _():                                 # last stage: intensity |x7|^2
        out_ref[2] = xr * xr + xi * xi
        out_ref[3] = jnp.zeros_like(xr)


def _pad(a):
    return jnp.pad(a, ((0, NP - a.shape[0]), (0, NP - a.shape[1])))


def _ri(z):
    z = z.astype(jnp.complex64)
    return (_pad(jnp.real(z).astype(jnp.float32)),
            _pad(jnp.imag(z).astype(jnp.float32)))


@jax.jit
def optic_forward(x, H, W1, W2, W3):
    """Pallas OpticModel.forward.

    x, H: complex64 [120, 120]; W1..W3: float32 [120, 120] phase-mask weights.
    Returns (x8, x1, x2, x3, x4, x5, x6, x7), matching the torch module.
    """
    n, npad = N, NP
    # DFT matrices with fft/ifft-shift permutations folded in.  All of this is
    # input-independent and constant-folds at jit compile time.
    k = jnp.arange(n)
    F = jnp.exp(-2j * jnp.pi * (jnp.outer(k, k) % n) / n).astype(jnp.complex64)
    Finv = (jnp.conj(F) / n).astype(jnp.complex64)
    shift = (k + n // 2) % n
    M1 = F[:, shift]       # fft2(fftshift(u))   = M1 @ u @ M1^T
    M2 = Finv[shift, :]    # ifftshift(ifft2(U)) = M2 @ U @ M2^T

    def blkL(m):           # left multiply  (M @ u), vertically stacked field
        mr, mi = _ri(m)
        return jnp.block([[mr, -mi], [mi, mr]])

    def blkR(m):           # right multiply (u @ M), horizontally stacked field
        mr, mi = _ri(m)
        return jnp.block([[mr, mi], [-mi, mr]])

    blocks = [blkL(M1), blkR(M1.T), blkL(M2), blkR(M2.T)]
    consts = jnp.stack([h for b in blocks for h in _bf16_split(b)])  # (8,256,256) bf16

    Hr, Hi = _ri(H)
    h_in = jnp.stack([Hr, Hi])                                       # (2,128,128)

    def mask_planes(W):
        pr, pi = _ri(jnp.exp(-1j * W.astype(jnp.float32)))
        return [pr, pi]

    zero = jnp.zeros((npad, npad), jnp.float32)
    masks = jnp.stack(mask_planes(W1) + mask_planes(W2) + mask_planes(W3)
                      + [zero, zero])                                 # (8,128,128)

    xr, xi = _ri(x)
    x_in = jnp.concatenate([xr, xi], axis=0)                          # (256,128)

    out = pl.pallas_call(
        optic_kernel,
        grid=(4,),                                   # one step per PropTF stage
        in_specs=[
            pl.BlockSpec((8, 2 * npad, 2 * npad), lambda s: (0, 0, 0)),
            pl.BlockSpec((2, npad, npad), lambda s: (0, 0, 0)),
            pl.BlockSpec((2, npad, npad), lambda s: (s, 0, 0)),  # per-stage mask
            pl.BlockSpec((2 * npad, npad), lambda s: (0, 0)),
        ],
        out_specs=pl.BlockSpec((4, npad, npad), lambda s: (s, 0, 0)),
        out_shape=jax.ShapeDtypeStruct((16, npad, npad), jnp.float32),
        scratch_shapes=[
            pltpu.VMEM((2 * npad, npad), jnp.float32),   # carried / vertical field
            pltpu.VMEM((npad, 2 * npad), jnp.float32),   # horizontal staging buffer
        ],
        compiler_params=pltpu.CompilerParams(
            dimension_semantics=("arbitrary",)),         # stages are sequential
        cost_estimate=pl.CostEstimate(
            flops=805_306_368, transcendentals=0, bytes_accessed=2_883_584),
    )(consts, h_in, masks, x_in)

    def cplx(j):
        return (out[2 * j] + 1j * out[2 * j + 1])[:n, :n]

    x1, x2, x3, x4, x5, x6, x7 = (cplx(j) for j in range(7))
    x8 = out[14][:n, :n]
    return (x8, x1, x2, x3, x4, x5, x6, x7)


# ---------------- pure-JAX reference (sanity check) ----------------
def _prop_ref(u, H):
    U1 = jnp.fft.fft2(jnp.fft.fftshift(u))
    U2 = H * U1
    return jnp.fft.ifftshift(jnp.fft.ifft2(U2))


def optic_ref(x, H, W1, W2, W3):
    x1 = _prop_ref(x, H)
    x2 = x1 * jnp.exp(-1j * W1)
    x3 = _prop_ref(x2, H)
    x4 = x3 * jnp.exp(-1j * W2)
    x5 = _prop_ref(x4, H)
    x6 = x5 * jnp.exp(-1j * W3)
    x7 = _prop_ref(x6, H)
    x8 = jnp.abs(x7) ** 2
    return (x8, x1, x2, x3, x4, x5, x6, x7)


if __name__ == "__main__":
    key = jax.random.PRNGKey(0)
    k1, k2, k3, k4, k5, k6 = jax.random.split(key, 6)

    # Input field (complex), transfer function H (unit magnitude), and the
    # three phase-mask parameters (torch init: normal(0, 1) on 120x120).
    x = (jax.random.normal(k1, (N, N)) + 1j * jax.random.normal(k2, (N, N))
         ).astype(jnp.complex64)
    H = jnp.exp(1j * jax.random.normal(k3, (N, N))).astype(jnp.complex64)
    W1 = jax.random.normal(k4, (N, N), dtype=jnp.float32)
    W2 = jax.random.normal(k5, (N, N), dtype=jnp.float32)
    W3 = jax.random.normal(k6, (N, N), dtype=jnp.float32)

    outs = jax.block_until_ready(optic_forward(x, H, W1, W2, W3))
    refs = optic_ref(x, H, W1, W2, W3)

    def relerr(a, b):
        return float(jnp.max(jnp.abs(a - b)) / (jnp.max(jnp.abs(b)) + 1e-8))

    names = ("x8", "x1", "x2", "x3", "x4", "x5", "x6", "x7")
    for name, o, r in zip(names, outs, refs):
        err = relerr(o, r)
        assert err < 1e-2, f"{name} mismatch vs FFT reference: {err}"

    print("KERNEL_OK")
</pallas_src>

<mosaic_0001>
module attributes {stable_mosaic.version = 11 : i64} {
  func.func @optic_kernel(%arg0: i32, %arg1: memref<8x256x256xbf16, #tpu.memory_space<vmem>>, %arg2: memref<2x128x128xf32, #tpu.memory_space<vmem>>, %arg3: memref<2x128x128xf32, #tpu.memory_space<vmem>>, %arg4: memref<256x128xf32, #tpu.memory_space<vmem>>, %arg5: memref<4x128x128xf32, #tpu.memory_space<vmem>>, %arg6: memref<256x128xf32, #tpu.memory_space<vmem>>, %arg7: memref<128x256xf32, #tpu.memory_space<vmem>>) attributes {dimension_semantics = [#tpu.dimension_semantics<arbitrary>], iteration_bounds = array<i64: 4>, scalar_prefetch = 0 : i64, scratch_operands = 2 : i64, tpu.core_type = #tpu.core_type<tc>, window_params = [{pipeline_mode = #tpu.pipeline_mode<synchronous>, transform_indices = @transform_0, window_bounds = array<i64: 8, 256, 256>}, {pipeline_mode = #tpu.pipeline_mode<synchronous>, transform_indices = @transform_1, window_bounds = array<i64: 2, 128, 128>}, {transform_indices = @transform_2, window_bounds = array<i64: 2, 128, 128>}, {pipeline_mode = #tpu.pipeline_mode<synchronous>, transform_indices = @transform_3, window_bounds = array<i64: 256, 128>}, {transform_indices = @transform_4, window_bounds = array<i64: 4, 128, 128>}]} {
    %c0_i32 = arith.constant 0 : i32
    %0 = arith.cmpi eq, %arg0, %c0_i32 : i32
    %1 = arith.extui %0 : i1 to i32
    %c0_i32_0 = arith.constant 0 : i32
    %2 = arith.cmpi ne, %1, %c0_i32_0 : i32
    scf.if %2 {
      %c0_62 = arith.constant 0 : index
      %c0_63 = arith.constant 0 : index
      %95 = vector.load %arg4[%c0_62, %c0_63] : memref<256x128xf32, #tpu.memory_space<vmem>>, vector<256x128xf32>
      %c0_64 = arith.constant 0 : index
      %c0_65 = arith.constant 0 : index
      %96 = vector.load %arg6[%c0_64, %c0_65] : memref<256x128xf32, #tpu.memory_space<vmem>>, vector<256x128xf32>
      tpu.vector_store %arg6[%c0_64, %c0_65], %95 {strides = array<i32>} : memref<256x128xf32, #tpu.memory_space<vmem>>, vector<256x128xf32>,
    } else {
    }
    %c0 = arith.constant 0 : index
    %c0_1 = arith.constant 0 : index
    %3 = vector.load %arg6[%c0, %c0_1] : memref<256x128xf32, #tpu.memory_space<vmem>>, vector<256x128xf32>
    %4 = arith.truncf %3 : vector<256x128xf32> to vector<256x128xbf16>
    %5 = arith.extf %4 : vector<256x128xbf16> to vector<256x128xf32>
    %6 = arith.subf %3, %5 : vector<256x128xf32>
    %7 = arith.truncf %6 : vector<256x128xf32> to vector<256x128xbf16>
    %c0_2 = arith.constant 0 : index
    %c0_3 = arith.constant 0 : index
    %c0_4 = arith.constant 0 : index
    %8 = vector.load %arg1[%c0_2, %c0_3, %c0_4] : memref<8x256x256xbf16, #tpu.memory_space<vmem>>, vector<1x256x256xbf16>
    %9 = vector.shape_cast %8 : vector<1x256x256xbf16> to vector<256x256xbf16>
    %c1 = arith.constant 1 : index
    %c0_5 = arith.constant 0 : index
    %c0_6 = arith.constant 0 : index
    %10 = vector.load %arg1[%c1, %c0_5, %c0_6] : memref<8x256x256xbf16, #tpu.memory_space<vmem>>, vector<1x256x256xbf16>
    %11 = vector.shape_cast %10 : vector<1x256x256xbf16> to vector<256x256xbf16>
    %cst = arith.constant dense<0.000000e+00> : vector<256x128xf32>
    %12 = tpu.matmul %9, %4, %cst {dimension_numbers = #tpu.dot_dimension_numbers<[1], [0], [0], [1], [0, 0, 1, 1], [], []>} : vector<256x256xbf16>, vector<256x128xbf16>, vector<256x128xf32> -> vector<256x128xf32>
    %cst_7 = arith.constant dense<0.000000e+00> : vector<256x128xf32>
    %13 = tpu.matmul %9, %7, %cst_7 {dimension_numbers = #tpu.dot_dimension_numbers<[1], [0], [0], [1], [0, 0, 1, 1], [], []>} : vector<256x256xbf16>, vector<256x128xbf16>, vector<256x128xf32> -> vector<256x128xf32>
    %14 = arith.addf %12, %13 : vector<256x128xf32>
    %cst_8 = arith.constant dense<0.000000e+00> : vector<256x128xf32>
    %15 = tpu.matmul %11, %4, %cst_8 {dimension_numbers = #tpu.dot_dimension_numbers<[1], [0], [0], [1], [0, 0, 1, 1], [], []>} : vector<256x256xbf16>, vector<256x128xbf16>, vector<256x128xf32> -> vector<256x128xf32>
    %16 = arith.addf %14, %15 : vector<256x128xf32>
    %17 = vector.extract_strided_slice %16 {offsets = [0, 0], sizes = [128, 128], strides = [1, 1]} : vector<256x128xf32> to vector<128x128xf32>
    %c0_9 = arith.constant 0 : index
    %c0_10 = arith.constant 0 : index
    %18 = vector.load %arg7[%c0_9, %c0_10] : memref<128x256xf32, #tpu.memory_space<vmem>>, vector<128x128xf32>
    tpu.vector_store %arg7[%c0_9, %c0_10], %17 {strides = array<i32>} : memref<128x256xf32, #tpu.memory_space<vmem>>, vector<128x128xf32>,
    %19 = vector.extract_strided_slice %16 {offsets = [128, 0], sizes = [128, 128], strides = [1, 1]} : vector<256x128xf32> to vector<128x128xf32>
    %c0_11 = arith.constant 0 : index
    %c128 = arith.constant 128 : index
    %20 = vector.load %arg7[%c0_11, %c128] : memref<128x256xf32, #tpu.memory_space<vmem>>, vector<128x128xf32>
    tpu.vector_store %arg7[%c0_11, %c128], %19 {strides = array<i32>} : memref<128x256xf32, #tpu.memory_space<vmem>>, vector<128x128xf32>,
    %c0_12 = arith.constant 0 : index
    %c0_13 = arith.constant 0 : index
    %21 = vector.load %arg7[%c0_12, %c0_13] : memref<128x256xf32, #tpu.memory_space<vmem>>, vector<128x256xf32>
    %22 = arith.truncf %21 : vector<128x256xf32> to vector<128x256xbf16>
    %23 = arith.extf %22 : vector<128x256xbf16> to vector<128x256xf32>
    %24 = arith.subf %21, %23 : vector<128x256xf32>
    %25 = arith.truncf %24 : vector<128x256xf32> to vector<128x256xbf16>
    %c2 = arith.constant 2 : index
    %c0_14 = arith.constant 0 : index
    %c0_15 = arith.constant 0 : index
    %26 = vector.load %arg1[%c2, %c0_14, %c0_15] : memref<8x256x256xbf16, #tpu.memory_space<vmem>>, vector<1x256x256xbf16>
    %27 = vector.shape_cast %26 : vector<1x256x256xbf16> to vector<256x256xbf16>
    %c3 = arith.constant 3 : index
    %c0_16 = arith.constant 0 : index
    %c0_17 = arith.constant 0 : index
    %28 = vector.load %arg1[%c3, %c0_16, %c0_17] : memref<8x256x256xbf16, #tpu.memory_space<vmem>>, vector<1x256x256xbf16>
    %29 = vector.shape_cast %28 : vector<1x256x256xbf16> to vector<256x256xbf16>
    %cst_18 = arith.constant dense<0.000000e+00> : vector<128x256xf32>
    %30 = tpu.matmul %22, %27, %cst_18 {dimension_numbers = #tpu.dot_dimension_numbers<[1], [0], [0], [1], [0, 0, 1, 1], [], []>} : vector<128x256xbf16>, vector<256x256xbf16>, vector<128x256xf32> -> vector<128x256xf32>
    %cst_19 = arith.constant dense<0.000000e+00> : vector<128x256xf32>
    %31 = tpu.matmul %22, %29, %cst_19 {dimension_numbers = #tpu.dot_dimension_numbers<[1], [0], [0], [1], [0, 0, 1, 1], [], []>} : vector<128x256xbf16>, vector<256x256xbf16>, vector<128x256xf32> -> vector<128x256xf32>
    %32 = arith.addf %30, %31 : vector<128x256xf32>
    %cst_20 = arith.constant dense<0.000000e+00> : vector<128x256xf32>
    %33 = tpu.matmul %25, %27, %cst_20 {dimension_numbers = #tpu.dot_dimension_numbers<[1], [0], [0], [1], [0, 0, 1, 1], [], []>} : vector<128x256xbf16>, vector<256x256xbf16>, vector<128x256xf32> -> vector<128x256xf32>
    %34 = arith.addf %32, %33 : vector<128x256xf32>
    %35 = vector.extract_strided_slice %34 {offsets = [0, 0], sizes = [128, 128], strides = [1, 1]} : vector<128x256xf32> to vector<128x128xf32>
    %36 = vector.extract_strided_slice %34 {offsets = [0, 128], sizes = [128, 128], strides = [1, 1]} : vector<128x256xf32> to vector<128x128xf32>
    %c0_21 = arith.constant 0 : index
    %c0_22 = arith.constant 0 : index
    %c0_23 = arith.constant 0 : index
    %37 = vector.load %arg2[%c0_21, %c0_22, %c0_23] : memref<2x128x128xf32, #tpu.memory_space<vmem>>, vector<1x128x128xf32>
    %38 = vector.shape_cast %37 : vector<1x128x128xf32> to vector<128x128xf32>
    %c1_24 = arith.constant 1 : index
    %c0_25 = arith.constant 0 : index
    %c0_26 = arith.constant 0 : index
    %39 = vector.load %arg2[%c1_24, %c0_25, %c0_26] : memref<2x128x128xf32, #tpu.memory_space<vmem>>, vector<1x128x128xf32>
    %40 = vector.shape_cast %39 : vector<1x128x128xf32> to vector<128x128xf32>
    %41 = arith.mulf %38, %35 : vector<128x128xf32>
    %42 = arith.mulf %40, %36 : vector<128x128xf32>
    %43 = arith.subf %41, %42 : vector<128x128xf32>
    %c0_27 = arith.constant 0 : index
    %c0_28 = arith.constant 0 : index
    %44 = vector.load %arg6[%c0_27, %c0_28] : memref<256x128xf32, #tpu.memory_space<vmem>>, vector<128x128xf32>
    tpu.vector_store %arg6[%c0_27, %c0_28], %43 {strides = array<i32>} : memref<256x128xf32, #tpu.memory_space<vmem>>, vector<128x128xf32>,
    %45 = arith.mulf %38, %36 : vector<128x128xf32>
    %46 = arith.mulf %40, %35 : vector<128x128xf32>
    %47 = arith.addf %45, %46 : vector<128x128xf32>
    %c128_29 = arith.constant 128 : index
    %c0_30 = arith.constant 0 : index
    %48 = vector.load %arg6[%c128_29, %c0_30] : memref<256x128xf32, #tpu.memory_space<vmem>>, vector<128x128xf32>
    tpu.vector_store %arg6[%c128_29, %c0_30], %47 {strides = array<i32>} : memref<256x128xf32, #tpu.memory_space<vmem>>, vector<128x128xf32>,
    %c0_31 = arith.constant 0 : index
    %c0_32 = arith.constant 0 : index
    %49 = vector.load %arg6[%c0_31, %c0_32] : memref<256x128xf32, #tpu.memory_space<vmem>>, vector<256x128xf32>
    %50 = arith.truncf %49 : vector<256x128xf32> to vector<256x128xbf16>
    %51 = arith.extf %50 : vector<256x128xbf16> to vector<256x128xf32>
    %52 = arith.subf %49, %51 : vector<256x128xf32>
    %53 = arith.truncf %52 : vector<256x128xf32> to vector<256x128xbf16>
    %c4 = arith.constant 4 : index
    %c0_33 = arith.constant 0 : index
    %c0_34 = arith.constant 0 : index
    %54 = vector.load %arg1[%c4, %c0_33, %c0_34] : memref<8x256x256xbf16, #tpu.memory_space<vmem>>, vector<1x256x256xbf16>
    %55 = vector.shape_cast %54 : vector<1x256x256xbf16> to vector<256x256xbf16>
    %c5 = arith.constant 5 : index
    %c0_35 = arith.constant 0 : index
    %c0_36 = arith.constant 0 : index
    %56 = vector.load %arg1[%c5, %c0_35, %c0_36] : memref<8x256x256xbf16, #tpu.memory_space<vmem>>, vector<1x256x256xbf16>
    %57 = vector.shape_cast %56 : vector<1x256x256xbf16> to vector<256x256xbf16>
    %cst_37 = arith.constant dense<0.000000e+00> : vector<256x128xf32>
    %58 = tpu.matmul %55, %50, %cst_37 {dimension_numbers = #tpu.dot_dimension_numbers<[1], [0], [0], [1], [0, 0, 1, 1], [], []>} : vector<256x256xbf16>, vector<256x128xbf16>, vector<256x128xf32> -> vector<256x128xf32>
    %cst_38 = arith.constant dense<0.000000e+00> : vector<256x128xf32>
    %59 = tpu.matmul %55, %53, %cst_38 {dimension_numbers = #tpu.dot_dimension_numbers<[1], [0], [0], [1], [0, 0, 1, 1], [], []>} : vector<256x256xbf16>, vector<256x128xbf16>, vector<256x128xf32> -> vector<256x128xf32>
    %60 = arith.addf %58, %59 : vector<256x128xf32>
    %cst_39 = arith.constant dense<0.000000e+00> : vector<256x128xf32>
    %61 = tpu.matmul %57, %50, %cst_39 {dimension_numbers = #tpu.dot_dimension_numbers<[1], [0], [0], [1], [0, 0, 1, 1], [], []>} : vector<256x256xbf16>, vector<256x128xbf16>, vector<256x128xf32> -> vector<256x128xf32>
    %62 = arith.addf %60, %61 : vector<256x128xf32>
    %63 = vector.extract_strided_slice %62 {offsets = [0, 0], sizes = [128, 128], strides = [1, 1]} : vector<256x128xf32> to vector<128x128xf32>
    %c0_40 = arith.constant 0 : index
    %c0_41 = arith.constant 0 : index
    %64 = vector.load %arg7[%c0_40, %c0_41] : memref<128x256xf32, #tpu.memory_space<vmem>>, vector<128x128xf32>
    tpu.vector_store %arg7[%c0_40, %c0_41], %63 {strides = array<i32>} : memref<128x256xf32, #tpu.memory_space<vmem>>, vector<128x128xf32>,
    %65 = vector.extract_strided_slice %62 {offsets = [128, 0], sizes = [128, 128], strides = [1, 1]} : vector<256x128xf32> to vector<128x128xf32>
    %c0_42 = arith.constant 0 : index
    %c128_43 = arith.constant 128 : index
    %66 = vector.load %arg7[%c0_42, %c128_43] : memref<128x256xf32, #tpu.memory_space<vmem>>, vector<128x128xf32>
    tpu.vector_store %arg7[%c0_42, %c128_43], %65 {strides = array<i32>} : memref<128x256xf32, #tpu.memory_space<vmem>>, vector<128x128xf32>,
    %c0_44 = arith.constant 0 : index
    %c0_45 = arith.constant 0 : index
    %67 = vector.load %arg7[%c0_44, %c0_45] : memref<128x256xf32, #tpu.memory_space<vmem>>, vector<128x256xf32>
    %68 = arith.truncf %67 : vector<128x256xf32> to vector<128x256xbf16>
    %69 = arith.extf %68 : vector<128x256xbf16> to vector<128x256xf32>
    %70 = arith.subf %67, %69 : vector<128x256xf32>
    %71 = arith.truncf %70 : vector<128x256xf32> to vector<128x256xbf16>
    %c6 = arith.constant 6 : index
    %c0_46 = arith.constant 0 : index
    %c0_47 = arith.constant 0 : index
    %72 = vector.load %arg1[%c6, %c0_46, %c0_47] : memref<8x256x256xbf16, #tpu.memory_space<vmem>>, vector<1x256x256xbf16>
    %73 = vector.shape_cast %72 : vector<1x256x256xbf16> to vector<256x256xbf16>
    %c7 = arith.constant 7 : index
    %c0_48 = arith.constant 0 : index
    %c0_49 = arith.constant 0 : index
    %74 = vector.load %arg1[%c7, %c0_48, %c0_49] : memref<8x256x256xbf16, #tpu.memory_space<vmem>>, vector<1x256x256xbf16>
    %75 = vector.shape_cast %74 : vector<1x256x256xbf16> to vector<256x256xbf16>
    %cst_50 = arith.constant dense<0.000000e+00> : vector<128x256xf32>
    %76 = tpu.matmul %68, %73, %cst_50 {dimension_numbers = #tpu.dot_dimension_numbers<[1], [0], [0], [1], [0, 0, 1, 1], [], []>} : vector<128x256xbf16>, vector<256x256xbf16>, vector<128x256xf32> -> vector<128x256xf32>
    %cst_51 = arith.constant dense<0.000000e+00> : vector<128x256xf32>
    %77 = tpu.matmul %68, %75, %cst_51 {dimension_numbers = #tpu.dot_dimension_numbers<[1], [0], [0], [1], [0, 0, 1, 1], [], []>} : vector<128x256xbf16>, vector<256x256xbf16>, vector<128x256xf32> -> vector<128x256xf32>
    %78 = arith.addf %76, %77 : vector<128x256xf32>
    %cst_52 = arith.constant dense<0.000000e+00> : vector<128x256xf32>
    %79 = tpu.matmul %71, %73, %cst_52 {dimension_numbers = #tpu.dot_dimension_numbers<[1], [0], [0], [1], [0, 0, 1, 1], [], []>} : vector<128x256xbf16>, vector<256x256xbf16>, vector<128x256xf32> -> vector<128x256xf32>
    %80 = arith.addf %78, %79 : vector<128x256xf32>
    %81 = vector.extract_strided_slice %80 {offsets = [0, 0], sizes = [128, 128], strides = [1, 1]} : vector<128x256xf32> to vector<128x128xf32>
    %82 = vector.extract_strided_slice %80 {offsets = [0, 128], sizes = [128, 128], strides = [1, 1]} : vector<128x256xf32> to vector<128x128xf32>
    %c0_53 = arith.constant 0 : index
    %c0_54 = arith.constant 0 : index
    %c0_55 = arith.constant 0 : index
    %83 = vector.load %arg5[%c0_53, %c0_54, %c0_55] : memref<4x128x128xf32, #tpu.memory_space<vmem>>, vector<1x128x128xf32>
    %84 = vector.shape_cast %83 : vector<1x128x128xf32> to vector<128x128xf32>
    %85 = vector.shape_cast %81 : vector<128x128xf32> to vector<1x128x128xf32>
    tpu.vector_store %arg5[%c0_53, %c0_54, %c0_55], %85 {strides = array<i32>} : memref<4x128x128xf32, #tpu.memory_space<vmem>>, vector<1x128x128xf32>,
    %c1_56 = arith.constant 1 : index
    %c0_57 = arith.constant 0 : index
    %c0_58 = arith.constant 0 : index
    %86 = vector.load %arg5[%c1_56, %c0_57, %c0_58] : memref<4x128x128xf32, #tpu.memory_space<vmem>>, vector<1x128x128xf32>
    %87 = vector.shape_cast %86 : vector<1x128x128xf32> to vector<128x128xf32>
    %88 = vector.shape_cast %82 : vector<128x128xf32> to vector<1x128x128xf32>
    tpu.vector_store %arg5[%c1_56, %c0_57, %c0_58], %88 {strides = array<i32>} : memref<4x128x128xf32, #tpu.memory_space<vmem>>, vector<1x128x128xf32>,
    %c3_i32 = arith.constant 3 : i32
    %89 = arith.cmpi slt, %arg0, %c3_i32 : i32
    %90 = arith.extui %89 : i1 to i32
    %c0_i32_59 = arith.constant 0 : i32
    %91 = arith.cmpi ne, %90, %c0_i32_59 : i32
    scf.if %91 {
      %c0_62 = arith.constant 0 : index
      %c0_63 = arith.constant 0 : index
      %c0_64 = arith.constant 0 : index
      %95 = vector.load %arg3[%c0_62, %c0_63, %c0_64] : memref<2x128x128xf32, #tpu.memory_space<vmem>>, vector<1x128x128xf32>
      %96 = vector.shape_cast %95 : vector<1x128x128xf32> to vector<128x128xf32>
      %c1_65 = arith.constant 1 : index
      %c0_66 = arith.constant 0 : index
      %c0_67 = arith.constant 0 : index
      %97 = vector.load %arg3[%c1_65, %c0_66, %c0_67] : memref<2x128x128xf32, #tpu.memory_space<vmem>>, vector<1x128x128xf32>
      %98 = vector.shape_cast %97 : vector<1x128x128xf32> to vector<128x128xf32>
      %99 = arith.mulf %81, %96 : vector<128x128xf32>
      %100 = arith.mulf %82, %98 : vector<128x128xf32>
      %101 = arith.subf %99, %100 : vector<128x128xf32>
      %102 = arith.mulf %81, %98 : vector<128x128xf32>
      %103 = arith.mulf %82, %96 : vector<128x128xf32>
      %104 = arith.addf %102, %103 : vector<128x128xf32>
      %c2_68 = arith.constant 2 : index
      %c0_69 = arith.constant 0 : index
      %c0_70 = arith.constant 0 : index
      %105 = vector.load %arg5[%c2_68, %c0_69, %c0_70] : memref<4x128x128xf32, #tpu.memory_space<vmem>>, vector<1x128x128xf32>
      %106 = vector.shape_cast %105 : vector<1x128x128xf32> to vector<128x128xf32>
      %107 = vector.shape_cast %101 : vector<128x128xf32> to vector<1x128x128xf32>
      tpu.vector_store %arg5[%c2_68, %c0_69, %c0_70], %107 {strides = array<i32>} : memref<4x128x128xf32, #tpu.memory_space<vmem>>, vector<1x128x128xf32>,
      %c3_71 = arith.constant 3 : index
      %c0_72 = arith.constant 0 : index
      %c0_73 = arith.constant 0 : index
      %108 = vector.load %arg5[%c3_71, %c0_72, %c0_73] : memref<4x128x128xf32, #tpu.memory_space<vmem>>, vector<1x128x128xf32>
      %109 = vector.shape_cast %108 : vector<1x128x128xf32> to vector<128x128xf32>
      %110 = vector.shape_cast %104 : vector<128x128xf32> to vector<1x128x128xf32>
      tpu.vector_store %arg5[%c3_71, %c0_72, %c0_73], %110 {strides = array<i32>} : memref<4x128x128xf32, #tpu.memory_space<vmem>>, vector<1x128x128xf32>,
      %c0_74 = arith.constant 0 : index
      %c0_75 = arith.constant 0 : index
      %111 = vector.load %arg6[%c0_74, %c0_75] : memref<256x128xf32, #tpu.memory_space<vmem>>, vector<128x128xf32>
      tpu.vector_store %arg6[%c0_74, %c0_75], %101 {strides = array<i32>} : memref<256x128xf32, #tpu.memory_space<vmem>>, vector<128x128xf32>,
      %c128_76 = arith.constant 128 : index
      %c0_77 = arith.constant 0 : index
      %112 = vector.load %arg6[%c128_76, %c0_77] : memref<256x128xf32, #tpu.memory_space<vmem>>, vector<128x128xf32>
      tpu.vector_store %arg6[%c128_76, %c0_77], %104 {strides = array<i32>} : memref<256x128xf32, #tpu.memory_space<vmem>>, vector<128x128xf32>,
    } else {
    }
    %c3_i32_60 = arith.constant 3 : i32
    %92 = arith.cmpi eq, %arg0, %c3_i32_60 : i32
    %93 = arith.extui %92 : i1 to i32
    %c0_i32_61 = arith.constant 0 : i32
    %94 = arith.cmpi ne, %93, %c0_i32_61 : i32
    scf.if %94 {
      %95 = arith.mulf %81, %81 : vector<128x128xf32>
      %96 = arith.mulf %82, %82 : vector<128x128xf32>
      %97 = arith.addf %95, %96 : vector<128x128xf32>
      %c2_62 = arith.constant 2 : index
      %c0_63 = arith.constant 0 : index
      %c0_64 = arith.constant 0 : index
      %98 = vector.load %arg5[%c2_62, %c0_63, %c0_64] : memref<4x128x128xf32, #tpu.memory_space<vmem>>, vector<1x128x128xf32>
      %99 = vector.shape_cast %98 : vector<1x128x128xf32> to vector<128x128xf32>
      %100 = vector.shape_cast %97 : vector<128x128xf32> to vector<1x128x128xf32>
      tpu.vector_store %arg5[%c2_62, %c0_63, %c0_64], %100 {strides = array<i32>} : memref<4x128x128xf32, #tpu.memory_space<vmem>>, vector<1x128x128xf32>,
      %cst_65 = arith.constant 0.000000e+00 : f32
      %101 = vector.broadcast %cst_65 : f32 to vector<128x128xf32>
      %c3_66 = arith.constant 3 : index
      %c0_67 = arith.constant 0 : index
      %c0_68 = arith.constant 0 : index
      %102 = vector.load %arg5[%c3_66, %c0_67, %c0_68] : memref<4x128x128xf32, #tpu.memory_space<vmem>>, vector<1x128x128xf32>
      %103 = vector.shape_cast %102 : vector<1x128x128xf32> to vector<128x128xf32>
      %104 = vector.shape_cast %101 : vector<128x128xf32> to vector<1x128x128xf32>
      tpu.vector_store %arg5[%c3_66, %c0_67, %c0_68], %104 {strides = array<i32>} : memref<4x128x128xf32, #tpu.memory_space<vmem>>, vector<1x128x128xf32>,
    } else {
    }
    return
  }
  func.func @transform_0(%arg0: i32) -> (i32, i32, i32) {
    %c0_i32 = arith.constant 0 : i32
    %c0_i32_0 = arith.constant 0 : i32
    %c0_i32_1 = arith.constant 0 : i32
    %c0_i32_2 = arith.constant 0 : i32
    return %c0_i32, %c0_i32_0, %c0_i32_1 : i32, i32, i32
  }
  func.func @transform_1(%arg0: i32) -> (i32, i32, i32) {
    %c0_i32 = arith.constant 0 : i32
    %c0_i32_0 = arith.constant 0 : i32
    %c0_i32_1 = arith.constant 0 : i32
    %c0_i32_2 = arith.constant 0 : i32
    return %c0_i32, %c0_i32_0, %c0_i32_1 : i32, i32, i32
  }
  func.func @transform_2(%arg0: i32) -> (i32, i32, i32) {
    %c0_i32 = arith.constant 0 : i32
    %c0_i32_0 = arith.constant 0 : i32
    %c0_i32_1 = arith.constant 0 : i32
    return %arg0, %c0_i32, %c0_i32_0 : i32, i32, i32
  }
  func.func @transform_3(%arg0: i32) -> (i32, i32) {
    %c0_i32 = arith.constant 0 : i32
    %c0_i32_0 = arith.constant 0 : i32
    %c0_i32_1 = arith.constant 0 : i32
    return %c0_i32, %c0_i32_0 : i32, i32
  }
  func.func @transform_4(%arg0: i32) -> (i32, i32, i32) {
    %c0_i32 = arith.constant 0 : i32
    %c0_i32_0 = arith.constant 0 : i32
    %c0_i32_1 = arith.constant 0 : i32
    return %arg0, %c0_i32, %c0_i32_0 : i32, i32, i32
  }
}

</mosaic_0001>

<llo_original>
// kernel: custom-call
$region0: #{custom-call}
  %s0 = inlined_call_operand.hbm [shape: c64[120,120], index: 0, kind: input, shape index: {}]
  %s1 = inlined_call_operand.vmem [shape: f32[120,120], index: 1, kind: output, shape index: {}]
  $region1: #{custom-call} parent=0
    #allocation0 [shape = 's32[1]{0}', space=sflag, size = 0x4, scoped, tag = 'scoped memory for custom-call']
    %2 = vsyncpa [#allocation0], 0
    %s3 = sshll.u32 %s1, 4
    %s4 = int_to_ptr.vmem [resolvable:$true] %s3
    %6 = dma.hbm_to_vmem [thread:$0]  %s0, 1920, %s4, [#allocation0]
    %7 = dma.done [#allocation0], 1920
    %8 = vsyncpa [#allocation0], 1

// kernel: custom-call.1
$region0: #{custom-call.1}
  %s0 = inlined_call_operand.hbm [shape: c64[120,120], index: 0, kind: input, shape index: {}]
  %s1 = inlined_call_operand.vmem [shape: f32[120,120], index: 1, kind: output, shape index: {}]
  %s2 = scalar_lea.hbm %s0, 1920
  $region1: #{custom-call.1} parent=0
    #allocation0 [shape = 's32[1]{0}', space=sflag, size = 0x4, scoped, tag = 'scoped memory for custom-call.1']
    %3 = vsyncpa [#allocation0], 0
    %s4 = sshll.u32 %s1, 4
    %s5 = int_to_ptr.vmem [resolvable:$true] %s4
    %7 = dma.hbm_to_vmem [thread:$0]  %s2, 1920, %s5, [#allocation0]
    %8 = dma.done [#allocation0], 1920
    %9 = vsyncpa [#allocation0], 1

// kernel: custom-call.10
$region0: #{custom-call.10}
  %s0 = inlined_call_operand.vmem [shape: f32[120,120], index: 0, kind: input, shape index: {}]
  %s1 = inlined_call_operand.vmem [shape: f32[120,120], index: 1, kind: input, shape index: {}]
  %s2 = inlined_call_operand.hbm [shape: c64[120,120], index: 2, kind: output, shape index: {}]
  %s3 = scalar_lea.hbm %s2, 1920
  $region1: #{custom-call.10} parent=0
    #allocation0 [shape = 's32[1]{0}', space=sflag, size = 0x4, scoped, tag = 'scoped memory for custom-call.10']
    %4 = vsyncpa [#allocation0], 0
    %s5 = sshll.u32 %s0, 4
    %s6 = int_to_ptr.vmem [resolvable:$true] %s5
    %8 = dma.vmem_to_hbm [thread:$0]  %s6, 1920, %s2, [#allocation0]
    %9 = dma.done [#allocation0], 1920
    %10 = vsyncpa [#allocation0], 1
  $region2: #{custom-call.10} parent=0
    #allocation1 [shape = 's32[1]{0}', space=sflag, size = 0x4, scoped, tag = 'scoped memory for custom-call.10']
    %11 = vsyncpa [#allocation1], 0
    %s12 = sshll.u32 %s1, 4
    %s13 = int_to_ptr.vmem [resolvable:$true] %s12
    %15 = dma.vmem_to_hbm [thread:$0]  %s13, 1920, %s3, [#allocation1]
    %16 = dma.done [#allocation1], 1920
    %17 = vsyncpa [#allocation1], 1

// kernel: optic_forward.1
$region0: #{optic_forward.1}
  #allocation0 [shape = 'u32[]', space=smem, size = 0x4, offset = 0x4, fixed_abs, tag = 'smem constant byte address 0x4 - core index']
  #allocation1 [shape = 'u32[144,128]{1,0:T(1,128)}', space=vmem, size = 0x12000, scoped, tag = 'internal scratch']
  #allocation2 [shape = 'f32[256,128]{1,0:T(8,128)}', space=vmem, size = 0x20000, scoped, tag = 'scratch operand']
  #allocation3 [shape = 'f32[128,256]{1,0:T(8,128)}', space=vmem, size = 0x20000, scoped, tag = 'scratch operand']
  %s0 = inlined_call_operand.vmem [shape: bf16[8,256,256], index: 0, kind: input, shape index: {}]
  %s1 = inlined_call_operand.vmem [shape: f32[2,128,128], index: 1, kind: input, shape index: {}]
  %s2 = inlined_call_operand.vmem [shape: f32[8,128,128], index: 2, kind: input, shape index: {}]
  %s3 = inlined_call_operand.vmem [shape: f32[256,128], index: 3, kind: input, shape index: {}]
  %s4 = inlined_call_operand.vmem [shape: f32[16,128,128], index: 4, kind: output, shape index: {}]
  %s5 = sld [smem:[#allocation0]]
  $region61: #{optic_forward.1} parent=0
    _
  %s7 = ssub.s32 1, %s5
  %s8 = scalar_select 0, %s7, %s5
  loop: start=0, step=1, limit=6
  $region2: #{optic_forward.1} parent=0 // loop_pre_header
    _
  $region3: #{optic_forward.1} parent=0 // loop_header
    %s10 = sphi 0, %s14
    %p11 = scmp.ge.s32.totalorder %s10, 6
    %s18 = sphi 0, %s18
    %s20 = sphi 0, %s18
    %s21 = sphi 0, %s20
    %s35 = sphi 0, %s21
    %s39 = sphi 0, %s39
    %s41 = sphi 0, %s39
    %s42 = sphi 0, %s41
    %s56 = sphi 0, %s42
    %s62 = sphi 0, %s64
    %s65 = sphi 0, %s62
    %s66 = sphi 0, %s65
    %s82 = sphi 0, %s66
    %s86 = sphi 0, %s86
    %s88 = sphi 0, %s86
    %s89 = sphi 0, %s88
    %s103 = sphi 0, %s89
    %s109 = sphi 0, %s111
    %s112 = sphi 0, %s109
    %s113 = sphi 0, %s112
    %s129 = sphi 0, %s113
  $region4: #{optic_forward.1} parent=0 // loop_header_branch
    %13 = sbr.rel (%p11) target = $region8
  $region5: #{optic_forward.1} parent=0 // loop_body
    %s15 = ssub.s32 %s10, 1
    %s16 = ssub.s32 %s10, 2
    %s17 = sadd.s32 %s10, 1
    %s19 = sadd.s32 %s18, 1
    %p22 = scmp.eq.s32.totalorder %s10, 3
    %p23 = scmp.ne.s32.totalorder %s18, %s20
    %p24 = scmp.eq.s32.totalorder %s10, 0
    %p25 = por %p23, %p24
    %p26 = scmp.ne.s32.totalorder %s18, %s20
    %p27 = scmp.eq.s32.totalorder %s15, 3
    %p28 = por %p26, %p27
    %p29 = scmp.ne.s32.totalorder %s20, %s21
    %p30 = scmp.eq.s32.totalorder %s15, 0
    %p31 = por %p29, %p30
    %p32 = scmp.ne.s32.totalorder %s20, %s21
    %p33 = scmp.eq.s32.totalorder %s16, 3
    %p34 = por %p32, %p33
    %p36 = scmp.ne.s32.totalorder %s21, %s35
    %p37 = scmp.eq.s32.totalorder %s16, 0
    %p38 = por %p36, %p37
    %s40 = sadd.s32 %s39, 1
    %p43 = scmp.eq.s32.totalorder %s10, 3
    %p44 = scmp.ne.s32.totalorder %s39, %s41
    %p45 = scmp.eq.s32.totalorder %s10, 0
    %p46 = por %p44, %p45
    %p47 = scmp.ne.s32.totalorder %s39, %s41
    %p48 = scmp.eq.s32.totalorder %s15, 3
    %p49 = por %p47, %p48
    %p50 = scmp.ne.s32.totalorder %s41, %s42
    %p51 = scmp.eq.s32.totalorder %s15, 0
    %p52 = por %p50, %p51
    %p53 = scmp.ne.s32.totalorder %s41, %s42
    %p54 = scmp.eq.s32.totalorder %s16, 3
    %p55 = por %p53, %p54
    %p57 = scmp.ne.s32.totalorder %s42, %s56
    %p58 = scmp.eq.s32.totalorder %s16, 0
    %p59 = por %p57, %p58
    %s60 = ssub.s32 %s10, %s17
    %p61 = scmp.eq.s32.totalorder %s60, 0
    %s63 = sadd.s32 %s62, 1
    %s64 = scalar_select %p61, %s62, %s63
    %p67 = pneg %p61
    %p68 = scmp.eq.s32.totalorder %s10, 3
    %p69 = por %p67, %p68
    %p70 = scmp.ne.s32.totalorder %s62, %s65
    %p71 = scmp.eq.s32.totalorder %s10, 0
    %p72 = por %p70, %p71
    %p73 = scmp.ne.s32.totalorder %s62, %s65
    %p74 = scmp.eq.s32.totalorder %s15, 3
    %p75 = por %p73, %p74
    %p76 = scmp.ne.s32.totalorder %s65, %s66
    %p77 = scmp.eq.s32.totalorder %s15, 0
    %p78 = por %p76, %p77
    %p79 = scmp.ne.s32.totalorder %s65, %s66
    %p80 = scmp.eq.s32.totalorder %s16, 3
    %p81 = por %p79, %p80
    %p83 = scmp.ne.s32.totalorder %s66, %s82
    %p84 = scmp.eq.s32.totalorder %s16, 0
    %p85 = por %p83, %p84
    %s87 = sadd.s32 %s86, 1
    %p90 = scmp.eq.s32.totalorder %s10, 3
    %p91 = scmp.ne.s32.totalorder %s86, %s88
    %p92 = scmp.eq.s32.totalorder %s10, 0
    %p93 = por %p91, %p92
    %p94 = scmp.ne.s32.totalorder %s86, %s88
    %p95 = scmp.eq.s32.totalorder %s15, 3
    %p96 = por %p94, %p95
    %p97 = scmp.ne.s32.totalorder %s88, %s89
    %p98 = scmp.eq.s32.totalorder %s15, 0
    %p99 = por %p97, %p98
    %p100 = scmp.ne.s32.totalorder %s88, %s89
    %p101 = scmp.eq.s32.totalorder %s16, 3
    %p102 = por %p100, %p101
    %p104 = scmp.ne.s32.totalorder %s89, %s103
    %p105 = scmp.eq.s32.totalorder %s16, 0
    %p106 = por %p104, %p105
    %s107 = ssub.s32 %s10, %s17
    %p108 = scmp.eq.s32.totalorder %s107, 0
    %s110 = sadd.s32 %s109, 1
    %s111 = scalar_select %p108, %s109, %s110
    %p114 = pneg %p108
    %p115 = scmp.eq.s32.totalorder %s10, 3
    %p116 = por %p114, %p115
    %p117 = scmp.ne.s32.totalorder %s109, %s112
    %p118 = scmp.eq.s32.totalorder %s10, 0
    %p119 = por %p117, %p118
    %p120 = scmp.ne.s32.totalorder %s109, %s112
    %p121 = scmp.eq.s32.totalorder %s15, 3
    %p122 = por %p120, %p121
    %p123 = scmp.ne.s32.totalorder %s112, %s113
    %p124 = scmp.eq.s32.totalorder %s15, 0
    %p125 = por %p123, %p124
    %p126 = scmp.ne.s32.totalorder %s112, %s113
    %p127 = scmp.eq.s32.totalorder %s16, 3
    %p128 = por %p126, %p127
    %p130 = scmp.ne.s32.totalorder %s113, %s129
    %p131 = scmp.eq.s32.totalorder %s16, 0
    %p132 = por %p130, %p131
    %p133 = scmp.le.s32.totalorder 1, %s10
    %p134 = scmp.lt.s32.totalorder %s10, 5
    %p135 = pnand %p133, %p134
    %p136 = pneg %p135
    // Predicated region
    $region9: #{optic_forward.1} parent=5 // pred_check
      _
    $region10: #{optic_forward.1} parent=5 // pred_check_branch
      %138 = sbr.rel (%p135) target = $region12
    $region11: #{optic_forward.1} parent=5 // pred_region
      %s139 = ssub.s32 %s10, 1
      // Predicated region
      $region13: #{optic_forward.1} parent=11 // pred_check
        %p140 = pneg %p31
      $region14: #{optic_forward.1} parent=11 // pred_check_branch
        %142 = sbr.rel (%p140) target = $region16
      $region15: #{optic_forward.1} parent=11 // pred_region
        _
      $region16: #{optic_forward.1} parent=11 // pred_fallthru
        _
      // Predicated region
      $region17: #{optic_forward.1} parent=11 // pred_check
        %p143 = pneg %p52
      $region18: #{optic_forward.1} parent=11 // pred_check_branch
        %145 = sbr.rel (%p143) target = $region20
      $region19: #{optic_forward.1} parent=11 // pred_region
        _
      $region20: #{optic_forward.1} parent=11 // pred_fallthru
        _
      // Predicated region
      $region21: #{optic_forward.1} parent=11 // pred_check
        %p146 = pneg %p99
      $region22: #{optic_forward.1} parent=11 // pred_check_branch
        %148 = sbr.rel (%p146) target = $region24
      $region23: #{optic_forward.1} parent=11 // pred_region
        _
      $region24: #{optic_forward.1} parent=11 // pred_fallthru
        _
    $region12: #{optic_forward.1} parent=5 // pred_fallthru
      _
    %p149 = scmp.lt.s32.totalorder %s10, 4
    // Predicated region
    $region25: #{optic_forward.1} parent=5 // pred_check
      %p150 = pneg %p149
    $region26: #{optic_forward.1} parent=5 // pred_check_branch
      %152 = sbr.rel (%p150) target = $region28
    $region27: #{optic_forward.1} parent=5 // pred_region
      // Predicated region
      $region29: #{optic_forward.1} parent=27 // pred_check
        %p153 = pneg %p72
      $region30: #{optic_forward.1} parent=27 // pred_check_branch
        %155 = sbr.rel (%p153) target = $region32
      $region31: #{optic_forward.1} parent=27 // pred_region
        %s156 = smul.u32 2, %s10
        %p157 = scmp.lt.s32.totalorder %s156, 7
        %s158 = scalar_select %p157, %s156, 7
        %s159 = smul.addr %s158, 16
        %s160 = smul.addr %s159, 8
        %s161 = scalar_lea.vmem %s2, %s160
        %s162 = smul.u32 2, %s10
      $region32: #{optic_forward.1} parent=27 // pred_fallthru
        _
    $region28: #{optic_forward.1} parent=5 // pred_fallthru
      _
    %p163 = scmp.le.s32.totalorder 1, %s10
    %p164 = scmp.lt.s32.totalorder %s10, 5
    %p165 = pnand %p163, %p164
    %p166 = pneg %p165
    // Predicated region
    $region33: #{optic_forward.1} parent=5 // pred_check
      _
    $region34: #{optic_forward.1} parent=5 // pred_check_branch
      %168 = sbr.rel (%p165) target = $region36
    $region35: #{optic_forward.1} parent=5 // pred_region
      %s169 = ssub.s32 %s10, 1
      %p170 = pneg %p31
      %p171 = pneg %p28
      %p172 = pneg %p52
      %p173 = pneg %p49
      %s174 = smul.u32 2, %s15
      %p175 = scmp.lt.s32.totalorder %s174, 7
      %s176 = scalar_select %p175, %s174, 7
      %s177 = smul.addr %s176, 16
      %s178 = smul.addr %s177, 8
      %s179 = scalar_lea.vmem %s2, %s178
      %p180 = pneg %p78
      %p181 = pneg %p75
      %p182 = pneg %p99
      %p183 = pneg %p96
      %p184 = pneg %p125
      %p185 = pneg %p122
      %s186 = smul.u32 4, %s15
      %p187 = scmp.lt.s32.totalorder %s186, 15
      %s188 = scalar_select %p187, %s186, 15
      %s189 = smul.addr %s188, 16
      %s190 = smul.addr %s189, 8
      %s191 = scalar_lea.vmem %s4, %s190
      %s192 = smul.u32 2, %s15
      %p193 = scmp.lt.s32.totalorder %s192, 7
      %s194 = scalar_select %p193, %s192, 7
      %s195 = smul.addr %s194, 16
      %s196 = smul.addr %s195, 8
      %s197 = scalar_lea.vmem %s2, %s196
      %s198 = smul.u32 2, %s15
      %s199 = smul.u32 4, %s15
      %p200 = scmp.lt.s32.totalorder %s199, 15
      %s201 = scalar_select %p200, %s199, 15
      %s202 = smul.addr %s201, 16
      %s203 = smul.addr %s202, 8
      %s204 = scalar_lea.vmem %s4, %s203
      %s205 = smul.u32 4, %s15
      %p207 = scmp.eq.s32.totalorder %s15, 0
      // Predicated region
      $region37: #{optic_forward.1} parent=35 // pred_check
        %p208 = pneg %p207
      $region38: #{optic_forward.1} parent=35 // pred_check_branch
        %210 = sbr.rel (%p208) target = $region40
      $region39: #{optic_forward.1} parent=35 // pred_region
        %v211 = vld [vmem:[%s3] sm:$0xff]
        %v212 = vld [vmem:[%s3 + $0x8] sm:$0xff]
        %v213 = vld [vmem:[%s3 + $0x10] sm:$0xff]
        %v214 = vld [vmem:[%s3 + $0x18] sm:$0xff]
        %v215 = vld [vmem:[%s3 + $0x20] sm:$0xff]
        %v216 = vld [vmem:[%s3 + $0x28] sm:$0xff]
        %v217 = vld [vmem:[%s3 + $0x30] sm:$0xff]
        %v218 = vld [vmem:[%s3 + $0x38] sm:$0xff]
        %v219 = vld [vmem:[%s3 + $0x40] sm:$0xff]
        %v220 = vld [vmem:[%s3 + $0x48] sm:$0xff]
        %v221 = vld [vmem:[%s3 + $0x50] sm:$0xff]
        %v222 = vld [vmem:[%s3 + $0x58] sm:$0xff]
        %v223 = vld [vmem:[%s3 + $0x60] sm:$0xff]
        %v224 = vld [vmem:[%s3 + $0x68] sm:$0xff]
        %v225 = vld [vmem:[%s3 + $0x70] sm:$0xff]
        %v226 = vld [vmem:[%s3 + $0x78] sm:$0xff]
        %v227 = vld [vmem:[%s3 + $0x80] sm:$0xff]
        %v228 = vld [vmem:[%s3 + $0x88] sm:$0xff]
        %v229 = vld [vmem:[%s3 + $0x90] sm:$0xff]
        %v230 = vld [vmem:[%s3 + $0x98] sm:$0xff]
        %v231 = vld [vmem:[%s3 + $0xa0] sm:$0xff]
        %v232 = vld [vmem:[%s3 + $0xa8] sm:$0xff]
        %v233 = vld [vmem:[%s3 + $0xb0] sm:$0xff]
        %v234 = vld [vmem:[%s3 + $0xb8] sm:$0xff]
        %v235 = vld [vmem:[%s3 + $0xc0] sm:$0xff]
        %v236 = vld [vmem:[%s3 + $0xc8] sm:$0xff]
        %v237 = vld [vmem:[%s3 + $0xd0] sm:$0xff]
        %v238 = vld [vmem:[%s3 + $0xd8] sm:$0xff]
        %v239 = vld [vmem:[%s3 + $0xe0] sm:$0xff]
        %v240 = vld [vmem:[%s3 + $0xe8] sm:$0xff]
        %v241 = vld [vmem:[%s3 + $0xf0] sm:$0xff]
        %v242 = vld [vmem:[%s3 + $0xf8] sm:$0xff]
        %243 = vst [vmem:[#allocation2] sm:$0xff] %v211
        %244 = vst [vmem:[#allocation2 + $0x8] sm:$0xff] %v212
        %245 = vst [vmem:[#allocation2 + $0x10] sm:$0xff] %v213
        %246 = vst [vmem:[#allocation2 + $0x18] sm:$0xff] %v214
        %247 = vst [vmem:[#allocation2 + $0x20] sm:$0xff] %v215
        %248 = vst [vmem:[#allocation2 + $0x28] sm:$0xff] %v216
        %249 = vst [vmem:[#allocation2 + $0x30] sm:$0xff] %v217
        %250 = vst [vmem:[#allocation2 + $0x38] sm:$0xff] %v218
        %251 = vst [vmem:[#allocation2 + $0x40] sm:$0xff] %v219
        %252 = vst [vmem:[#allocation2 + $0x48] sm:$0xff] %v220
        %253 = vst [vmem:[#allocation2 + $0x50] sm:$0xff] %v221
        %254 = vst [vmem:[#allocation2 + $0x58] sm:$0xff] %v222
        %255 = vst [vmem:[#allocation2 + $0x60] sm:$0xff] %v223
        %256 = vst [vmem:[#allocation2 + $0x68] sm:$0xff] %v224
        %257 = vst [vmem:[#allocation2 + $0x70] sm:$0xff] %v225
        %258 = vst [vmem:[#allocation2 + $0x78] sm:$0xff] %v226
        %259 = vst [vmem:[#allocation2 + $0x80] sm:$0xff] %v227
        %260 = vst [vmem:[#allocation2 + $0x88] sm:$0xff] %v228
        %261 = vst [vmem:[#allocation2 + $0x90] sm:$0xff] %v229
        %262 = vst [vmem:[#allocation2 + $0x98] sm:$0xff] %v230
        %263 = vst [vmem:[#allocation2 + $0xa0] sm:$0xff] %v231
        %264 = vst [vmem:[#allocation2 + $0xa8] sm:$0xff] %v232
        %265 = vst [vmem:[#allocation2 + $0xb0] sm:$0xff] %v233
        %266 = vst [vmem:[#allocation2 + $0xb8] sm:$0xff] %v234
        %267 = vst [vmem:[#allocation2 + $0xc0] sm:$0xff] %v235
        %268 = vst [vmem:[#allocation2 + $0xc8] sm:$0xff] %v236
        %269 = vst [vmem:[#allocation2 + $0xd0] sm:$0xff] %v237
        %270 = vst [vmem:[#allocation2 + $0xd8] sm:$0xff] %v238
        %271 = vst [vmem:[#allocation2 + $0xe0] sm:$0xff] %v239
        %272 = vst [vmem:[#allocation2 + $0xe8] sm:$0xff] %v240
        %273 = vst [vmem:[#allocation2 + $0xf0] sm:$0xff] %v241
        %274 = vst [vmem:[#allocation2 + $0xf8] sm:$0xff] %v242
      $region40: #{optic_forward.1} parent=35 // pred_fallthru
        _
      %v275 = vld [vmem:[#allocation2] sm:$0xff]
      %v276 = vld [vmem:[#allocation2 + $0x8] sm:$0xff]
      %v277 = vld [vmem:[#allocation2 + $0x10] sm:$0xff]
      %v278 = vld [vmem:[#allocation2 + $0x18] sm:$0xff]
      %v279 = vld [vmem:[#allocation2 + $0x20] sm:$0xff]
      %v280 = vld [vmem:[#allocation2 + $0x28] sm:$0xff]
      %v281 = vld [vmem:[#allocation2 + $0x30] sm:$0xff]
      %v282 = vld [vmem:[#allocation2 + $0x38] sm:$0xff]
      %v283 = vld [vmem:[#allocation2 + $0x40] sm:$0xff]
      %v284 = vld [vmem:[#allocation2 + $0x48] sm:$0xff]
      %v285 = vld [vmem:[#allocation2 + $0x50] sm:$0xff]
      %v286 = vld [vmem:[#allocation2 + $0x58] sm:$0xff]
      %v287 = vld [vmem:[#allocation2 + $0x60] sm:$0xff]
      %v288 = vld [vmem:[#allocation2 + $0x68] sm:$0xff]
      %v289 = vld [vmem:[#allocation2 + $0x70] sm:$0xff]
      %v290 = vld [vmem:[#allocation2 + $0x78] sm:$0xff]
      %v291 = vld [vmem:[#allocation2 + $0x80] sm:$0xff]
      %v292 = vld [vmem:[#allocation2 + $0x88] sm:$0xff]
      %v293 = vld [vmem:[#allocation2 + $0x90] sm:$0xff]
      %v294 = vld [vmem:[#allocation2 + $0x98] sm:$0xff]
      %v295 = vld [vmem:[#allocation2 + $0xa0] sm:$0xff]
      %v296 = vld [vmem:[#allocation2 + $0xa8] sm:$0xff]
      %v297 = vld [vmem:[#allocation2 + $0xb0] sm:$0xff]
      %v298 = vld [vmem:[#allocation2 + $0xb8] sm:$0xff]
      %v299 = vld [vmem:[#allocation2 + $0xc0] sm:$0xff]
      %v300 = vld [vmem:[#allocation2 + $0xc8] sm:$0xff]
      %v301 = vld [vmem:[#allocation2 + $0xd0] sm:$0xff]
      %v302 = vld [vmem:[#allocation2 + $0xd8] sm:$0xff]
      %v303 = vld [vmem:[#allocation2 + $0xe0] sm:$0xff]
      %v304 = vld [vmem:[#allocation2 + $0xe8] sm:$0xff]
      %v305 = vld [vmem:[#allocation2 + $0xf0] sm:$0xff]
      %v306 = vld [vmem:[#allocation2 + $0xf8] sm:$0xff]
      %v307 = vpack.c.bf16 %v276, %v275
      %v308 = vpack.c.bf16 %v278, %v277
      %v309 = vpack.c.bf16 %v280, %v279
      %v310 = vpack.c.bf16 %v282, %v281
      %v311 = vpack.c.bf16 %v284, %v283
      %v312 = vpack.c.bf16 %v286, %v285
      %v313 = vpack.c.bf16 %v288, %v287
      %v314 = vpack.c.bf16 %v290, %v289
      %v315 = vpack.c.bf16 %v292, %v291
      %v316 = vpack.c.bf16 %v294, %v293
      %v317 = vpack.c.bf16 %v296, %v295
      %v318 = vpack.c.bf16 %v298, %v297
      %v319 = vpack.c.bf16 %v300, %v299
      %v320 = vpack.c.bf16 %v302, %v301
      %v321 = vpack.c.bf16 %v304, %v303
      %v322 = vpack.c.bf16 %v306, %v305
      %v323 = vunpack.c.l.bf16 %v307
      %v324 = vunpack.c.h.bf16 %v307
      %v325 = vunpack.c.l.bf16 %v308
      %v326 = vunpack.c.h.bf16 %v308
      %v327 = vunpack.c.l.bf16 %v309
      %v328 = vunpack.c.h.bf16 %v309
      %v329 = vunpack.c.l.bf16 %v310
      %v330 = vunpack.c.h.bf16 %v310
      %v331 = vunpack.c.l.bf16 %v311
      %v332 = vunpack.c.h.bf16 %v311
      %v333 = vunpack.c.l.bf16 %v312
      %v334 = vunpack.c.h.bf16 %v312
      %v335 = vunpack.c.l.bf16 %v313
      %v336 = vunpack.c.h.bf16 %v313
      %v337 = vunpack.c.l.bf16 %v314
      %v338 = vunpack.c.h.bf16 %v314
      %v339 = vunpack.c.l.bf16 %v315
      %v340 = vunpack.c.h.bf16 %v315
      %v341 = vunpack.c.l.bf16 %v316
      %v342 = vunpack.c.h.bf16 %v316
      %v343 = vunpack.c.l.bf16 %v317
      %v344 = vunpack.c.h.bf16 %v317
      %v345 = vunpack.c.l.bf16 %v318
      %v346 = vunpack.c.h.bf16 %v318
      %v347 = vunpack.c.l.bf16 %v319
      %v348 = vunpack.c.h.bf16 %v319
      %v349 = vunpack.c.l.bf16 %v320
      %v350 = vunpack.c.h.bf16 %v320
      %v351 = vunpack.c.l.bf16 %v321
      %v352 = vunpack.c.h.bf16 %v321
      %v353 = vunpack.c.l.bf16 %v322
      %v354 = vunpack.c.h.bf16 %v322
      %v355 = vsub.f32 %v275, %v323
      %v356 = vsub.f32 %v276, %v324
      %v357 = vsub.f32 %v277, %v325
      %v358 = vsub.f32 %v278, %v326
      %v359 = vsub.f32 %v279, %v327
      %v360 = vsub.f32 %v280, %v328
      %v361 = vsub.f32 %v281, %v329
      %v362 = vsub.f32 %v282, %v330
      %v363 = vsub.f32 %v283, %v331
      %v364 = vsub.f32 %v284, %v332
      %v365 = vsub.f32 %v285, %v333
      %v366 = vsub.f32 %v286, %v334
      %v367 = vsub.f32 %v287, %v335
      %v368 = vsub.f32 %v288, %v336
      %v369 = vsub.f32 %v289, %v337
      %v370 = vsub.f32 %v290, %v338
      %v371 = vsub.f32 %v291, %v339
      %v372 = vsub.f32 %v292, %v340
      %v373 = vsub.f32 %v293, %v341
      %v374 = vsub.f32 %v294, %v342
      %v375 = vsub.f32 %v295, %v343
      %v376 = vsub.f32 %v296, %v344
      %v377 = vsub.f32 %v297, %v345
      %v378 = vsub.f32 %v298, %v346
      %v379 = vsub.f32 %v299, %v347
      %v380 = vsub.f32 %v300, %v348
      %v381 = vsub.f32 %v301, %v349
      %v382 = vsub.f32 %v302, %v350
      %v383 = vsub.f32 %v303, %v351
      %v384 = vsub.f32 %v304, %v352
      %v385 = vsub.f32 %v305, %v353
      %v386 = vsub.f32 %v306, %v354
      %v387 = vpack.c.bf16 %v356, %v355
      %v388 = vpack.c.bf16 %v358, %v357
      %v389 = vpack.c.bf16 %v360, %v359
      %v390 = vpack.c.bf16 %v362, %v361
      %v391 = vpack.c.bf16 %v364, %v363
      %v392 = vpack.c.bf16 %v366, %v365
      %v393 = vpack.c.bf16 %v368, %v367
      %v394 = vpack.c.bf16 %v370, %v369
      %v395 = vpack.c.bf16 %v372, %v371
      %v396 = vpack.c.bf16 %v374, %v373
      %v397 = vpack.c.bf16 %v376, %v375
      %v398 = vpack.c.bf16 %v378, %v377
      %v399 = vpack.c.bf16 %v380, %v379
      %v400 = vpack.c.bf16 %v382, %v381
      %v401 = vpack.c.bf16 %v384, %v383
      %v402 = vpack.c.bf16 %v386, %v385
      %v403 = vld [vmem:[%s0] sm:$0xff]
      %v404 = vld [vmem:[%s0 + $0x8] sm:$0xff]
      %v405 = vld [vmem:[%s0 + $0x10] sm:$0xff]
      %v406 = vld [vmem:[%s0 + $0x18] sm:$0xff]
      %v407 = vld [vmem:[%s0 + $0x20] sm:$0xff]
      %v408 = vld [vmem:[%s0 + $0x28] sm:$0xff]
      %v409 = vld [vmem:[%s0 + $0x30] sm:$0xff]
      %v410 = vld [vmem:[%s0 + $0x38] sm:$0xff]
      %v411 = vld [vmem:[%s0 + $0x40] sm:$0xff]
      %v412 = vld [vmem:[%s0 + $0x48] sm:$0xff]
      %v413 = vld [vmem:[%s0 + $0x50] sm:$0xff]
      %v414 = vld [vmem:[%s0 + $0x58] sm:$0xff]
      %v415 = vld [vmem:[%s0 + $0x60] sm:$0xff]
      %v416 = vld [vmem:[%s0 + $0x68] sm:$0xff]
      %v417 = vld [vmem:[%s0 + $0x70] sm:$0xff]
      %v418 = vld [vmem:[%s0 + $0x78] sm:$0xff]
      %v419 = vld [vmem:[%s0 + $0x80] sm:$0xff]
      %v420 = vld [vmem:[%s0 + $0x88] sm:$0xff]
      %v421 = vld [vmem:[%s0 + $0x90] sm:$0xff]
      %v422 = vld [vmem:[%s0 + $0x98] sm:$0xff]
      %v423 = vld [vmem:[%s0 + $0xa0] sm:$0xff]
      %v424 = vld [vmem:[%s0 + $0xa8] sm:$0xff]
      %v425 = vld [vmem:[%s0 + $0xb0] sm:$0xff]
      %v426 = vld [vmem:[%s0 + $0xb8] sm:$0xff]
      %v427 = vld [vmem:[%s0 + $0xc0] sm:$0xff]
      %v428 = vld [vmem:[%s0 + $0xc8] sm:$0xff]
      %v429 = vld [vmem:[%s0 + $0xd0] sm:$0xff]
      %v430 = vld [vmem:[%s0 + $0xd8] sm:$0xff]
      %v431 = vld [vmem:[%s0 + $0xe0] sm:$0xff]
      %v432 = vld [vmem:[%s0 + $0xe8] sm:$0xff]
      %v433 = vld [vmem:[%s0 + $0xf0] sm:$0xff]
      %v434 = vld [vmem:[%s0 + $0xf8] sm:$0xff]
      %s435 = scalar_lea.vmem %s0, 256
      %v436 = vld [vmem:[%s435] sm:$0xff]
      %v437 = vld [vmem:[%s435 + $0x8] sm:$0xff]
      %v438 = vld [vmem:[%s435 + $0x10] sm:$0xff]
      %v439 = vld [vmem:[%s435 + $0x18] sm:$0xff]
      %v440 = vld [vmem:[%s435 + $0x20] sm:$0xff]
      %v441 = vld [vmem:[%s435 + $0x28] sm:$0xff]
      %v442 = vld [vmem:[%s435 + $0x30] sm:$0xff]
      %v443 = vld [vmem:[%s435 + $0x38] sm:$0xff]
      %v444 = vld [vmem:[%s435 + $0x40] sm:$0xff]
      %v445 = vld [vmem:[%s435 + $0x48] sm:$0xff]
      %v446 = vld [vmem:[%s435 + $0x50] sm:$0xff]
      %v447 = vld [vmem:[%s435 + $0x58] sm:$0xff]
      %v448 = vld [vmem:[%s435 + $0x60] sm:$0xff]
      %v449 = vld [vmem:[%s435 + $0x68] sm:$0xff]
      %v450 = vld [vmem:[%s435 + $0x70] sm:$0xff]
      %v451 = vld [vmem:[%s435 + $0x78] sm:$0xff]
      %v452 = vld [vmem:[%s435 + $0x80] sm:$0xff]
      %v453 = vld [vmem:[%s435 + $0x88] sm:$0xff]
      %v454 = vld [vmem:[%s435 + $0x90] sm:$0xff]
      %v455 = vld [vmem:[%s435 + $0x98] sm:$0xff]
      %v456 = vld [vmem:[%s435 + $0xa0] sm:$0xff]
      %v457 = vld [vmem:[%s435 + $0xa8] sm:$0xff]
      %v458 = vld [vmem:[%s435 + $0xb0] sm:$0xff]
      %v459 = vld [vmem:[%s435 + $0xb8] sm:$0xff]
      %v460 = vld [vmem:[%s435 + $0xc0] sm:$0xff]
      %v461 = vld [vmem:[%s435 + $0xc8] sm:$0xff]
      %v462 = vld [vmem:[%s435 + $0xd0] sm:$0xff]
      %v463 = vld [vmem:[%s435 + $0xd8] sm:$0xff]
      %v464 = vld [vmem:[%s435 + $0xe0] sm:$0xff]
      %v465 = vld [vmem:[%s435 + $0xe8] sm:$0xff]
      %v466 = vld [vmem:[%s435 + $0xf0] sm:$0xff]
      %v467 = vld [vmem:[%s435 + $0xf8] sm:$0xff]
      %v500 = vunpack.c.l.b16 %v403
      %v501 = vunpack.c.h.b16 %v403
      %v502 = vunpack.c.l.b16 %v404
      %v503 = vunpack.c.h.b16 %v404
      %v504 = vunpack.c.l.b16 %v405
      %v505 = vunpack.c.h.b16 %v405
      %v506 = vunpack.c.l.b16 %v406
      %v507 = vunpack.c.h.b16 %v406
      %v508 = vunpack.c.l.b16 %v407
      %v509 = vunpack.c.h.b16 %v407
      %v510 = vunpack.c.l.b16 %v408
      %v511 = vunpack.c.h.b16 %v408
      %v512 = vunpack.c.l.b16 %v409
      %v513 = vunpack.c.h.b16 %v409
      %v514 = vunpack.c.l.b16 %v410
      %v515 = vunpack.c.h.b16 %v410
      %v516 = vunpack.c.l.b16 %v411
      %v517 = vunpack.c.h.b16 %v411
      %v518 = vunpack.c.l.b16 %v412
      %v519 = vunpack.c.h.b16 %v412
      %v520 = vunpack.c.l.b16 %v413
      %v521 = vunpack.c.h.b16 %v413
      %v522 = vunpack.c.l.b16 %v414
      %v523 = vunpack.c.h.b16 %v414
      %v524 = vunpack.c.l.b16 %v415
      %v525 = vunpack.c.h.b16 %v415
      %v526 = vunpack.c.l.b16 %v416
      %v527 = vunpack.c.h.b16 %v416
      %v528 = vunpack.c.l.b16 %v417
      %v529 = vunpack.c.h.b16 %v417
      %v530 = vunpack.c.l.b16 %v418
      %v531 = vunpack.c.h.b16 %v418
      %v532 = vunpack.c.l.b16 %v419
      %v533 = vunpack.c.h.b16 %v419
      %v534 = vunpack.c.l.b16 %v420
      %v535 = vunpack.c.h.b16 %v420
      %v536 = vunpack.c.l.b16 %v421
      %v537 = vunpack.c.h.b16 %v421
      %v538 = vunpack.c.l.b16 %v422
      %v539 = vunpack.c.h.b16 %v422
      %v540 = vunpack.c.l.b16 %v423
      %v541 = vunpack.c.h.b16 %v423
      %v542 = vunpack.c.l.b16 %v424
      %v543 = vunpack.c.h.b16 %v424
      %v544 = vunpack.c.l.b16 %v425
      %v545 = vunpack.c.h.b16 %v425
      %v546 = vunpack.c.l.b16 %v426
      %v547 = vunpack.c.h.b16 %v426
      %v548 = vunpack.c.l.b16 %v427
      %v549 = vunpack.c.h.b16 %v427
      %v550 = vunpack.c.l.b16 %v428
      %v551 = vunpack.c.h.b16 %v428
      %v552 = vunpack.c.l.b16 %v429
      %v553 = vunpack.c.h.b16 %v429
      %v554 = vunpack.c.l.b16 %v430
      %v555 = vunpack.c.h.b16 %v430
      %v556 = vunpack.c.l.b16 %v431
      %v557 = vunpack.c.h.b16 %v431
      %v558 = vunpack.c.l.b16 %v432
      %v559 = vunpack.c.h.b16 %v432
      %v560 = vunpack.c.l.b16 %v433
      %v561 = vunpack.c.h.b16 %v433
      %v562 = vunpack.c.l.b16 %v434
      %v563 = vunpack.c.h.b16 %v434
      %v564 = vpack.c.b16 %v502, %v500
      %v565 = vpack.c.b16 %v503, %v501
      %v566 = vpack.c.b16 %v506, %v504
      %v567 = vpack.c.b16 %v507, %v505
      %v568 = vpack.c.b16 %v510, %v508
      %v569 = vpack.c.b16 %v511, %v509
      %v570 = vpack.c.b16 %v514, %v512
      %v571 = vpack.c.b16 %v515, %v513
      %v572 = vpack.c.b16 %v518, %v516
      %v573 = vpack.c.b16 %v519, %v517
      %v574 = vpack.c.b16 %v522, %v520
      %v575 = vpack.c.b16 %v523, %v521
      %v576 = vpack.c.b16 %v526, %v524
      %v577 = vpack.c.b16 %v527, %v525
      %v578 = vpack.c.b16 %v530, %v528
      %v579 = vpack.c.b16 %v531, %v529
      %v580 = vpack.c.b16 %v534, %v532
      %v581 = vpack.c.b16 %v535, %v533
      %v582 = vpack.c.b16 %v538, %v536
      %v583 = vpack.c.b16 %v539, %v537
      %v584 = vpack.c.b16 %v542, %v540
      %v585 = vpack.c.b16 %v543, %v541
      %v586 = vpack.c.b16 %v546, %v544
      %v587 = vpack.c.b16 %v547, %v545
      %v588 = vpack.c.b16 %v550, %v548
      %v589 = vpack.c.b16 %v551, %v549
      %v590 = vpack.c.b16 %v554, %v552
      %v591 = vpack.c.b16 %v555, %v553
      %v592 = vpack.c.b16 %v558, %v556
      %v593 = vpack.c.b16 %v559, %v557
      %v594 = vpack.c.b16 %v562, %v560
      %v595 = vpack.c.b16 %v563, %v561
      %628 = vmatprep.subr.bf16.mxu0 0
      %629 = vmatpush1.bf16.msra.mxu0 %v394
      %630 = vmatprep.subr.bf16.mxu0 0
      %631 = vmatpush1.bf16.msra.mxu0 %v393
      %632 = vmatprep.subr.bf16.mxu0 0
      %633 = vmatpush1.bf16.msra.mxu0 %v392
      %634 = vmatprep.subr.bf16.mxu0 0
      %635 = vmatpush1.bf16.msra.mxu0 %v391
      %636 = vmatprep.subr.bf16.mxu0 0
      %637 = vmatpush1.bf16.msra.mxu0 %v390
      %638 = vmatprep.subr.bf16.mxu0 0
      %639 = vmatpush1.bf16.msra.mxu0 %v389
      %640 = vmatprep.subr.bf16.mxu0 0
      %641 = vmatpush1.bf16.msra.mxu0 %v388
      %642 = vmatprep.subr.bf16.mxu0 0
      %643 = vmatpush1.bf16.msra.mxu0 %v387
      %644 = vmatprep.subr.bf16.mxu0 0
      %645 = vmatpush2.bf16.msra.mxu0 %v402
      %646 = vmatprep.subr.bf16.mxu0 0
      %647 = vmatpush2.bf16.msra.mxu0 %v401
      %648 = vmatprep.subr.bf16.mxu0 0
      %649 = vmatpush2.bf16.msra.mxu0 %v400
      %650 = vmatprep.subr.bf16.mxu0 0
      %651 = vmatpush2.bf16.msra.mxu0 %v399
      %652 = vmatprep.subr.bf16.mxu0 0
      %653 = vmatpush2.bf16.msra.mxu0 %v398
      %654 = vmatprep.subr.bf16.mxu0 0
      %655 = vmatpush2.bf16.msra.mxu0 %v397
      %656 = vmatprep.subr.bf16.mxu0 0
      %657 = vmatpush2.bf16.msra.mxu0 %v396
      %658 = vmatprep.subr.bf16.mxu0 0
      %659 = vmatpush2.bf16.msra.mxu0 %v395
      %660 = vmatprep.mubr.bf16.mxu0 %v565
      %661 = vmatmul.mubr.bf16.gmra.mxu0 %v564
      %v662 = vpop.f32.mrf.mxu0
      %v663 = vadd.f32 0.0, %v662
      %v664 = vpop.f32.mrf.mxu0
      %v665 = vpop.f32.mrf.mxu0
      %v666 = vadd.f32 0.0, %v665
      %v667 = vpop.f32.mrf.mxu0
      %668 = vmatprep.mubr.bf16.mxu0 %v567
      %669 = vmatmul.mubr.bf16.gmra.mxu0 %v566
      %v670 = vpop.f32.mrf.mxu0
      %v671 = vadd.f32 0.0, %v670
      %v672 = vpop.f32.mrf.mxu0
      %v673 = vpop.f32.mrf.mxu0
      %v674 = vadd.f32 0.0, %v673
      %v675 = vpop.f32.mrf.mxu0
      %676 = vmatprep.mubr.bf16.mxu0 %v569
      %677 = vmatmul.mubr.bf16.gmra.mxu0 %v568
      %v678 = vpop.f32.mrf.mxu0
      %v679 = vadd.f32 0.0, %v678
      %v680 = vpop.f32.mrf.mxu0
      %v681 = vpop.f32.mrf.mxu0
      %v682 = vadd.f32 0.0, %v681
      %v683 = vpop.f32.mrf.mxu0
      %684 = vmatprep.mubr.bf16.mxu0 %v571
      %685 = vmatmul.mubr.bf16.gmra.mxu0 %v570
      %v686 = vpop.f32.mrf.mxu0
      %v687 = vadd.f32 0.0, %v686
      %v688 = vpop.f32.mrf.mxu0
      %v689 = vpop.f32.mrf.mxu0
      %v690 = vadd.f32 0.0, %v689
      %v691 = vpop.f32.mrf.mxu0
      %692 = vmatprep.mubr.bf16.mxu0 %v573
      %693 = vmatmul.mubr.bf16.gmra.mxu0 %v572
      %v694 = vpop.f32.mrf.mxu0
      %v695 = vadd.f32 0.0, %v694
      %v696 = vpop.f32.mrf.mxu0
      %v697 = vpop.f32.mrf.mxu0
      %v698 = vadd.f32 0.0, %v697
      %v699 = vpop.f32.mrf.mxu0
      %700 = vmatprep.mubr.bf16.mxu0 %v575
      %701 = vmatmul.mubr.bf16.gmra.mxu0 %v574
      %v702 = vpop.f32.mrf.mxu0
      %v703 = vadd.f32 0.0, %v702
      %v704 = vpop.f32.mrf.mxu0
      %v705 = vpop.f32.mrf.mxu0
      %v706 = vadd.f32 0.0, %v705
      %v707 = vpop.f32.mrf.mxu0
      %708 = vmatprep.mubr.bf16.mxu0 %v577
      %709 = vmatmul.mubr.bf16.gmra.mxu0 %v576
      %v710 = vpop.f32.mrf.mxu0
      %v711 = vadd.f32 0.0, %v710
      %v712 = vpop.f32.mrf.mxu0
      %v713 = vpop.f32.mrf.mxu0
      %v714 = vadd.f32 0.0, %v713
      %v715 = vpop.f32.mrf.mxu0
      %716 = vmatprep.mubr.bf16.mxu0 %v579
      %717 = vmatmul.mubr.bf16.gmra.mxu0 %v578
      %v718 = vpop.f32.mrf.mxu0
      %v719 = vadd.f32 0.0, %v718
      %v720 = vpop.f32.mrf.mxu0
      %v721 = vpop.f32.mrf.mxu0
      %v722 = vadd.f32 0.0, %v721
      %v723 = vpop.f32.mrf.mxu0
      %724 = vmatprep.mubr.bf16.mxu0 %v581
      %725 = vmatmul.mubr.bf16.gmra.mxu0 %v580
      %v726 = vpop.f32.mrf.mxu0
      %v727 = vadd.f32 0.0, %v726
      %v728 = vpop.f32.mrf.mxu0
      %v729 = vpop.f32.mrf.mxu0
      %v730 = vadd.f32 0.0, %v729
      %v731 = vpop.f32.mrf.mxu0
      %732 = vmatprep.mubr.bf16.mxu0 %v583
      %733 = vmatmul.mubr.bf16.gmra.mxu0 %v582
      %v734 = vpop.f32.mrf.mxu0
      %v735 = vadd.f32 0.0, %v734
      %v736 = vpop.f32.mrf.mxu0
      %v737 = vpop.f32.mrf.mxu0
      %v738 = vadd.f32 0.0, %v737
      %v739 = vpop.f32.mrf.mxu0
      %740 = vmatprep.mubr.bf16.mxu0 %v585
      %741 = vmatmul.mubr.bf16.gmra.mxu0 %v584
      %v742 = vpop.f32.mrf.mxu0
      %v743 = vadd.f32 0.0, %v742
      %v744 = vpop.f32.mrf.mxu0
      %v745 = vpop.f32.mrf.mxu0
      %v746 = vadd.f32 0.0, %v745
      %v747 = vpop.f32.mrf.mxu0
      %748 = vmatprep.mubr.bf16.mxu0 %v587
      %749 = vmatmul.mubr.bf16.gmra.mxu0 %v586
      %v750 = vpop.f32.mrf.mxu0
      %v751 = vadd.f32 0.0, %v750
      %v752 = vpop.f32.mrf.mxu0
      %v753 = vpop.f32.mrf.mxu0
      %v754 = vadd.f32 0.0, %v753
      %v755 = vpop.f32.mrf.mxu0
      %756 = vmatprep.mubr.bf16.mxu0 %v589
      %757 = vmatmul.mubr.bf16.gmra.mxu0 %v588
      %v758 = vpop.f32.mrf.mxu0
      %v759 = vadd.f32 0.0, %v758
      %v760 = vpop.f32.mrf.mxu0
      %v761 = vpop.f32.mrf.mxu0
      %v762 = vadd.f32 0.0, %v761
      %v763 = vpop.f32.mrf.mxu0
      %764 = vmatprep.mubr.bf16.mxu0 %v591
      %765 = vmatmul.mubr.bf16.gmra.mxu0 %v590
      %v766 = vpop.f32.mrf.mxu0
      %v767 = vadd.f32 0.0, %v766
      %v768 = vpop.f32.mrf.mxu0
      %v769 = vpop.f32.mrf.mxu0
      %v770 = vadd.f32 0.0, %v769
      %v771 = vpop.f32.mrf.mxu0
      %772 = vmatprep.mubr.bf16.mxu0 %v593
      %773 = vmatmul.mubr.bf16.gmra.mxu0 %v592
      %v774 = vpop.f32.mrf.mxu0
      %v775 = vadd.f32 0.0, %v774
      %v776 = vpop.f32.mrf.mxu0
      %v777 = vpop.f32.mrf.mxu0
      %v778 = vadd.f32 0.0, %v777
      %v779 = vpop.f32.mrf.mxu0
      %780 = vmatprep.mubr.bf16.mxu0 %v595
      %781 = vmatmul.mubr.bf16.gmra.mxu0 %v594
      %v782 = vpop.f32.mrf.mxu0
      %v783 = vadd.f32 0.0, %v782
      %v784 = vpop.f32.mrf.mxu0
      %v785 = vpop.f32.mrf.mxu0
      %v786 = vadd.f32 0.0, %v785
      %v787 = vpop.f32.mrf.mxu0
      %788 = vdwg.mxu0
      %789 = vmatprep.subr.bf16.mxu0 0
      %790 = vmatpush1.bf16.msra.mxu0 %v314
      %791 = vmatprep.subr.bf16.mxu0 0
      %792 = vmatpush1.bf16.msra.mxu0 %v313
      %793 = vmatprep.subr.bf16.mxu0 0
      %794 = vmatpush1.bf16.msra.mxu0 %v312
      %795 = vmatprep.subr.bf16.mxu0 0
      %796 = vmatpush1.bf16.msra.mxu0 %v311
      %797 = vmatprep.subr.bf16.mxu0 0
      %798 = vmatpush1.bf16.msra.mxu0 %v310
      %799 = vmatprep.subr.bf16.mxu0 0
      %800 = vmatpush1.bf16.msra.mxu0 %v309
      %801 = vmatprep.subr.bf16.mxu0 0
      %802 = vmatpush1.bf16.msra.mxu0 %v308
      %803 = vmatprep.subr.bf16.mxu0 0
      %804 = vmatpush1.bf16.msra.mxu0 %v307
      %805 = vmatprep.subr.bf16.mxu0 0
      %806 = vmatpush2.bf16.msra.mxu0 %v322
      %807 = vmatprep.subr.bf16.mxu0 0
      %808 = vmatpush2.bf16.msra.mxu0 %v321
      %809 = vmatprep.subr.bf16.mxu0 0
      %810 = vmatpush2.bf16.msra.mxu0 %v320
      %811 = vmatprep.subr.bf16.mxu0 0
      %812 = vmatpush2.bf16.msra.mxu0 %v319
      %813 = vmatprep.subr.bf16.mxu0 0
      %814 = vmatpush2.bf16.msra.mxu0 %v318
      %815 = vmatprep.subr.bf16.mxu0 0
      %816 = vmatpush2.bf16.msra.mxu0 %v317
      %817 = vmatprep.subr.bf16.mxu0 0
      %818 = vmatpush2.bf16.msra.mxu0 %v316
      %819 = vmatprep.subr.bf16.mxu0 0
      %820 = vmatpush2.bf16.msra.mxu0 %v315
      %821 = vmatprep.mubr.bf16.mxu0 %v565
      %822 = vmatmul.mubr.bf16.gmra.mxu0 %v564
      %v823 = vpop.f32.mrf.mxu0
      %v824 = vadd.f32 %v663, %v823
      %v825 = vpop.f32.mrf.mxu0
      %v826 = vpop.f32.mrf.mxu0
      %v827 = vadd.f32 %v666, %v826
      %v828 = vpop.f32.mrf.mxu0
      %829 = vmatprep.mubr.bf16.mxu0 %v567
      %830 = vmatmul.mubr.bf16.gmra.mxu0 %v566
      %v831 = vpop.f32.mrf.mxu0
      %v832 = vadd.f32 %v671, %v831
      %v833 = vpop.f32.mrf.mxu0
      %v834 = vpop.f32.mrf.mxu0
      %v835 = vadd.f32 %v674, %v834
      %v836 = vpop.f32.mrf.mxu0
      %837 = vmatprep.mubr.bf16.mxu0 %v569
      %838 = vmatmul.mubr.bf16.gmra.mxu0 %v568
      %v839 = vpop.f32.mrf.mxu0
      %v840 = vadd.f32 %v679, %v839
      %v841 = vpop.f32.mrf.mxu0
      %v842 = vpop.f32.mrf.mxu0
      %v843 = vadd.f32 %v682, %v842
      %v844 = vpop.f32.mrf.mxu0
      %845 = vmatprep.mubr.bf16.mxu0 %v571
      %846 = vmatmul.mubr.bf16.gmra.mxu0 %v570
      %v847 = vpop.f32.mrf.mxu0
      %v848 = vadd.f32 %v687, %v847
      %v849 = vpop.f32.mrf.mxu0
      %v850 = vpop.f32.mrf.mxu0
      %v851 = vadd.f32 %v690, %v850
      %v852 = vpop.f32.mrf.mxu0
      %853 = vmatprep.mubr.bf16.mxu0 %v573
      %854 = vmatmul.mubr.bf16.gmra.mxu0 %v572
      %v855 = vpop.f32.mrf.mxu0
      %v856 = vadd.f32 %v695, %v855
      %v857 = vpop.f32.mrf.mxu0
      %v858 = vpop.f32.mrf.mxu0
      %v859 = vadd.f32 %v698, %v858
      %v860 = vpop.f32.mrf.mxu0
      %861 = vmatprep.mubr.bf16.mxu0 %v575
      %862 = vmatmul.mubr.bf16.gmra.mxu0 %v574
      %v863 = vpop.f32.mrf.mxu0
      %v864 = vadd.f32 %v703, %v863
      %v865 = vpop.f32.mrf.mxu0
      %v866 = vpop.f32.mrf.mxu0
      %v867 = vadd.f32 %v706, %v866
      %v868 = vpop.f32.mrf.mxu0
      %869 = vmatprep.mubr.bf16.mxu0 %v577
      %870 = vmatmul.mubr.bf16.gmra.mxu0 %v576
      %v871 = vpop.f32.mrf.mxu0
      %v872 = vadd.f32 %v711, %v871
      %v873 = vpop.f32.mrf.mxu0
      %v874 = vpop.f32.mrf.mxu0
      %v875 = vadd.f32 %v714, %v874
      %v876 = vpop.f32.mrf.mxu0
      %877 = vmatprep.mubr.bf16.mxu0 %v579
      %878 = vmatmul.mubr.bf16.gmra.mxu0 %v578
      %v879 = vpop.f32.mrf.mxu0
      %v880 = vadd.f32 %v719, %v879
      %v881 = vpop.f32.mrf.mxu0
      %v882 = vpop.f32.mrf.mxu0
      %v883 = vadd.f32 %v722, %v882
      %v884 = vpop.f32.mrf.mxu0
      %885 = vmatprep.mubr.bf16.mxu0 %v581
      %886 = vmatmul.mubr.bf16.gmra.mxu0 %v580
      %v887 = vpop.f32.mrf.mxu0
      %v888 = vadd.f32 %v727, %v887
      %v889 = vpop.f32.mrf.mxu0
      %v890 = vpop.f32.mrf.mxu0
      %v891 = vadd.f32 %v730, %v890
      %v892 = vpop.f32.mrf.mxu0
      %893 = vmatprep.mubr.bf16.mxu0 %v583
      %894 = vmatmul.mubr.bf16.gmra.mxu0 %v582
      %v895 = vpop.f32.mrf.mxu0
      %v896 = vadd.f32 %v735, %v895
      %v897 = vpop.f32.mrf.mxu0
      %v898 = vpop.f32.mrf.mxu0
      %v899 = vadd.f32 %v738, %v898
      %v900 = vpop.f32.mrf.mxu0
      %901 = vmatprep.mubr.bf16.mxu0 %v585
      %902 = vmatmul.mubr.bf16.gmra.mxu0 %v584
      %v903 = vpop.f32.mrf.mxu0
      %v904 = vadd.f32 %v743, %v903
      %v905 = vpop.f32.mrf.mxu0
      %v906 = vpop.f32.mrf.mxu0
      %v907 = vadd.f32 %v746, %v906
      %v908 = vpop.f32.mrf.mxu0
      %909 = vmatprep.mubr.bf16.mxu0 %v587
      %910 = vmatmul.mubr.bf16.gmra.mxu0 %v586
      %v911 = vpop.f32.mrf.mxu0
      %v912 = vadd.f32 %v751, %v911
      %v913 = vpop.f32.mrf.mxu0
      %v914 = vpop.f32.mrf.mxu0
      %v915 = vadd.f32 %v754, %v914
      %v916 = vpop.f32.mrf.mxu0
      %917 = vmatprep.mubr.bf16.mxu0 %v589
      %918 = vmatmul.mubr.bf16.gmra.mxu0 %v588
      %v919 = vpop.f32.mrf.mxu0
      %v920 = vadd.f32 %v759, %v919
      %v921 = vpop.f32.mrf.mxu0
      %v922 = vpop.f32.mrf.mxu0
      %v923 = vadd.f32 %v762, %v922
      %v924 = vpop.f32.mrf.mxu0
      %925 = vmatprep.mubr.bf16.mxu0 %v591
      %926 = vmatmul.mubr.bf16.gmra.mxu0 %v590
      %v927 = vpop.f32.mrf.mxu0
      %v928 = vadd.f32 %v767, %v927
      %v929 = vpop.f32.mrf.mxu0
      %v930 = vpop.f32.mrf.mxu0
      %v931 = vadd.f32 %v770, %v930
      %v932 = vpop.f32.mrf.mxu0
      %933 = vmatprep.mubr.bf16.mxu0 %v593
      %934 = vmatmul.mubr.bf16.gmra.mxu0 %v592
      %v935 = vpop.f32.mrf.mxu0
      %v936 = vadd.f32 %v775, %v935
      %v937 = vpop.f32.mrf.mxu0
      %v938 = vpop.f32.mrf.mxu0
      %v939 = vadd.f32 %v778, %v938
      %v940 = vpop.f32.mrf.mxu0
      %941 = vmatprep.mubr.bf16.mxu0 %v595
      %942 = vmatmul.mubr.bf16.gmra.mxu0 %v594
      %v943 = vpop.f32.mrf.mxu0
      %v944 = vadd.f32 %v783, %v943
      %v945 = vpop.f32.mrf.mxu0
      %v946 = vpop.f32.mrf.mxu0
      %v947 = vadd.f32 %v786, %v946
      %v948 = vpop.f32.mrf.mxu0
      %949 = vdwg.mxu0
      %v982 = vunpack.c.l.b16 %v436
      %v983 = vunpack.c.h.b16 %v436
      %v984 = vunpack.c.l.b16 %v437
      %v985 = vunpack.c.h.b16 %v437
      %v986 = vunpack.c.l.b16 %v438
      %v987 = vunpack.c.h.b16 %v438
      %v988 = vunpack.c.l.b16 %v439
      %v989 = vunpack.c.h.b16 %v439
      %v990 = vunpack.c.l.b16 %v440
      %v991 = vunpack.c.h.b16 %v440
      %v992 = vunpack.c.l.b16 %v441
      %v993 = vunpack.c.h.b16 %v441
      %v994 = vunpack.c.l.b16 %v442
      %v995 = vunpack.c.h.b16 %v442
      %v996 = vunpack.c.l.b16 %v443
      %v997 = vunpack.c.h.b16 %v443
      %v998 = vunpack.c.l.b16 %v444
      %v999 = vunpack.c.h.b16 %v444
      %v1000 = vunpack.c.l.b16 %v445
      %v1001 = vunpack.c.h.b16 %v445
      %v1002 = vunpack.c.l.b16 %v446
      %v1003 = vunpack.c.h.b16 %v446
      %v1004 = vunpack.c.l.b16 %v447
      %v1005 = vunpack.c.h.b16 %v447
      %v1006 = vunpack.c.l.b16 %v448
      %v1007 = vunpack.c.h.b16 %v448
      %v1008 = vunpack.c.l.b16 %v449
      %v1009 = vunpack.c.h.b16 %v449
      %v1010 = vunpack.c.l.b16 %v450
      %v1011 = vunpack.c.h.b16 %v450
      %v1012 = vunpack.c.l.b16 %v451
      %v1013 = vunpack.c.h.b16 %v451
      %v1014 = vunpack.c.l.b16 %v452
      %v1015 = vunpack.c.h.b16 %v452
      %v1016 = vunpack.c.l.b16 %v453
      %v1017 = vunpack.c.h.b16 %v453
      %v1018 = vunpack.c.l.b16 %v454
      %v1019 = vunpack.c.h.b16 %v454
      %v1020 = vunpack.c.l.b16 %v455
      %v1021 = vunpack.c.h.b16 %v455
      %v1022 = vunpack.c.l.b16 %v456
      %v1023 = vunpack.c.h.b16 %v456
      %v1024 = vunpack.c.l.b16 %v457
      %v1025 = vunpack.c.h.b16 %v457
      %v1026 = vunpack.c.l.b16 %v458
      %v1027 = vunpack.c.h.b16 %v458
      %v1028 = vunpack.c.l.b16 %v459
      %v1029 = vunpack.c.h.b16 %v459
      %v1030 = vunpack.c.l.b16 %v460
      %v1031 = vunpack.c.h.b16 %v460
      %v1032 = vunpack.c.l.b16 %v461
      %v1033 = vunpack.c.h.b16 %v461
      %v1034 = vunpack.c.l.b16 %v462
      %v1035 = vunpack.c.h.b16 %v462
      %v1036 = vunpack.c.l.b16 %v463
      %v1037 = vunpack.c.h.b16 %v463
      %v1038 = vunpack.c.l.b16 %v464
      %v1039 = vunpack.c.h.b16 %v464
      %v1040 = vunpack.c.l.b16 %v465
      %v1041 = vunpack.c.h.b16 %v465
      %v1042 = vunpack.c.l.b16 %v466
      %v1043 = vunpack.c.h.b16 %v466
      %v1044 = vunpack.c.l.b16 %v467
      %v1045 = vunpack.c.h.b16 %v467
      %v1046 = vpack.c.b16 %v984, %v982
      %v1047 = vpack.c.b16 %v985, %v983
      %v1048 = vpack.c.b16 %v988, %v986
      %v1049 = vpack.c.b16 %v989, %v987
      %v1050 = vpack.c.b16 %v992, %v990
      %v1051 = vpack.c.b16 %v993, %v991
      %v1052 = vpack.c.b16 %v996, %v994
      %v1053 = vpack.c.b16 %v997, %v995
      %v1054 = vpack.c.b16 %v1000, %v998
      %v1055 = vpack.c.b16 %v1001, %v999
      %v1056 = vpack.c.b16 %v1004, %v1002
      %v1057 = vpack.c.b16 %v1005, %v1003
      %v1058 = vpack.c.b16 %v1008, %v1006
      %v1059 = vpack.c.b16 %v1009, %v1007
      %v1060 = vpack.c.b16 %v1012, %v1010
      %v1061 = vpack.c.b16 %v1013, %v1011
      %v1062 = vpack.c.b16 %v1016, %v1014
      %v1063 = vpack.c.b16 %v1017, %v1015
      %v1064 = vpack.c.b16 %v1020, %v1018
      %v1065 = vpack.c.b16 %v1021, %v1019
      %v1066 = vpack.c.b16 %v1024, %v1022
      %v1067 = vpack.c.b16 %v1025, %v1023
      %v1068 = vpack.c.b16 %v1028, %v1026
      %v1069 = vpack.c.b16 %v1029, %v1027
      %v1070 = vpack.c.b16 %v1032, %v1030
      %v1071 = vpack.c.b16 %v1033, %v1031
      %v1072 = vpack.c.b16 %v1036, %v1034
      %v1073 = vpack.c.b16 %v1037, %v1035
      %v1074 = vpack.c.b16 %v1040, %v1038
      %v1075 = vpack.c.b16 %v1041, %v1039
      %v1076 = vpack.c.b16 %v1044, %v1042
      %v1077 = vpack.c.b16 %v1045, %v1043
      %1110 = vmatprep.subr.bf16.mxu0 0
      %1111 = vmatpush1.bf16.msra.mxu0 %v314
      %1112 = vmatprep.subr.bf16.mxu0 0
      %1113 = vmatpush1.bf16.msra.mxu0 %v313
      %1114 = vmatprep.subr.bf16.mxu0 0
      %1115 = vmatpush1.bf16.msra.mxu0 %v312
      %1116 = vmatprep.subr.bf16.mxu0 0
      %1117 = vmatpush1.bf16.msra.mxu0 %v311
      %1118 = vmatprep.subr.bf16.mxu0 0
      %1119 = vmatpush1.bf16.msra.mxu0 %v310
      %1120 = vmatprep.subr.bf16.mxu0 0
      %1121 = vmatpush1.bf16.msra.mxu0 %v309
      %1122 = vmatprep.subr.bf16.mxu0 0
      %1123 = vmatpush1.bf16.msra.mxu0 %v308
      %1124 = vmatprep.subr.bf16.mxu0 0
      %1125 = vmatpush1.bf16.msra.mxu0 %v307
      %1126 = vmatprep.subr.bf16.mxu0 0
      %1127 = vmatpush2.bf16.msra.mxu0 %v322
      %1128 = vmatprep.subr.bf16.mxu0 0
      %1129 = vmatpush2.bf16.msra.mxu0 %v321
      %1130 = vmatprep.subr.bf16.mxu0 0
      %1131 = vmatpush2.bf16.msra.mxu0 %v320
      %1132 = vmatprep.subr.bf16.mxu0 0
      %1133 = vmatpush2.bf16.msra.mxu0 %v319
      %1134 = vmatprep.subr.bf16.mxu0 0
      %1135 = vmatpush2.bf16.msra.mxu0 %v318
      %1136 = vmatprep.subr.bf16.mxu0 0
      %1137 = vmatpush2.bf16.msra.mxu0 %v317
      %1138 = vmatprep.subr.bf16.mxu0 0
      %1139 = vmatpush2.bf16.msra.mxu0 %v316
      %1140 = vmatprep.subr.bf16.mxu0 0
      %1141 = vmatpush2.bf16.msra.mxu0 %v315
      %1142 = vmatprep.mubr.bf16.mxu0 %v1047
      %1143 = vmatmul.mubr.bf16.gmra.mxu0 %v1046
      %v1144 = vpop.f32.mrf.mxu0
      %v1145 = vadd.f32 0.0, %v1144
      %v1146 = vpop.f32.mrf.mxu0
      %v1147 = vpop.f32.mrf.mxu0
      %v1148 = vadd.f32 0.0, %v1147
      %v1149 = vpop.f32.mrf.mxu0
      %1150 = vmatprep.mubr.bf16.mxu0 %v1049
      %1151 = vmatmul.mubr.bf16.gmra.mxu0 %v1048
      %v1152 = vpop.f32.mrf.mxu0
      %v1153 = vadd.f32 0.0, %v1152
      %v1154 = vpop.f32.mrf.mxu0
      %v1155 = vpop.f32.mrf.mxu0
      %v1156 = vadd.f32 0.0, %v1155
      %v1157 = vpop.f32.mrf.mxu0
      %1158 = vmatprep.mubr.bf16.mxu0 %v1051
      %1159 = vmatmul.mubr.bf16.gmra.mxu0 %v1050
      %v1160 = vpop.f32.mrf.mxu0
      %v1161 = vadd.f32 0.0, %v1160
      %v1162 = vpop.f32.mrf.mxu0
      %v1163 = vpop.f32.mrf.mxu0
      %v1164 = vadd.f32 0.0, %v1163
      %v1165 = vpop.f32.mrf.mxu0
      %1166 = vmatprep.mubr.bf16.mxu0 %v1053
      %1167 = vmatmul.mubr.bf16.gmra.mxu0 %v1052
      %v1168 = vpop.f32.mrf.mxu0
      %v1169 = vadd.f32 0.0, %v1168
      %v1170 = vpop.f32.mrf.mxu0
      %v1171 = vpop.f32.mrf.mxu0
      %v1172 = vadd.f32 0.0, %v1171
      %v1173 = vpop.f32.mrf.mxu0
      %1174 = vmatprep.mubr.bf16.mxu0 %v1055
      %1175 = vmatmul.mubr.bf16.gmra.mxu0 %v1054
      %v1176 = vpop.f32.mrf.mxu0
      %v1177 = vadd.f32 0.0, %v1176
      %v1178 = vpop.f32.mrf.mxu0
      %v1179 = vpop.f32.mrf.mxu0
      %v1180 = vadd.f32 0.0, %v1179
      %v1181 = vpop.f32.mrf.mxu0
      %1182 = vmatprep.mubr.bf16.mxu0 %v1057
      %1183 = vmatmul.mubr.bf16.gmra.mxu0 %v1056
      %v1184 = vpop.f32.mrf.mxu0
      %v1185 = vadd.f32 0.0, %v1184
      %v1186 = vpop.f32.mrf.mxu0
      %v1187 = vpop.f32.mrf.mxu0
      %v1188 = vadd.f32 0.0, %v1187
      %v1189 = vpop.f32.mrf.mxu0
      %1190 = vmatprep.mubr.bf16.mxu0 %v1059
      %1191 = vmatmul.mubr.bf16.gmra.mxu0 %v1058
      %v1192 = vpop.f32.mrf.mxu0
      %v1193 = vadd.f32 0.0, %v1192
      %v1194 = vpop.f32.mrf.mxu0
      %v1195 = vpop.f32.mrf.mxu0
      %v1196 = vadd.f32 0.0, %v1195
      %v1197 = vpop.f32.mrf.mxu0
      %1198 = vmatprep.mubr.bf16.mxu0 %v1061
      %1199 = vmatmul.mubr.bf16.gmra.mxu0 %v1060
      %v1200 = vpop.f32.mrf.mxu0
      %v1201 = vadd.f32 0.0, %v1200
      %v1202 = vpop.f32.mrf.mxu0
      %v1203 = vpop.f32.mrf.mxu0
      %v1204 = vadd.f32 0.0, %v1203
      %v1205 = vpop.f32.mrf.mxu0
      %1206 = vmatprep.mubr.bf16.mxu0 %v1063
      %1207 = vmatmul.mubr.bf16.gmra.mxu0 %v1062
      %v1208 = vpop.f32.mrf.mxu0
      %v1209 = vadd.f32 0.0, %v1208
      %v1210 = vpop.f32.mrf.mxu0
      %v1211 = vpop.f32.mrf.mxu0
      %v1212 = vadd.f32 0.0, %v1211
      %v1213 = vpop.f32.mrf.mxu0
      %1214 = vmatprep.mubr.bf16.mxu0 %v1065
      %1215 = vmatmul.mubr.bf16.gmra.mxu0 %v1064
      %v1216 = vpop.f32.mrf.mxu0
      %v1217 = vadd.f32 0.0, %v1216
      %v1218 = vpop.f32.mrf.mxu0
      %v1219 = vpop.f32.mrf.mxu0
      %v1220 = vadd.f32 0.0, %v1219
      %v1221 = vpop.f32.mrf.mxu0
      %1222 = vmatprep.mubr.bf16.mxu0 %v1067
      %1223 = vmatmul.mubr.bf16.gmra.mxu0 %v1066
      %v1224 = vpop.f32.mrf.mxu0
      %v1225 = vadd.f32 0.0, %v1224
      %v1226 = vpop.f32.mrf.mxu0
      %v1227 = vpop.f32.mrf.mxu0
      %v1228 = vadd.f32 0.0, %v1227
      %v1229 = vpop.f32.mrf.mxu0
      %1230 = vmatprep.mubr.bf16.mxu0 %v1069
      %1231 = vmatmul.mubr.bf16.gmra.mxu0 %v1068
      %v1232 = vpop.f32.mrf.mxu0
      %v1233 = vadd.f32 0.0, %v1232
      %v1234 = vpop.f32.mrf.mxu0
      %v1235 = vpop.f32.mrf.mxu0
      %v1236 = vadd.f32 0.0, %v1235
      %v1237 = vpop.f32.mrf.mxu0
      %1238 = vmatprep.mubr.bf16.mxu0 %v1071
      %1239 = vmatmul.mubr.bf16.gmra.mxu0 %v1070
      %v1240 = vpop.f32.mrf.mxu0
      %v1241 = vadd.f32 0.0, %v1240
      %v1242 = vpop.f32.mrf.mxu0
      %v1243 = vpop.f32.mrf.mxu0
      %v1244 = vadd.f32 0.0, %v1243
      %v1245 = vpop.f32.mrf.mxu0
      %1246 = vmatprep.mubr.bf16.mxu0 %v1073
      %1247 = vmatmul.mubr.bf16.gmra.mxu0 %v1072
      %v1248 = vpop.f32.mrf.mxu0
      %v1249 = vadd.f32 0.0, %v1248
      %v1250 = vpop.f32.mrf.mxu0
      %v1251 = vpop.f32.mrf.mxu0
      %v1252 = vadd.f32 0.0, %v1251
      %v1253 = vpop.f32.mrf.mxu0
      %1254 = vmatprep.mubr.bf16.mxu0 %v1075
      %1255 = vmatmul.mubr.bf16.gmra.mxu0 %v1074
      %v1256 = vpop.f32.mrf.mxu0
      %v1257 = vadd.f32 0.0, %v1256
      %v1258 = vpop.f32.mrf.mxu0
      %v1259 = vpop.f32.mrf.mxu0
      %v1260 = vadd.f32 0.0, %v1259
      %v1261 = vpop.f32.mrf.mxu0
      %1262 = vmatprep.mubr.bf16.mxu0 %v1077
      %1263 = vmatmul.mubr.bf16.gmra.mxu0 %v1076
      %v1264 = vpop.f32.mrf.mxu0
      %v1265 = vadd.f32 0.0, %v1264
      %v1266 = vpop.f32.mrf.mxu0
      %v1267 = vpop.f32.mrf.mxu0
      %v1268 = vadd.f32 0.0, %v1267
      %v1269 = vpop.f32.mrf.mxu0
      %1270 = vdwg.mxu0
      %v1271 = vadd.f32 %v824, %v1145
      %v1272 = vadd.f32 %v827, %v1148
      %v1273 = vadd.f32 %v832, %v1153
      %v1274 = vadd.f32 %v835, %v1156
      %v1275 = vadd.f32 %v840, %v1161
      %v1276 = vadd.f32 %v843, %v1164
      %v1277 = vadd.f32 %v848, %v1169
      %v1278 = vadd.f32 %v851, %v1172
      %v1279 = vadd.f32 %v856, %v1177
      %v1280 = vadd.f32 %v859, %v1180
      %v1281 = vadd.f32 %v864, %v1185
      %v1282 = vadd.f32 %v867, %v1188
      %v1283 = vadd.f32 %v872, %v1193
      %v1284 = vadd.f32 %v875, %v1196
      %v1285 = vadd.f32 %v880, %v1201
      %v1286 = vadd.f32 %v883, %v1204
      %v1287 = vadd.f32 %v888, %v1209
      %v1288 = vadd.f32 %v891, %v1212
      %v1289 = vadd.f32 %v896, %v1217
      %v1290 = vadd.f32 %v899, %v1220
      %v1291 = vadd.f32 %v904, %v1225
      %v1292 = vadd.f32 %v907, %v1228
      %v1293 = vadd.f32 %v912, %v1233
      %v1294 = vadd.f32 %v915, %v1236
      %v1295 = vadd.f32 %v920, %v1241
      %v1296 = vadd.f32 %v923, %v1244
      %v1297 = vadd.f32 %v928, %v1249
      %v1298 = vadd.f32 %v931, %v1252
      %v1299 = vadd.f32 %v936, %v1257
      %v1300 = vadd.f32 %v939, %v1260
      %v1301 = vadd.f32 %v944, %v1265
      %v1302 = vadd.f32 %v947, %v1268
      %1303 = vst [vmem:[#allocation3] sm:$0xff] %v1271
      %1304 = vst [vmem:[#allocation3 + $0x10] sm:$0xff] %v1272
      %1305 = vst [vmem:[#allocation3 + $0x20] sm:$0xff] %v1273
      %1306 = vst [vmem:[#allocation3 + $0x30] sm:$0xff] %v1274
      %1307 = vst [vmem:[#allocation3 + $0x40] sm:$0xff] %v1275
      %1308 = vst [vmem:[#allocation3 + $0x50] sm:$0xff] %v1276
      %1309 = vst [vmem:[#allocation3 + $0x60] sm:$0xff] %v1277
      %1310 = vst [vmem:[#allocation3 + $0x70] sm:$0xff] %v1278
      %1311 = vst [vmem:[#allocation3 + $0x80] sm:$0xff] %v1279
      %1312 = vst [vmem:[#allocation3 + $0x90] sm:$0xff] %v1280
      %1313 = vst [vmem:[#allocation3 + $0xa0] sm:$0xff] %v1281
      %1314 = vst [vmem:[#allocation3 + $0xb0] sm:$0xff] %v1282
      %1315 = vst [vmem:[#allocation3 + $0xc0] sm:$0xff] %v1283
      %1316 = vst [vmem:[#allocation3 + $0xd0] sm:$0xff] %v1284
      %1317 = vst [vmem:[#allocation3 + $0xe0] sm:$0xff] %v1285
      %1318 = vst [vmem:[#allocation3 + $0xf0] sm:$0xff] %v1286
      %1319 = vst [vmem:[#allocation3 + $0x8] sm:$0xff] %v1287
      %1320 = vst [vmem:[#allocation3 + $0x18] sm:$0xff] %v1288
      %1321 = vst [vmem:[#allocation3 + $0x28] sm:$0xff] %v1289
      %1322 = vst [vmem:[#allocation3 + $0x38] sm:$0xff] %v1290
      %1323 = vst [vmem:[#allocation3 + $0x48] sm:$0xff] %v1291
      %1324 = vst [vmem:[#allocation3 + $0x58] sm:$0xff] %v1292
      %1325 = vst [vmem:[#allocation3 + $0x68] sm:$0xff] %v1293
      %1326 = vst [vmem:[#allocation3 + $0x78] sm:$0xff] %v1294
      %1327 = vst [vmem:[#allocation3 + $0x88] sm:$0xff] %v1295
      %1328 = vst [vmem:[#allocation3 + $0x98] sm:$0xff] %v1296
      %1329 = vst [vmem:[#allocation3 + $0xa8] sm:$0xff] %v1297
      %1330 = vst [vmem:[#allocation3 + $0xb8] sm:$0xff] %v1298
      %1331 = vst [vmem:[#allocation3 + $0xc8] sm:$0xff] %v1299
      %1332 = vst [vmem:[#allocation3 + $0xd8] sm:$0xff] %v1300
      %1333 = vst [vmem:[#allocation3 + $0xe8] sm:$0xff] %v1301
      %1334 = vst [vmem:[#allocation3 + $0xf8] sm:$0xff] %v1302
      %v1335 = vld [vmem:[#allocation3] sm:$0xff]
      %v1336 = vld [vmem:[#allocation3 + $0x8] sm:$0xff]
      %v1337 = vld [vmem:[#allocation3 + $0x10] sm:$0xff]
      %v1338 = vld [vmem:[#allocation3 + $0x18] sm:$0xff]
      %v1339 = vld [vmem:[#allocation3 + $0x20] sm:$0xff]
      %v1340 = vld [vmem:[#allocation3 + $0x28] sm:$0xff]
      %v1341 = vld [vmem:[#allocation3 + $0x30] sm:$0xff]
      %v1342 = vld [vmem:[#allocation3 + $0x38] sm:$0xff]
      %v1343 = vld [vmem:[#allocation3 + $0x40] sm:$0xff]
      %v1344 = vld [vmem:[#allocation3 + $0x48] sm:$0xff]
      %v1345 = vld [vmem:[#allocation3 + $0x50] sm:$0xff]
      %v1346 = vld [vmem:[#allocation3 + $0x58] sm:$0xff]
      %v1347 = vld [vmem:[#allocation3 + $0x60] sm:$0xff]
      %v1348 = vld [vmem:[#allocation3 + $0x68] sm:$0xff]
      %v1349 = vld [vmem:[#allocation3 + $0x70] sm:$0xff]
      %v1350 = vld [vmem:[#allocation3 + $0x78] sm:$0xff]
      %v1351 = vld [vmem:[#allocation3 + $0x80] sm:$0xff]
      %v1352 = vld [vmem:[#allocation3 + $0x88] sm:$0xff]
      %v1353 = vld [vmem:[#allocation3 + $0x90] sm:$0xff]
      %v1354 = vld [vmem:[#allocation3 + $0x98] sm:$0xff]
      %v1355 = vld [vmem:[#allocation3 + $0xa0] sm:$0xff]
      %v1356 = vld [vmem:[#allocation3 + $0xa8] sm:$0xff]
      %v1357 = vld [vmem:[#allocation3 + $0xb0] sm:$0xff]
      %v1358 = vld [vmem:[#allocation3 + $0xb8] sm:$0xff]
      %v1359 = vld [vmem:[#allocation3 + $0xc0] sm:$0xff]
      %v1360 = vld [vmem:[#allocation3 + $0xc8] sm:$0xff]
      %v1361 = vld [vmem:[#allocation3 + $0xd0] sm:$0xff]
      %v1362 = vld [vmem:[#allocation3 + $0xd8] sm:$0xff]
      %v1363 = vld [vmem:[#allocation3 + $0xe0] sm:$0xff]
      %v1364 = vld [vmem:[#allocation3 + $0xe8] sm:$0xff]
      %v1365 = vld [vmem:[#allocation3 + $0xf0] sm:$0xff]
      %v1366 = vld [vmem:[#allocation3 + $0xf8] sm:$0xff]
      %v1367 = vpack.c.bf16 %v1337, %v1335
      %v1368 = vpack.c.bf16 %v1338, %v1336
      %v1369 = vpack.c.bf16 %v1341, %v1339
      %v1370 = vpack.c.bf16 %v1342, %v1340
      %v1371 = vpack.c.bf16 %v1345, %v1343
      %v1372 = vpack.c.bf16 %v1346, %v1344
      %v1373 = vpack.c.bf16 %v1349, %v1347
      %v1374 = vpack.c.bf16 %v1350, %v1348
      %v1375 = vpack.c.bf16 %v1353, %v1351
      %v1376 = vpack.c.bf16 %v1354, %v1352
      %v1377 = vpack.c.bf16 %v1357, %v1355
      %v1378 = vpack.c.bf16 %v1358, %v1356
      %v1379 = vpack.c.bf16 %v1361, %v1359
      %v1380 = vpack.c.bf16 %v1362, %v1360
      %v1381 = vpack.c.bf16 %v1365, %v1363
      %v1382 = vpack.c.bf16 %v1366, %v1364
      %v1383 = vunpack.c.l.bf16 %v1367
      %v1384 = vunpack.c.l.bf16 %v1368
      %v1385 = vunpack.c.h.bf16 %v1367
      %v1386 = vunpack.c.h.bf16 %v1368
      %v1387 = vunpack.c.l.bf16 %v1369
      %v1388 = vunpack.c.l.bf16 %v1370
      %v1389 = vunpack.c.h.bf16 %v1369
      %v1390 = vunpack.c.h.bf16 %v1370
      %v1391 = vunpack.c.l.bf16 %v1371
      %v1392 = vunpack.c.l.bf16 %v1372
      %v1393 = vunpack.c.h.bf16 %v1371
      %v1394 = vunpack.c.h.bf16 %v1372
      %v1395 = vunpack.c.l.bf16 %v1373
      %v1396 = vunpack.c.l.bf16 %v1374
      %v1397 = vunpack.c.h.bf16 %v1373
      %v1398 = vunpack.c.h.bf16 %v1374
      %v1399 = vunpack.c.l.bf16 %v1375
      %v1400 = vunpack.c.l.bf16 %v1376
      %v1401 = vunpack.c.h.bf16 %v1375
      %v1402 = vunpack.c.h.bf16 %v1376
      %v1403 = vunpack.c.l.bf16 %v1377
      %v1404 = vunpack.c.l.bf16 %v1378
      %v1405 = vunpack.c.h.bf16 %v1377
      %v1406 = vunpack.c.h.bf16 %v1378
      %v1407 = vunpack.c.l.bf16 %v1379
      %v1408 = vunpack.c.l.bf16 %v1380
      %v1409 = vunpack.c.h.bf16 %v1379
      %v1410 = vunpack.c.h.bf16 %v1380
      %v1411 = vunpack.c.l.bf16 %v1381
      %v1412 = vunpack.c.l.bf16 %v1382
      %v1413 = vunpack.c.h.bf16 %v1381
      %v1414 = vunpack.c.h.bf16 %v1382
      %v1415 = vsub.f32 %v1335, %v1383
      %v1416 = vsub.f32 %v1336, %v1384
      %v1417 = vsub.f32 %v1337, %v1385
      %v1418 = vsub.f32 %v1338, %v1386
      %v1419 = vsub.f32 %v1339, %v1387
      %v1420 = vsub.f32 %v1340, %v1388
      %v1421 = vsub.f32 %v1341, %v1389
      %v1422 = vsub.f32 %v1342, %v1390
      %v1423 = vsub.f32 %v1343, %v1391
      %v1424 = vsub.f32 %v1344, %v1392
      %v1425 = vsub.f32 %v1345, %v1393
      %v1426 = vsub.f32 %v1346, %v1394
      %v1427 = vsub.f32 %v1347, %v1395
      %v1428 = vsub.f32 %v1348, %v1396
      %v1429 = vsub.f32 %v1349, %v1397
      %v1430 = vsub.f32 %v1350, %v1398
      %v1431 = vsub.f32 %v1351, %v1399
      %v1432 = vsub.f32 %v1352, %v1400
      %v1433 = vsub.f32 %v1353, %v1401
      %v1434 = vsub.f32 %v1354, %v1402
      %v1435 = vsub.f32 %v1355, %v1403
      %v1436 = vsub.f32 %v1356, %v1404
      %v1437 = vsub.f32 %v1357, %v1405
      %v1438 = vsub.f32 %v1358, %v1406
      %v1439 = vsub.f32 %v1359, %v1407
      %v1440 = vsub.f32 %v1360, %v1408
      %v1441 = vsub.f32 %v1361, %v1409
      %v1442 = vsub.f32 %v1362, %v1410
      %v1443 = vsub.f32 %v1363, %v1411
      %v1444 = vsub.f32 %v1364, %v1412
      %v1445 = vsub.f32 %v1365, %v1413
      %v1446 = vsub.f32 %v1366, %v1414
      %v1447 = vpack.c.bf16 %v1417, %v1415
      %v1448 = vpack.c.bf16 %v1418, %v1416
      %v1449 = vpack.c.bf16 %v1421, %v1419
      %v1450 = vpack.c.bf16 %v1422, %v1420
      %v1451 = vpack.c.bf16 %v1425, %v1423
      %v1452 = vpack.c.bf16 %v1426, %v1424
      %v1453 = vpack.c.bf16 %v1429, %v1427
      %v1454 = vpack.c.bf16 %v1430, %v1428
      %v1455 = vpack.c.bf16 %v1433, %v1431
      %v1456 = vpack.c.bf16 %v1434, %v1432
      %v1457 = vpack.c.bf16 %v1437, %v1435
      %v1458 = vpack.c.bf16 %v1438, %v1436
      %v1459 = vpack.c.bf16 %v1441, %v1439
      %v1460 = vpack.c.bf16 %v1442, %v1440
      %v1461 = vpack.c.bf16 %v1445, %v1443
      %v1462 = vpack.c.bf16 %v1446, %v1444
      %s1463 = scalar_lea.vmem %s0, 512
      %v1464 = vld [vmem:[%s1463] sm:$0xff]
      %v1465 = vld [vmem:[%s1463 + $0x8] sm:$0xff]
      %v1466 = vld [vmem:[%s1463 + $0x10] sm:$0xff]
      %v1467 = vld [vmem:[%s1463 + $0x18] sm:$0xff]
      %v1468 = vld [vmem:[%s1463 + $0x20] sm:$0xff]
      %v1469 = vld [vmem:[%s1463 + $0x28] sm:$0xff]
      %v1470 = vld [vmem:[%s1463 + $0x30] sm:$0xff]
      %v1471 = vld [vmem:[%s1463 + $0x38] sm:$0xff]
      %v1472 = vld [vmem:[%s1463 + $0x40] sm:$0xff]
      %v1473 = vld [vmem:[%s1463 + $0x48] sm:$0xff]
      %v1474 = vld [vmem:[%s1463 + $0x50] sm:$0xff]
      %v1475 = vld [vmem:[%s1463 + $0x58] sm:$0xff]
      %v1476 = vld [vmem:[%s1463 + $0x60] sm:$0xff]
      %v1477 = vld [vmem:[%s1463 + $0x68] sm:$0xff]
      %v1478 = vld [vmem:[%s1463 + $0x70] sm:$0xff]
      %v1479 = vld [vmem:[%s1463 + $0x78] sm:$0xff]
      %v1480 = vld [vmem:[%s1463 + $0x80] sm:$0xff]
      %v1481 = vld [vmem:[%s1463 + $0x88] sm:$0xff]
      %v1482 = vld [vmem:[%s1463 + $0x90] sm:$0xff]
      %v1483 = vld [vmem:[%s1463 + $0x98] sm:$0xff]
      %v1484 = vld [vmem:[%s1463 + $0xa0] sm:$0xff]
      %v1485 = vld [vmem:[%s1463 + $0xa8] sm:$0xff]
      %v1486 = vld [vmem:[%s1463 + $0xb0] sm:$0xff]
      %v1487 = vld [vmem:[%s1463 + $0xb8] sm:$0xff]
      %v1488 = vld [vmem:[%s1463 + $0xc0] sm:$0xff]
      %v1489 = vld [vmem:[%s1463 + $0xc8] sm:$0xff]
      %v1490 = vld [vmem:[%s1463 + $0xd0] sm:$0xff]
      %v1491 = vld [vmem:[%s1463 + $0xd8] sm:$0xff]
      %v1492 = vld [vmem:[%s1463 + $0xe0] sm:$0xff]
      %v1493 = vld [vmem:[%s1463 + $0xe8] sm:$0xff]
      %v1494 = vld [vmem:[%s1463 + $0xf0] sm:$0xff]
      %v1495 = vld [vmem:[%s1463 + $0xf8] sm:$0xff]
      %s1496 = scalar_lea.vmem %s0, 768
      %v1497 = vld [vmem:[%s1496] sm:$0xff]
      %v1498 = vld [vmem:[%s1496 + $0x8] sm:$0xff]
      %v1499 = vld [vmem:[%s1496 + $0x10] sm:$0xff]
      %v1500 = vld [vmem:[%s1496 + $0x18] sm:$0xff]
      %v1501 = vld [vmem:[%s1496 + $0x20] sm:$0xff]
      %v1502 = vld [vmem:[%s1496 + $0x28] sm:$0xff]
      %v1503 = vld [vmem:[%s1496 + $0x30] sm:$0xff]
      %v1504 = vld [vmem:[%s1496 + $0x38] sm:$0xff]
      %v1505 = vld [vmem:[%s1496 + $0x40] sm:$0xff]
      %v1506 = vld [vmem:[%s1496 + $0x48] sm:$0xff]
      %v1507 = vld [vmem:[%s1496 + $0x50] sm:$0xff]
      %v1508 = vld [vmem:[%s1496 + $0x58] sm:$0xff]
      %v1509 = vld [vmem:[%s1496 + $0x60] sm:$0xff]
      %v1510 = vld [vmem:[%s1496 + $0x68] sm:$0xff]
      %v1511 = vld [vmem:[%s1496 + $0x70] sm:$0xff]
      %v1512 = vld [vmem:[%s1496 + $0x78] sm:$0xff]
      %v1513 = vld [vmem:[%s1496 + $0x80] sm:$0xff]
      %v1514 = vld [vmem:[%s1496 + $0x88] sm:$0xff]
      %v1515 = vld [vmem:[%s1496 + $0x90] sm:$0xff]
      %v1516 = vld [vmem:[%s1496 + $0x98] sm:$0xff]
      %v1517 = vld [vmem:[%s1496 + $0xa0] sm:$0xff]
      %v1518 = vld [vmem:[%s1496 + $0xa8] sm:$0xff]
      %v1519 = vld [vmem:[%s1496 + $0xb0] sm:$0xff]
      %v1520 = vld [vmem:[%s1496 + $0xb8] sm:$0xff]
      %v1521 = vld [vmem:[%s1496 + $0xc0] sm:$0xff]
      %v1522 = vld [vmem:[%s1496 + $0xc8] sm:$0xff]
      %v1523 = vld [vmem:[%s1496 + $0xd0] sm:$0xff]
      %v1524 = vld [vmem:[%s1496 + $0xd8] sm:$0xff]
      %v1525 = vld [vmem:[%s1496 + $0xe0] sm:$0xff]
      %v1526 = vld [vmem:[%s1496 + $0xe8] sm:$0xff]
      %v1527 = vld [vmem:[%s1496 + $0xf0] sm:$0xff]
      %v1528 = vld [vmem:[%s1496 + $0xf8] sm:$0xff]
      %v1561 = vunpack.c.l.b16 %v1497
      %v1562 = vunpack.c.h.b16 %v1497
      %v1563 = vunpack.c.l.b16 %v1498
      %v1564 = vunpack.c.h.b16 %v1498
      %v1565 = vunpack.c.l.b16 %v1499
      %v1566 = vunpack.c.h.b16 %v1499
      %v1567 = vunpack.c.l.b16 %v1500
      %v1568 = vunpack.c.h.b16 %v1500
      %v1569 = vunpack.c.l.b16 %v1501
      %v1570 = vunpack.c.h.b16 %v1501
      %v1571 = vunpack.c.l.b16 %v1502
      %v1572 = vunpack.c.h.b16 %v1502
      %v1573 = vunpack.c.l.b16 %v1503
      %v1574 = vunpack.c.h.b16 %v1503
      %v1575 = vunpack.c.l.b16 %v1504
      %v1576 = vunpack.c.h.b16 %v1504
      %v1577 = vunpack.c.l.b16 %v1505
      %v1578 = vunpack.c.h.b16 %v1505
      %v1579 = vunpack.c.l.b16 %v1506
      %v1580 = vunpack.c.h.b16 %v1506
      %v1581 = vunpack.c.l.b16 %v1507
      %v1582 = vunpack.c.h.b16 %v1507
      %v1583 = vunpack.c.l.b16 %v1508
      %v1584 = vunpack.c.h.b16 %v1508
      %v1585 = vunpack.c.l.b16 %v1509
      %v1586 = vunpack.c.h.b16 %v1509
      %v1587 = vunpack.c.l.b16 %v1510
      %v1588 = vunpack.c.h.b16 %v1510
      %v1589 = vunpack.c.l.b16 %v1511
      %v1590 = vunpack.c.h.b16 %v1511
      %v1591 = vunpack.c.l.b16 %v1512
      %v1592 = vunpack.c.h.b16 %v1512
      %v1593 = vunpack.c.l.b16 %v1513
      %v1594 = vunpack.c.h.b16 %v1513
      %v1595 = vunpack.c.l.b16 %v1514
      %v1596 = vunpack.c.h.b16 %v1514
      %v1597 = vunpack.c.l.b16 %v1515
      %v1598 = vunpack.c.h.b16 %v1515
      %v1599 = vunpack.c.l.b16 %v1516
      %v1600 = vunpack.c.h.b16 %v1516
      %v1601 = vunpack.c.l.b16 %v1517
      %v1602 = vunpack.c.h.b16 %v1517
      %v1603 = vunpack.c.l.b16 %v1518
      %v1604 = vunpack.c.h.b16 %v1518
      %v1605 = vunpack.c.l.b16 %v1519
      %v1606 = vunpack.c.h.b16 %v1519
      %v1607 = vunpack.c.l.b16 %v1520
      %v1608 = vunpack.c.h.b16 %v1520
      %v1609 = vunpack.c.l.b16 %v1521
      %v1610 = vunpack.c.h.b16 %v1521
      %v1611 = vunpack.c.l.b16 %v1522
      %v1612 = vunpack.c.h.b16 %v1522
      %v1613 = vunpack.c.l.b16 %v1523
      %v1614 = vunpack.c.h.b16 %v1523
      %v1615 = vunpack.c.l.b16 %v1524
      %v1616 = vunpack.c.h.b16 %v1524
      %v1617 = vunpack.c.l.b16 %v1525
      %v1618 = vunpack.c.h.b16 %v1525
      %v1619 = vunpack.c.l.b16 %v1526
      %v1620 = vunpack.c.h.b16 %v1526
      %v1621 = vunpack.c.l.b16 %v1527
      %v1622 = vunpack.c.h.b16 %v1527
      %v1623 = vunpack.c.l.b16 %v1528
      %v1624 = vunpack.c.h.b16 %v1528
      %v1625 = vpack.c.b16 %v1563, %v1561
      %v1626 = vpack.c.b16 %v1564, %v1562
      %v1627 = vpack.c.b16 %v1567, %v1565
      %v1628 = vpack.c.b16 %v1568, %v1566
      %v1629 = vpack.c.b16 %v1571, %v1569
      %v1630 = vpack.c.b16 %v1572, %v1570
      %v1631 = vpack.c.b16 %v1575, %v1573
      %v1632 = vpack.c.b16 %v1576, %v1574
      %v1633 = vpack.c.b16 %v1579, %v1577
      %v1634 = vpack.c.b16 %v1580, %v1578
      %v1635 = vpack.c.b16 %v1583, %v1581
      %v1636 = vpack.c.b16 %v1584, %v1582
      %v1637 = vpack.c.b16 %v1587, %v1585
      %v1638 = vpack.c.b16 %v1588, %v1586
      %v1639 = vpack.c.b16 %v1591, %v1589
      %v1640 = vpack.c.b16 %v1592, %v1590
      %v1641 = vpack.c.b16 %v1595, %v1593
      %v1642 = vpack.c.b16 %v1596, %v1594
      %v1643 = vpack.c.b16 %v1599, %v1597
      %v1644 = vpack.c.b16 %v1600, %v1598
      %v1645 = vpack.c.b16 %v1603, %v1601
      %v1646 = vpack.c.b16 %v1604, %v1602
      %v1647 = vpack.c.b16 %v1607, %v1605
      %v1648 = vpack.c.b16 %v1608, %v1606
      %v1649 = vpack.c.b16 %v1611, %v1609
      %v1650 = vpack.c.b16 %v1612, %v1610
      %v1651 = vpack.c.b16 %v1615, %v1613
      %v1652 = vpack.c.b16 %v1616, %v1614
      %v1653 = vpack.c.b16 %v1619, %v1617
      %v1654 = vpack.c.b16 %v1620, %v1618
      %v1655 = vpack.c.b16 %v1623, %v1621
      %v1656 = vpack.c.b16 %v1624, %v1622
      %1689 = vmatprep.subr.bf16.mxu0 %v1640
      %1690 = vmatpush1.bf16.msra.mxu0 %v1639
      %1691 = vmatprep.subr.bf16.mxu0 %v1638
      %1692 = vmatpush1.bf16.msra.mxu0 %v1637
      %1693 = vmatprep.subr.bf16.mxu0 %v1636
      %1694 = vmatpush1.bf16.msra.mxu0 %v1635
      %1695 = vmatprep.subr.bf16.mxu0 %v1634
      %1696 = vmatpush1.bf16.msra.mxu0 %v1633
      %1697 = vmatprep.subr.bf16.mxu0 %v1632
      %1698 = vmatpush1.bf16.msra.mxu0 %v1631
      %1699 = vmatprep.subr.bf16.mxu0 %v1630
      %1700 = vmatpush1.bf16.msra.mxu0 %v1629
      %1701 = vmatprep.subr.bf16.mxu0 %v1628
      %1702 = vmatpush1.bf16.msra.mxu0 %v1627
      %1703 = vmatprep.subr.bf16.mxu0 %v1626
      %1704 = vmatpush1.bf16.msra.mxu0 %v1625
      %1705 = vmatprep.subr.bf16.mxu0 %v1656
      %1706 = vmatpush2.bf16.msra.mxu0 %v1655
      %1707 = vmatprep.subr.bf16.mxu0 %v1654
      %1708 = vmatpush2.bf16.msra.mxu0 %v1653
      %1709 = vmatprep.subr.bf16.mxu0 %v1652
      %1710 = vmatpush2.bf16.msra.mxu0 %v1651
      %1711 = vmatprep.subr.bf16.mxu0 %v1650
      %1712 = vmatpush2.bf16.msra.mxu0 %v1649
      %1713 = vmatprep.subr.bf16.mxu0 %v1648
      %1714 = vmatpush2.bf16.msra.mxu0 %v1647
      %1715 = vmatprep.subr.bf16.mxu0 %v1646
      %1716 = vmatpush2.bf16.msra.mxu0 %v1645
      %1717 = vmatprep.subr.bf16.mxu0 %v1644
      %1718 = vmatpush2.bf16.msra.mxu0 %v1643
      %1719 = vmatprep.subr.bf16.mxu0 %v1642
      %1720 = vmatpush2.bf16.msra.mxu0 %v1641
      %1721 = vmatprep.mubr.bf16.mxu0 %v1368
      %1722 = vmatmul.mubr.bf16.gmra.mxu0 %v1367
      %v1723 = vpop.f32.mrf.mxu0
      %v1724 = vadd.f32 0.0, %v1723
      %v1725 = vpop.f32.mrf.mxu0
      %v1726 = vadd.f32 0.0, %v1725
      %v1727 = vpop.f32.mrf.mxu0
      %v1728 = vadd.f32 0.0, %v1727
      %v1729 = vpop.f32.mrf.mxu0
      %v1730 = vadd.f32 0.0, %v1729
      %1731 = vmatprep.mubr.bf16.mxu0 %v1370
      %1732 = vmatmul.mubr.bf16.gmra.mxu0 %v1369
      %v1733 = vpop.f32.mrf.mxu0
      %v1734 = vadd.f32 0.0, %v1733
      %v1735 = vpop.f32.mrf.mxu0
      %v1736 = vadd.f32 0.0, %v1735
      %v1737 = vpop.f32.mrf.mxu0
      %v1738 = vadd.f32 0.0, %v1737
      %v1739 = vpop.f32.mrf.mxu0
      %v1740 = vadd.f32 0.0, %v1739
      %1741 = vmatprep.mubr.bf16.mxu0 %v1372
      %1742 = vmatmul.mubr.bf16.gmra.mxu0 %v1371
      %v1743 = vpop.f32.mrf.mxu0
      %v1744 = vadd.f32 0.0, %v1743
      %v1745 = vpop.f32.mrf.mxu0
      %v1746 = vadd.f32 0.0, %v1745
      %v1747 = vpop.f32.mrf.mxu0
      %v1748 = vadd.f32 0.0, %v1747
      %v1749 = vpop.f32.mrf.mxu0
      %v1750 = vadd.f32 0.0, %v1749
      %1751 = vmatprep.mubr.bf16.mxu0 %v1374
      %1752 = vmatmul.mubr.bf16.gmra.mxu0 %v1373
      %v1753 = vpop.f32.mrf.mxu0
      %v1754 = vadd.f32 0.0, %v1753
      %v1755 = vpop.f32.mrf.mxu0
      %v1756 = vadd.f32 0.0, %v1755
      %v1757 = vpop.f32.mrf.mxu0
      %v1758 = vadd.f32 0.0, %v1757
      %v1759 = vpop.f32.mrf.mxu0
      %v1760 = vadd.f32 0.0, %v1759
      %1761 = vmatprep.mubr.bf16.mxu0 %v1376
      %1762 = vmatmul.mubr.bf16.gmra.mxu0 %v1375
      %v1763 = vpop.f32.mrf.mxu0
      %v1764 = vadd.f32 0.0, %v1763
      %v1765 = vpop.f32.mrf.mxu0
      %v1766 = vadd.f32 0.0, %v1765
      %v1767 = vpop.f32.mrf.mxu0
      %v1768 = vadd.f32 0.0, %v1767
      %v1769 = vpop.f32.mrf.mxu0
      %v1770 = vadd.f32 0.0, %v1769
      %1771 = vmatprep.mubr.bf16.mxu0 %v1378
      %1772 = vmatmul.mubr.bf16.gmra.mxu0 %v1377
      %v1773 = vpop.f32.mrf.mxu0
      %v1774 = vadd.f32 0.0, %v1773
      %v1775 = vpop.f32.mrf.mxu0
      %v1776 = vadd.f32 0.0, %v1775
      %v1777 = vpop.f32.mrf.mxu0
      %v1778 = vadd.f32 0.0, %v1777
      %v1779 = vpop.f32.mrf.mxu0
      %v1780 = vadd.f32 0.0, %v1779
      %1781 = vmatprep.mubr.bf16.mxu0 %v1380
      %1782 = vmatmul.mubr.bf16.gmra.mxu0 %v1379
      %v1783 = vpop.f32.mrf.mxu0
      %v1784 = vadd.f32 0.0, %v1783
      %v1785 = vpop.f32.mrf.mxu0
      %v1786 = vadd.f32 0.0, %v1785
      %v1787 = vpop.f32.mrf.mxu0
      %v1788 = vadd.f32 0.0, %v1787
      %v1789 = vpop.f32.mrf.mxu0
      %v1790 = vadd.f32 0.0, %v1789
      %1791 = vmatprep.mubr.bf16.mxu0 %v1382
      %1792 = vmatmul.mubr.bf16.gmra.mxu0 %v1381
      %v1793 = vpop.f32.mrf.mxu0
      %v1794 = vadd.f32 0.0, %v1793
      %v1795 = vpop.f32.mrf.mxu0
      %v1796 = vadd.f32 0.0, %v1795
      %v1797 = vpop.f32.mrf.mxu0
      %v1798 = vadd.f32 0.0, %v1797
      %v1799 = vpop.f32.mrf.mxu0
      %v1800 = vadd.f32 0.0, %v1799
      %1801 = vdwg.mxu0
      %v1834 = vunpack.c.l.b16 %v1464
      %v1835 = vunpack.c.h.b16 %v1464
      %v1836 = vunpack.c.l.b16 %v1465
      %v1837 = vunpack.c.h.b16 %v1465
      %v1838 = vunpack.c.l.b16 %v1466
      %v1839 = vunpack.c.h.b16 %v1466
      %v1840 = vunpack.c.l.b16 %v1467
      %v1841 = vunpack.c.h.b16 %v1467
      %v1842 = vunpack.c.l.b16 %v1468
      %v1843 = vunpack.c.h.b16 %v1468
      %v1844 = vunpack.c.l.b16 %v1469
      %v1845 = vunpack.c.h.b16 %v1469
      %v1846 = vunpack.c.l.b16 %v1470
      %v1847 = vunpack.c.h.b16 %v1470
      %v1848 = vunpack.c.l.b16 %v1471
      %v1849 = vunpack.c.h.b16 %v1471
      %v1850 = vunpack.c.l.b16 %v1472
      %v1851 = vunpack.c.h.b16 %v1472
      %v1852 = vunpack.c.l.b16 %v1473
      %v1853 = vunpack.c.h.b16 %v1473
      %v1854 = vunpack.c.l.b16 %v1474
      %v1855 = vunpack.c.h.b16 %v1474
      %v1856 = vunpack.c.l.b16 %v1475
      %v1857 = vunpack.c.h.b16 %v1475
      %v1858 = vunpack.c.l.b16 %v1476
      %v1859 = vunpack.c.h.b16 %v1476
      %v1860 = vunpack.c.l.b16 %v1477
      %v1861 = vunpack.c.h.b16 %v1477
      %v1862 = vunpack.c.l.b16 %v1478
      %v1863 = vunpack.c.h.b16 %v1478
      %v1864 = vunpack.c.l.b16 %v1479
      %v1865 = vunpack.c.h.b16 %v1479
      %v1866 = vunpack.c.l.b16 %v1480
      %v1867 = vunpack.c.h.b16 %v1480
      %v1868 = vunpack.c.l.b16 %v1481
      %v1869 = vunpack.c.h.b16 %v1481
      %v1870 = vunpack.c.l.b16 %v1482
      %v1871 = vunpack.c.h.b16 %v1482
      %v1872 = vunpack.c.l.b16 %v1483
      %v1873 = vunpack.c.h.b16 %v1483
      %v1874 = vunpack.c.l.b16 %v1484
      %v1875 = vunpack.c.h.b16 %v1484
      %v1876 = vunpack.c.l.b16 %v1485
      %v1877 = vunpack.c.h.b16 %v1485
      %v1878 = vunpack.c.l.b16 %v1486
      %v1879 = vunpack.c.h.b16 %v1486
      %v1880 = vunpack.c.l.b16 %v1487
      %v1881 = vunpack.c.h.b16 %v1487
      %v1882 = vunpack.c.l.b16 %v1488
      %v1883 = vunpack.c.h.b16 %v1488
      %v1884 = vunpack.c.l.b16 %v1489
      %v1885 = vunpack.c.h.b16 %v1489
      %v1886 = vunpack.c.l.b16 %v1490
      %v1887 = vunpack.c.h.b16 %v1490
      %v1888 = vunpack.c.l.b16 %v1491
      %v1889 = vunpack.c.h.b16 %v1491
      %v1890 = vunpack.c.l.b16 %v1492
      %v1891 = vunpack.c.h.b16 %v1492
      %v1892 = vunpack.c.l.b16 %v1493
      %v1893 = vunpack.c.h.b16 %v1493
      %v1894 = vunpack.c.l.b16 %v1494
      %v1895 = vunpack.c.h.b16 %v1494
      %v1896 = vunpack.c.l.b16 %v1495
      %v1897 = vunpack.c.h.b16 %v1495
      %v1898 = vpack.c.b16 %v1836, %v1834
      %v1899 = vpack.c.b16 %v1837, %v1835
      %v1900 = vpack.c.b16 %v1840, %v1838
      %v1901 = vpack.c.b16 %v1841, %v1839
      %v1902 = vpack.c.b16 %v1844, %v1842
      %v1903 = vpack.c.b16 %v1845, %v1843
      %v1904 = vpack.c.b16 %v1848, %v1846
      %v1905 = vpack.c.b16 %v1849, %v1847
      %v1906 = vpack.c.b16 %v1852, %v1850
      %v1907 = vpack.c.b16 %v1853, %v1851
      %v1908 = vpack.c.b16 %v1856, %v1854
      %v1909 = vpack.c.b16 %v1857, %v1855
      %v1910 = vpack.c.b16 %v1860, %v1858
      %v1911 = vpack.c.b16 %v1861, %v1859
      %v1912 = vpack.c.b16 %v1864, %v1862
      %v1913 = vpack.c.b16 %v1865, %v1863
      %v1914 = vpack.c.b16 %v1868, %v1866
      %v1915 = vpack.c.b16 %v1869, %v1867
      %v1916 = vpack.c.b16 %v1872, %v1870
      %v1917 = vpack.c.b16 %v1873, %v1871
      %v1918 = vpack.c.b16 %v1876, %v1874
      %v1919 = vpack.c.b16 %v1877, %v1875
      %v1920 = vpack.c.b16 %v1880, %v1878
      %v1921 = vpack.c.b16 %v1881, %v1879
      %v1922 = vpack.c.b16 %v1884, %v1882
      %v1923 = vpack.c.b16 %v1885, %v1883
      %v1924 = vpack.c.b16 %v1888, %v1886
      %v1925 = vpack.c.b16 %v1889, %v1887
      %v1926 = vpack.c.b16 %v1892, %v1890
      %v1927 = vpack.c.b16 %v1893, %v1891
      %v1928 = vpack.c.b16 %v1896, %v1894
      %v1929 = vpack.c.b16 %v1897, %v1895
      %1962 = vmatprep.subr.bf16.mxu0 %v1913
      %1963 = vmatpush1.bf16.msra.mxu0 %v1912
      %1964 = vmatprep.subr.bf16.mxu0 %v1911
      %1965 = vmatpush1.bf16.msra.mxu0 %v1910
      %1966 = vmatprep.subr.bf16.mxu0 %v1909
      %1967 = vmatpush1.bf16.msra.mxu0 %v1908
      %1968 = vmatprep.subr.bf16.mxu0 %v1907
      %1969 = vmatpush1.bf16.msra.mxu0 %v1906
      %1970 = vmatprep.subr.bf16.mxu0 %v1905
      %1971 = vmatpush1.bf16.msra.mxu0 %v1904
      %1972 = vmatprep.subr.bf16.mxu0 %v1903
      %1973 = vmatpush1.bf16.msra.mxu0 %v1902
      %1974 = vmatprep.subr.bf16.mxu0 %v1901
      %1975 = vmatpush1.bf16.msra.mxu0 %v1900
      %1976 = vmatprep.subr.bf16.mxu0 %v1899
      %1977 = vmatpush1.bf16.msra.mxu0 %v1898
      %1978 = vmatprep.subr.bf16.mxu0 %v1929
      %1979 = vmatpush2.bf16.msra.mxu0 %v1928
      %1980 = vmatprep.subr.bf16.mxu0 %v1927
      %1981 = vmatpush2.bf16.msra.mxu0 %v1926
      %1982 = vmatprep.subr.bf16.mxu0 %v1925
      %1983 = vmatpush2.bf16.msra.mxu0 %v1924
      %1984 = vmatprep.subr.bf16.mxu0 %v1923
      %1985 = vmatpush2.bf16.msra.mxu0 %v1922
      %1986 = vmatprep.subr.bf16.mxu0 %v1921
      %1987 = vmatpush2.bf16.msra.mxu0 %v1920
      %1988 = vmatprep.subr.bf16.mxu0 %v1919
      %1989 = vmatpush2.bf16.msra.mxu0 %v1918
      %1990 = vmatprep.subr.bf16.mxu0 %v1917
      %1991 = vmatpush2.bf16.msra.mxu0 %v1916
      %1992 = vmatprep.subr.bf16.mxu0 %v1915
      %1993 = vmatpush2.bf16.msra.mxu0 %v1914
      %1994 = vmatprep.mubr.bf16.mxu0 %v1368
      %1995 = vmatmul.mubr.bf16.gmra.mxu0 %v1367
      %v1996 = vpop.f32.mrf.mxu0
      %v1997 = vadd.f32 %v1724, %v1996
      %v1998 = vpop.f32.mrf.mxu0
      %v1999 = vadd.f32 %v1726, %v1998
      %v2000 = vpop.f32.mrf.mxu0
      %v2001 = vadd.f32 %v1728, %v2000
      %v2002 = vpop.f32.mrf.mxu0
      %v2003 = vadd.f32 %v1730, %v2002
      %2004 = vmatprep.mubr.bf16.mxu0 %v1370
      %2005 = vmatmul.mubr.bf16.gmra.mxu0 %v1369
      %v2006 = vpop.f32.mrf.mxu0
      %v2007 = vadd.f32 %v1734, %v2006
      %v2008 = vpop.f32.mrf.mxu0
      %v2009 = vadd.f32 %v1736, %v2008
      %v2010 = vpop.f32.mrf.mxu0
      %v2011 = vadd.f32 %v1738, %v2010
      %v2012 = vpop.f32.mrf.mxu0
      %v2013 = vadd.f32 %v1740, %v2012
      %2014 = vmatprep.mubr.bf16.mxu0 %v1372
      %2015 = vmatmul.mubr.bf16.gmra.mxu0 %v1371
      %v2016 = vpop.f32.mrf.mxu0
      %v2017 = vadd.f32 %v1744, %v2016
      %v2018 = vpop.f32.mrf.mxu0
      %v2019 = vadd.f32 %v1746, %v2018
      %v2020 = vpop.f32.mrf.mxu0
      %v2021 = vadd.f32 %v1748, %v2020
      %v2022 = vpop.f32.mrf.mxu0
      %v2023 = vadd.f32 %v1750, %v2022
      %2024 = vmatprep.mubr.bf16.mxu0 %v1374
      %2025 = vmatmul.mubr.bf16.gmra.mxu0 %v1373
      %v2026 = vpop.f32.mrf.mxu0
      %v2027 = vadd.f32 %v1754, %v2026
      %v2028 = vpop.f32.mrf.mxu0
      %v2029 = vadd.f32 %v1756, %v2028
      %v2030 = vpop.f32.mrf.mxu0
      %v2031 = vadd.f32 %v1758, %v2030
      %v2032 = vpop.f32.mrf.mxu0
      %v2033 = vadd.f32 %v1760, %v2032
      %2034 = vmatprep.mubr.bf16.mxu0 %v1376
      %2035 = vmatmul.mubr.bf16.gmra.mxu0 %v1375
      %v2036 = vpop.f32.mrf.mxu0
      %v2037 = vadd.f32 %v1764, %v2036
      %v2038 = vpop.f32.mrf.mxu0
      %v2039 = vadd.f32 %v1766, %v2038
      %v2040 = vpop.f32.mrf.mxu0
      %v2041 = vadd.f32 %v1768, %v2040
      %v2042 = vpop.f32.mrf.mxu0
      %v2043 = vadd.f32 %v1770, %v2042
      %2044 = vmatprep.mubr.bf16.mxu0 %v1378
      %2045 = vmatmul.mubr.bf16.gmra.mxu0 %v1377
      %v2046 = vpop.f32.mrf.mxu0
      %v2047 = vadd.f32 %v1774, %v2046
      %v2048 = vpop.f32.mrf.mxu0
      %v2049 = vadd.f32 %v1776, %v2048
      %v2050 = vpop.f32.mrf.mxu0
      %v2051 = vadd.f32 %v1778, %v2050
      %v2052 = vpop.f32.mrf.mxu0
      %v2053 = vadd.f32 %v1780, %v2052
      %2054 = vmatprep.mubr.bf16.mxu0 %v1380
      %2055 = vmatmul.mubr.bf16.gmra.mxu0 %v1379
      %v2056 = vpop.f32.mrf.mxu0
      %v2057 = vadd.f32 %v1784, %v2056
      %v2058 = vpop.f32.mrf.mxu0
      %v2059 = vadd.f32 %v1786, %v2058
      %v2060 = vpop.f32.mrf.mxu0
      %v2061 = vadd.f32 %v1788, %v2060
      %v2062 = vpop.f32.mrf.mxu0
      %v2063 = vadd.f32 %v1790, %v2062
      %2064 = vmatprep.mubr.bf16.mxu0 %v1382
      %2065 = vmatmul.mubr.bf16.gmra.mxu0 %v1381
      %v2066 = vpop.f32.mrf.mxu0
      %v2067 = vadd.f32 %v1794, %v2066
      %v2068 = vpop.f32.mrf.mxu0
      %v2069 = vadd.f32 %v1796, %v2068
      %v2070 = vpop.f32.mrf.mxu0
      %v2071 = vadd.f32 %v1798, %v2070
      %v2072 = vpop.f32.mrf.mxu0
      %v2073 = vadd.f32 %v1800, %v2072
      %2074 = vdwg.mxu0
      %2075 = vmatprep.subr.bf16.mxu0 %v1913
      %2076 = vmatpush1.bf16.msra.mxu0 %v1912
      %2077 = vmatprep.subr.bf16.mxu0 %v1911
      %2078 = vmatpush1.bf16.msra.mxu0 %v1910
      %2079 = vmatprep.subr.bf16.mxu0 %v1909
      %2080 = vmatpush1.bf16.msra.mxu0 %v1908
      %2081 = vmatprep.subr.bf16.mxu0 %v1907
      %2082 = vmatpush1.bf16.msra.mxu0 %v1906
      %2083 = vmatprep.subr.bf16.mxu0 %v1905
      %2084 = vmatpush1.bf16.msra.mxu0 %v1904
      %2085 = vmatprep.subr.bf16.mxu0 %v1903
      %2086 = vmatpush1.bf16.msra.mxu0 %v1902
      %2087 = vmatprep.subr.bf16.mxu0 %v1901
      %2088 = vmatpush1.bf16.msra.mxu0 %v1900
      %2089 = vmatprep.subr.bf16.mxu0 %v1899
      %2090 = vmatpush1.bf16.msra.mxu0 %v1898
      %2091 = vmatprep.subr.bf16.mxu0 %v1929
      %2092 = vmatpush2.bf16.msra.mxu0 %v1928
      %2093 = vmatprep.subr.bf16.mxu0 %v1927
      %2094 = vmatpush2.bf16.msra.mxu0 %v1926
      %2095 = vmatprep.subr.bf16.mxu0 %v1925
      %2096 = vmatpush2.bf16.msra.mxu0 %v1924
      %2097 = vmatprep.subr.bf16.mxu0 %v1923
      %2098 = vmatpush2.bf16.msra.mxu0 %v1922
      %2099 = vmatprep.subr.bf16.mxu0 %v1921
      %2100 = vmatpush2.bf16.msra.mxu0 %v1920
      %2101 = vmatprep.subr.bf16.mxu0 %v1919
      %2102 = vmatpush2.bf16.msra.mxu0 %v1918
      %2103 = vmatprep.subr.bf16.mxu0 %v1917
      %2104 = vmatpush2.bf16.msra.mxu0 %v1916
      %2105 = vmatprep.subr.bf16.mxu0 %v1915
      %2106 = vmatpush2.bf16.msra.mxu0 %v1914
      %2107 = vmatprep.mubr.bf16.mxu0 %v1448
      %2108 = vmatmul.mubr.bf16.gmra.mxu0 %v1447
      %v2109 = vpop.f32.mrf.mxu0
      %v2110 = vadd.f32 0.0, %v2109
      %v2111 = vpop.f32.mrf.mxu0
      %v2112 = vadd.f32 0.0, %v2111
      %v2113 = vpop.f32.mrf.mxu0
      %v2114 = vadd.f32 0.0, %v2113
      %v2115 = vpop.f32.mrf.mxu0
      %v2116 = vadd.f32 0.0, %v2115
      %2117 = vmatprep.mubr.bf16.mxu0 %v1450
      %2118 = vmatmul.mubr.bf16.gmra.mxu0 %v1449
      %v2119 = vpop.f32.mrf.mxu0
      %v2120 = vadd.f32 0.0, %v2119
      %v2121 = vpop.f32.mrf.mxu0
      %v2122 = vadd.f32 0.0, %v2121
      %v2123 = vpop.f32.mrf.mxu0
      %v2124 = vadd.f32 0.0, %v2123
      %v2125 = vpop.f32.mrf.mxu0
      %v2126 = vadd.f32 0.0, %v2125
      %2127 = vmatprep.mubr.bf16.mxu0 %v1452
      %2128 = vmatmul.mubr.bf16.gmra.mxu0 %v1451
      %v2129 = vpop.f32.mrf.mxu0
      %v2130 = vadd.f32 0.0, %v2129
      %v2131 = vpop.f32.mrf.mxu0
      %v2132 = vadd.f32 0.0, %v2131
      %v2133 = vpop.f32.mrf.mxu0
      %v2134 = vadd.f32 0.0, %v2133
      %v2135 = vpop.f32.mrf.mxu0
      %v2136 = vadd.f32 0.0, %v2135
      %2137 = vmatprep.mubr.bf16.mxu0 %v1454
      %2138 = vmatmul.mubr.bf16.gmra.mxu0 %v1453
      %v2139 = vpop.f32.mrf.mxu0
      %v2140 = vadd.f32 0.0, %v2139
      %v2141 = vpop.f32.mrf.mxu0
      %v2142 = vadd.f32 0.0, %v2141
      %v2143 = vpop.f32.mrf.mxu0
      %v2144 = vadd.f32 0.0, %v2143
      %v2145 = vpop.f32.mrf.mxu0
      %v2146 = vadd.f32 0.0, %v2145
      %2147 = vmatprep.mubr.bf16.mxu0 %v1456
      %2148 = vmatmul.mubr.bf16.gmra.mxu0 %v1455
      %v2149 = vpop.f32.mrf.mxu0
      %v2150 = vadd.f32 0.0, %v2149
      %v2151 = vpop.f32.mrf.mxu0
      %v2152 = vadd.f32 0.0, %v2151
      %v2153 = vpop.f32.mrf.mxu0
      %v2154 = vadd.f32 0.0, %v2153
      %v2155 = vpop.f32.mrf.mxu0
      %v2156 = vadd.f32 0.0, %v2155
      %2157 = vmatprep.mubr.bf16.mxu0 %v1458
      %2158 = vmatmul.mubr.bf16.gmra.mxu0 %v1457
      %v2159 = vpop.f32.mrf.mxu0
      %v2160 = vadd.f32 0.0, %v2159
      %v2161 = vpop.f32.mrf.mxu0
      %v2162 = vadd.f32 0.0, %v2161
      %v2163 = vpop.f32.mrf.mxu0
      %v2164 = vadd.f32 0.0, %v2163
      %v2165 = vpop.f32.mrf.mxu0
      %v2166 = vadd.f32 0.0, %v2165
      %2167 = vmatprep.mubr.bf16.mxu0 %v1460
      %2168 = vmatmul.mubr.bf16.gmra.mxu0 %v1459
      %v2169 = vpop.f32.mrf.mxu0
      %v2170 = vadd.f32 0.0, %v2169
      %v2171 = vpop.f32.mrf.mxu0
      %v2172 = vadd.f32 0.0, %v2171
      %v2173 = vpop.f32.mrf.mxu0
      %v2174 = vadd.f32 0.0, %v2173
      %v2175 = vpop.f32.mrf.mxu0
      %v2176 = vadd.f32 0.0, %v2175
      %2177 = vmatprep.mubr.bf16.mxu0 %v1462
      %2178 = vmatmul.mubr.bf16.gmra.mxu0 %v1461
      %v2179 = vpop.f32.mrf.mxu0
      %v2180 = vadd.f32 0.0, %v2179
      %v2181 = vpop.f32.mrf.mxu0
      %v2182 = vadd.f32 0.0, %v2181
      %v2183 = vpop.f32.mrf.mxu0
      %v2184 = vadd.f32 0.0, %v2183
      %v2185 = vpop.f32.mrf.mxu0
      %v2186 = vadd.f32 0.0, %v2185
      %2187 = vdwg.mxu0
      %v2188 = vadd.f32 %v1997, %v2110
      %v2189 = vadd.f32 %v1999, %v2112
      %v2190 = vadd.f32 %v2001, %v2114
      %v2191 = vadd.f32 %v2003, %v2116
      %v2192 = vadd.f32 %v2007, %v2120
      %v2193 = vadd.f32 %v2009, %v2122
      %v2194 = vadd.f32 %v2011, %v2124
      %v2195 = vadd.f32 %v2013, %v2126
      %v2196 = vadd.f32 %v2017, %v2130
      %v2197 = vadd.f32 %v2019, %v2132
      %v2198 = vadd.f32 %v2021, %v2134
      %v2199 = vadd.f32 %v2023, %v2136
      %v2200 = vadd.f32 %v2027, %v2140
      %v2201 = vadd.f32 %v2029, %v2142
      %v2202 = vadd.f32 %v2031, %v2144
      %v2203 = vadd.f32 %v2033, %v2146
      %v2204 = vadd.f32 %v2037, %v2150
      %v2205 = vadd.f32 %v2039, %v2152
      %v2206 = vadd.f32 %v2041, %v2154
      %v2207 = vadd.f32 %v2043, %v2156
      %v2208 = vadd.f32 %v2047, %v2160
      %v2209 = vadd.f32 %v2049, %v2162
      %v2210 = vadd.f32 %v2051, %v2164
      %v2211 = vadd.f32 %v2053, %v2166
      %v2212 = vadd.f32 %v2057, %v2170
      %v2213 = vadd.f32 %v2059, %v2172
      %v2214 = vadd.f32 %v2061, %v2174
      %v2215 = vadd.f32 %v2063, %v2176
      %v2216 = vadd.f32 %v2067, %v2180
      %v2217 = vadd.f32 %v2069, %v2182
      %v2218 = vadd.f32 %v2071, %v2184
      %v2219 = vadd.f32 %v2073, %v2186
      %v2220 = vld [vmem:[%s1] sm:$0xff]
      %v2221 = vld [vmem:[%s1 + $0x8] sm:$0xff]
      %v2222 = vld [vmem:[%s1 + $0x10] sm:$0xff]
      %v2223 = vld [vmem:[%s1 + $0x18] sm:$0xff]
      %v2224 = vld [vmem:[%s1 + $0x20] sm:$0xff]
      %v2225 = vld [vmem:[%s1 + $0x28] sm:$0xff]
      %v2226 = vld [vmem:[%s1 + $0x30] sm:$0xff]
      %v2227 = vld [vmem:[%s1 + $0x38] sm:$0xff]
      %v2228 = vld [vmem:[%s1 + $0x40] sm:$0xff]
      %v2229 = vld [vmem:[%s1 + $0x48] sm:$0xff]
      %v2230 = vld [vmem:[%s1 + $0x50] sm:$0xff]
      %v2231 = vld [vmem:[%s1 + $0x58] sm:$0xff]
      %v2232 = vld [vmem:[%s1 + $0x60] sm:$0xff]
      %v2233 = vld [vmem:[%s1 + $0x68] sm:$0xff]
      %v2234 = vld [vmem:[%s1 + $0x70] sm:$0xff]
      %v2235 = vld [vmem:[%s1 + $0x78] sm:$0xff]
      %s2236 = scalar_lea.vmem %s1, 128
      %v2237 = vld [vmem:[%s2236] sm:$0xff]
      %v2238 = vld [vmem:[%s2236 + $0x8] sm:$0xff]
      %v2239 = vld [vmem:[%s2236 + $0x10] sm:$0xff]
      %v2240 = vld [vmem:[%s2236 + $0x18] sm:$0xff]
      %v2241 = vld [vmem:[%s2236 + $0x20] sm:$0xff]
      %v2242 = vld [vmem:[%s2236 + $0x28] sm:$0xff]
      %v2243 = vld [vmem:[%s2236 + $0x30] sm:$0xff]
      %v2244 = vld [vmem:[%s2236 + $0x38] sm:$0xff]
      %v2245 = vld [vmem:[%s2236 + $0x40] sm:$0xff]
      %v2246 = vld [vmem:[%s2236 + $0x48] sm:$0xff]
      %v2247 = vld [vmem:[%s2236 + $0x50] sm:$0xff]
      %v2248 = vld [vmem:[%s2236 + $0x58] sm:$0xff]
      %v2249 = vld [vmem:[%s2236 + $0x60] sm:$0xff]
      %v2250 = vld [vmem:[%s2236 + $0x68] sm:$0xff]
      %v2251 = vld [vmem:[%s2236 + $0x70] sm:$0xff]
      %v2252 = vld [vmem:[%s2236 + $0x78] sm:$0xff]
      %v2253 = vmul.f32 %v2220, %v2188
      %v2254 = vmul.f32 %v2221, %v2190
      %v2255 = vmul.f32 %v2222, %v2192
      %v2256 = vmul.f32 %v2223, %v2194
      %v2257 = vmul.f32 %v2224, %v2196
      %v2258 = vmul.f32 %v2225, %v2198
      %v2259 = vmul.f32 %v2226, %v2200
      %v2260 = vmul.f32 %v2227, %v2202
      %v2261 = vmul.f32 %v2228, %v2204
      %v2262 = vmul.f32 %v2229, %v2206
      %v2263 = vmul.f32 %v2230, %v2208
      %v2264 = vmul.f32 %v2231, %v2210
      %v2265 = vmul.f32 %v2232, %v2212
      %v2266 = vmul.f32 %v2233, %v2214
      %v2267 = vmul.f32 %v2234, %v2216
      %v2268 = vmul.f32 %v2235, %v2218
      %v2269 = vmul.f32 %v2237, %v2189
      %v2270 = vmul.f32 %v2238, %v2191
      %v2271 = vmul.f32 %v2239, %v2193
      %v2272 = vmul.f32 %v2240, %v2195
      %v2273 = vmul.f32 %v2241, %v2197
      %v2274 = vmul.f32 %v2242, %v2199
      %v2275 = vmul.f32 %v2243, %v2201
      %v2276 = vmul.f32 %v2244, %v2203
      %v2277 = vmul.f32 %v2245, %v2205
      %v2278 = vmul.f32 %v2246, %v2207
      %v2279 = vmul.f32 %v2247, %v2209
      %v2280 = vmul.f32 %v2248, %v2211
      %v2281 = vmul.f32 %v2249, %v2213
      %v2282 = vmul.f32 %v2250, %v2215
      %v2283 = vmul.f32 %v2251, %v2217
      %v2284 = vmul.f32 %v2252, %v2219
      %v2285 = vsub.f32 %v2253, %v2269
      %v2286 = vsub.f32 %v2254, %v2270
      %v2287 = vsub.f32 %v2255, %v2271
      %v2288 = vsub.f32 %v2256, %v2272
      %v2289 = vsub.f32 %v2257, %v2273
      %v2290 = vsub.f32 %v2258, %v2274
      %v2291 = vsub.f32 %v2259, %v2275
      %v2292 = vsub.f32 %v2260, %v2276
      %v2293 = vsub.f32 %v2261, %v2277
      %v2294 = vsub.f32 %v2262, %v2278
      %v2295 = vsub.f32 %v2263, %v2279
      %v2296 = vsub.f32 %v2264, %v2280
      %v2297 = vsub.f32 %v2265, %v2281
      %v2298 = vsub.f32 %v2266, %v2282
      %v2299 = vsub.f32 %v2267, %v2283
      %v2300 = vsub.f32 %v2268, %v2284
      %2301 = vst [vmem:[#allocation2] sm:$0xff] %v2285
      %2302 = vst [vmem:[#allocation2 + $0x8] sm:$0xff] %v2286
      %2303 = vst [vmem:[#allocation2 + $0x10] sm:$0xff] %v2287
      %2304 = vst [vmem:[#allocation2 + $0x18] sm:$0xff] %v2288
      %2305 = vst [vmem:[#allocation2 + $0x20] sm:$0xff] %v2289
      %2306 = vst [vmem:[#allocation2 + $0x28] sm:$0xff] %v2290
      %2307 = vst [vmem:[#allocation2 + $0x30] sm:$0xff] %v2291
      %2308 = vst [vmem:[#allocation2 + $0x38] sm:$0xff] %v2292
      %2309 = vst [vmem:[#allocation2 + $0x40] sm:$0xff] %v2293
      %2310 = vst [vmem:[#allocation2 + $0x48] sm:$0xff] %v2294
      %2311 = vst [vmem:[#allocation2 + $0x50] sm:$0xff] %v2295
      %2312 = vst [vmem:[#allocation2 + $0x58] sm:$0xff] %v2296
      %2313 = vst [vmem:[#allocation2 + $0x60] sm:$0xff] %v2297
      %2314 = vst [vmem:[#allocation2 + $0x68] sm:$0xff] %v2298
      %2315 = vst [vmem:[#allocation2 + $0x70] sm:$0xff] %v2299
      %2316 = vst [vmem:[#allocation2 + $0x78] sm:$0xff] %v2300
      %v2317 = vmul.f32 %v2220, %v2189
      %v2318 = vmul.f32 %v2221, %v2191
      %v2319 = vmul.f32 %v2222, %v2193
      %v2320 = vmul.f32 %v2223, %v2195
      %v2321 = vmul.f32 %v2224, %v2197
      %v2322 = vmul.f32 %v2225, %v2199
      %v2323 = vmul.f32 %v2226, %v2201
      %v2324 = vmul.f32 %v2227, %v2203
      %v2325 = vmul.f32 %v2228, %v2205
      %v2326 = vmul.f32 %v2229, %v2207
      %v2327 = vmul.f32 %v2230, %v2209
      %v2328 = vmul.f32 %v2231, %v2211
      %v2329 = vmul.f32 %v2232, %v2213
      %v2330 = vmul.f32 %v2233, %v2215
      %v2331 = vmul.f32 %v2234, %v2217
      %v2332 = vmul.f32 %v2235, %v2219
      %v2333 = vmul.f32 %v2237, %v2188
      %v2334 = vmul.f32 %v2238, %v2190
      %v2335 = vmul.f32 %v2239, %v2192
      %v2336 = vmul.f32 %v2240, %v2194
      %v2337 = vmul.f32 %v2241, %v2196
      %v2338 = vmul.f32 %v2242, %v2198
      %v2339 = vmul.f32 %v2243, %v2200
      %v2340 = vmul.f32 %v2244, %v2202
      %v2341 = vmul.f32 %v2245, %v2204
      %v2342 = vmul.f32 %v2246, %v2206
      %v2343 = vmul.f32 %v2247, %v2208
      %v2344 = vmul.f32 %v2248, %v2210
      %v2345 = vmul.f32 %v2249, %v2212
      %v2346 = vmul.f32 %v2250, %v2214
      %v2347 = vmul.f32 %v2251, %v2216
      %v2348 = vmul.f32 %v2252, %v2218
      %v2349 = vadd.f32 %v2317, %v2333
      %v2350 = vadd.f32 %v2318, %v2334
      %v2351 = vadd.f32 %v2319, %v2335
      %v2352 = vadd.f32 %v2320, %v2336
      %v2353 = vadd.f32 %v2321, %v2337
      %v2354 = vadd.f32 %v2322, %v2338
      %v2355 = vadd.f32 %v2323, %v2339
      %v2356 = vadd.f32 %v2324, %v2340
      %v2357 = vadd.f32 %v2325, %v2341
      %v2358 = vadd.f32 %v2326, %v2342
      %v2359 = vadd.f32 %v2327, %v2343
      %v2360 = vadd.f32 %v2328, %v2344
      %v2361 = vadd.f32 %v2329, %v2345
      %v2362 = vadd.f32 %v2330, %v2346
      %v2363 = vadd.f32 %v2331, %v2347
      %v2364 = vadd.f32 %v2332, %v2348
      %2365 = vst [vmem:[#allocation2 + $0x80] sm:$0xff] %v2349
      %2366 = vst [vmem:[#allocation2 + $0x88] sm:$0xff] %v2350
      %2367 = vst [vmem:[#allocation2 + $0x90] sm:$0xff] %v2351
      %2368 = vst [vmem:[#allocation2 + $0x98] sm:$0xff] %v2352
      %2369 = vst [vmem:[#allocation2 + $0xa0] sm:$0xff] %v2353
      %2370 = vst [vmem:[#allocation2 + $0xa8] sm:$0xff] %v2354
      %2371 = vst [vmem:[#allocation2 + $0xb0] sm:$0xff] %v2355
      %2372 = vst [vmem:[#allocation2 + $0xb8] sm:$0xff] %v2356
      %2373 = vst [vmem:[#allocation2 + $0xc0] sm:$0xff] %v2357
      %2374 = vst [vmem:[#allocation2 + $0xc8] sm:$0xff] %v2358
      %2375 = vst [vmem:[#allocation2 + $0xd0] sm:$0xff] %v2359
      %2376 = vst [vmem:[#allocation2 + $0xd8] sm:$0xff] %v2360
      %2377 = vst [vmem:[#allocation2 + $0xe0] sm:$0xff] %v2361
      %2378 = vst [vmem:[#allocation2 + $0xe8] sm:$0xff] %v2362
      %2379 = vst [vmem:[#allocation2 + $0xf0] sm:$0xff] %v2363
      %2380 = vst [vmem:[#allocation2 + $0xf8] sm:$0xff] %v2364
      %v2381 = vld [vmem:[#allocation2] sm:$0xff]
      %v2382 = vld [vmem:[#allocation2 + $0x8] sm:$0xff]
      %v2383 = vld [vmem:[#allocation2 + $0x10] sm:$0xff]
      %v2384 = vld [vmem:[#allocation2 + $0x18] sm:$0xff]
      %v2385 = vld [vmem:[#allocation2 + $0x20] sm:$0xff]
      %v2386 = vld [vmem:[#allocation2 + $0x28] sm:$0xff]
      %v2387 = vld [vmem:[#allocation2 + $0x30] sm:$0xff]
      %v2388 = vld [vmem:[#allocation2 + $0x38] sm:$0xff]
      %v2389 = vld [vmem:[#allocation2 + $0x40] sm:$0xff]
      %v2390 = vld [vmem:[#allocation2 + $0x48] sm:$0xff]
      %v2391 = vld [vmem:[#allocation2 + $0x50] sm:$0xff]
      %v2392 = vld [vmem:[#allocation2 + $0x58] sm:$0xff]
      %v2393 = vld [vmem:[#allocation2 + $0x60] sm:$0xff]
      %v2394 = vld [vmem:[#allocation2 + $0x68] sm:$0xff]
      %v2395 = vld [vmem:[#allocation2 + $0x70] sm:$0xff]
      %v2396 = vld [vmem:[#allocation2 + $0x78] sm:$0xff]
      %v2397 = vld [vmem:[#allocation2 + $0x80] sm:$0xff]
      %v2398 = vld [vmem:[#allocation2 + $0x88] sm:$0xff]
      %v2399 = vld [vmem:[#allocation2 + $0x90] sm:$0xff]
      %v2400 = vld [vmem:[#allocation2 + $0x98] sm:$0xff]
      %v2401 = vld [vmem:[#allocation2 + $0xa0] sm:$0xff]
      %v2402 = vld [vmem:[#allocation2 + $0xa8] sm:$0xff]
      %v2403 = vld [vmem:[#allocation2 + $0xb0] sm:$0xff]
      %v2404 = vld [vmem:[#allocation2 + $0xb8] sm:$0xff]
      %v2405 = vld [vmem:[#allocation2 + $0xc0] sm:$0xff]
      %v2406 = vld [vmem:[#allocation2 + $0xc8] sm:$0xff]
      %v2407 = vld [vmem:[#allocation2 + $0xd0] sm:$0xff]
      %v2408 = vld [vmem:[#allocation2 + $0xd8] sm:$0xff]
      %v2409 = vld [vmem:[#allocation2 + $0xe0] sm:$0xff]
      %v2410 = vld [vmem:[#allocation2 + $0xe8] sm:$0xff]
      %v2411 = vld [vmem:[#allocation2 + $0xf0] sm:$0xff]
      %v2412 = vld [vmem:[#allocation2 + $0xf8] sm:$0xff]
      %v2413 = vpack.c.bf16 %v2382, %v2381
      %v2414 = vpack.c.bf16 %v2384, %v2383
      %v2415 = vpack.c.bf16 %v2386, %v2385
      %v2416 = vpack.c.bf16 %v2388, %v2387
      %v2417 = vpack.c.bf16 %v2390, %v2389
      %v2418 = vpack.c.bf16 %v2392, %v2391
      %v2419 = vpack.c.bf16 %v2394, %v2393
      %v2420 = vpack.c.bf16 %v2396, %v2395
      %v2421 = vpack.c.bf16 %v2398, %v2397
      %v2422 = vpack.c.bf16 %v2400, %v2399
      %v2423 = vpack.c.bf16 %v2402, %v2401
      %v2424 = vpack.c.bf16 %v2404, %v2403
      %v2425 = vpack.c.bf16 %v2406, %v2405
      %v2426 = vpack.c.bf16 %v2408, %v2407
      %v2427 = vpack.c.bf16 %v2410, %v2409
      %v2428 = vpack.c.bf16 %v2412, %v2411
      %v2429 = vunpack.c.l.bf16 %v2413
      %v2430 = vunpack.c.h.bf16 %v2413
      %v2431 = vunpack.c.l.bf16 %v2414
      %v2432 = vunpack.c.h.bf16 %v2414
      %v2433 = vunpack.c.l.bf16 %v2415
      %v2434 = vunpack.c.h.bf16 %v2415
      %v2435 = vunpack.c.l.bf16 %v2416
      %v2436 = vunpack.c.h.bf16 %v2416
      %v2437 = vunpack.c.l.bf16 %v2417
      %v2438 = vunpack.c.h.bf16 %v2417
      %v2439 = vunpack.c.l.bf16 %v2418
      %v2440 = vunpack.c.h.bf16 %v2418
      %v2441 = vunpack.c.l.bf16 %v2419
      %v2442 = vunpack.c.h.bf16 %v2419
      %v2443 = vunpack.c.l.bf16 %v2420
      %v2444 = vunpack.c.h.bf16 %v2420
      %v2445 = vunpack.c.l.bf16 %v2421
      %v2446 = vunpack.c.h.bf16 %v2421
      %v2447 = vunpack.c.l.bf16 %v2422
      %v2448 = vunpack.c.h.bf16 %v2422
      %v2449 = vunpack.c.l.bf16 %v2423
      %v2450 = vunpack.c.h.bf16 %v2423
      %v2451 = vunpack.c.l.bf16 %v2424
      %v2452 = vunpack.c.h.bf16 %v2424
      %v2453 = vunpack.c.l.bf16 %v2425
      %v2454 = vunpack.c.h.bf16 %v2425
      %v2455 = vunpack.c.l.bf16 %v2426
      %v2456 = vunpack.c.h.bf16 %v2426
      %v2457 = vunpack.c.l.bf16 %v2427
      %v2458 = vunpack.c.h.bf16 %v2427
      %v2459 = vunpack.c.l.bf16 %v2428
      %v2460 = vunpack.c.h.bf16 %v2428
      %v2461 = vsub.f32 %v2381, %v2429
      %v2462 = vsub.f32 %v2382, %v2430
      %v2463 = vsub.f32 %v2383, %v2431
      %v2464 = vsub.f32 %v2384, %v2432
      %v2465 = vsub.f32 %v2385, %v2433
      %v2466 = vsub.f32 %v2386, %v2434
      %v2467 = vsub.f32 %v2387, %v2435
      %v2468 = vsub.f32 %v2388, %v2436
      %v2469 = vsub.f32 %v2389, %v2437
      %v2470 = vsub.f32 %v2390, %v2438
      %v2471 = vsub.f32 %v2391, %v2439
      %v2472 = vsub.f32 %v2392, %v2440
      %v2473 = vsub.f32 %v2393, %v2441
      %v2474 = vsub.f32 %v2394, %v2442
      %v2475 = vsub.f32 %v2395, %v2443
      %v2476 = vsub.f32 %v2396, %v2444
      %v2477 = vsub.f32 %v2397, %v2445
      %v2478 = vsub.f32 %v2398, %v2446
      %v2479 = vsub.f32 %v2399, %v2447
      %v2480 = vsub.f32 %v2400, %v2448
      %v2481 = vsub.f32 %v2401, %v2449
      %v2482 = vsub.f32 %v2402, %v2450
      %v2483 = vsub.f32 %v2403, %v2451
      %v2484 = vsub.f32 %v2404, %v2452
      %v2485 = vsub.f32 %v2405, %v2453
      %v2486 = vsub.f32 %v2406, %v2454
      %v2487 = vsub.f32 %v2407, %v2455
      %v2488 = vsub.f32 %v2408, %v2456
      %v2489 = vsub.f32 %v2409, %v2457
      %v2490 = vsub.f32 %v2410, %v2458
      %v2491 = vsub.f32 %v2411, %v2459
      %v2492 = vsub.f32 %v2412, %v2460
      %v2493 = vpack.c.bf16 %v2462, %v2461
      %v2494 = vpack.c.bf16 %v2464, %v2463
      %v2495 = vpack.c.bf16 %v2466, %v2465
      %v2496 = vpack.c.bf16 %v2468, %v2467
      %v2497 = vpack.c.bf16 %v2470, %v2469
      %v2498 = vpack.c.bf16 %v2472, %v2471
      %v2499 = vpack.c.bf16 %v2474, %v2473
      %v2500 = vpack.c.bf16 %v2476, %v2475
      %v2501 = vpack.c.bf16 %v2478, %v2477
      %v2502 = vpack.c.bf16 %v2480, %v2479
      %v2503 = vpack.c.bf16 %v2482, %v2481
      %v2504 = vpack.c.bf16 %v2484, %v2483
      %v2505 = vpack.c.bf16 %v2486, %v2485
      %v2506 = vpack.c.bf16 %v2488, %v2487
      %v2507 = vpack.c.bf16 %v2490, %v2489
      %v2508 = vpack.c.bf16 %v2492, %v2491
      %s2509 = scalar_lea.vmem %s0, 1024
      %v2510 = vld [vmem:[%s2509] sm:$0xff]
      %v2511 = vld [vmem:[%s2509 + $0x8] sm:$0xff]
      %v2512 = vld [vmem:[%s2509 + $0x10] sm:$0xff]
      %v2513 = vld [vmem:[%s2509 + $0x18] sm:$0xff]
      %v2514 = vld [vmem:[%s2509 + $0x20] sm:$0xff]
      %v2515 = vld [vmem:[%s2509 + $0x28] sm:$0xff]
      %v2516 = vld [vmem:[%s2509 + $0x30] sm:$0xff]
      %v2517 = vld [vmem:[%s2509 + $0x38] sm:$0xff]
      %v2518 = vld [vmem:[%s2509 + $0x40] sm:$0xff]
      %v2519 = vld [vmem:[%s2509 + $0x48] sm:$0xff]
      %v2520 = vld [vmem:[%s2509 + $0x50] sm:$0xff]
      %v2521 = vld [vmem:[%s2509 + $0x58] sm:$0xff]
      %v2522 = vld [vmem:[%s2509 + $0x60] sm:$0xff]
      %v2523 = vld [vmem:[%s2509 + $0x68] sm:$0xff]
      %v2524 = vld [vmem:[%s2509 + $0x70] sm:$0xff]
      %v2525 = vld [vmem:[%s2509 + $0x78] sm:$0xff]
      %v2526 = vld [vmem:[%s2509 + $0x80] sm:$0xff]
      %v2527 = vld [vmem:[%s2509 + $0x88] sm:$0xff]
      %v2528 = vld [vmem:[%s2509 + $0x90] sm:$0xff]
      %v2529 = vld [vmem:[%s2509 + $0x98] sm:$0xff]
      %v2530 = vld [vmem:[%s2509 + $0xa0] sm:$0xff]
      %v2531 = vld [vmem:[%s2509 + $0xa8] sm:$0xff]
      %v2532 = vld [vmem:[%s2509 + $0xb0] sm:$0xff]
      %v2533 = vld [vmem:[%s2509 + $0xb8] sm:$0xff]
      %v2534 = vld [vmem:[%s2509 + $0xc0] sm:$0xff]
      %v2535 = vld [vmem:[%s2509 + $0xc8] sm:$0xff]
      %v2536 = vld [vmem:[%s2509 + $0xd0] sm:$0xff]
      %v2537 = vld [vmem:[%s2509 + $0xd8] sm:$0xff]
      %v2538 = vld [vmem:[%s2509 + $0xe0] sm:$0xff]
      %v2539 = vld [vmem:[%s2509 + $0xe8] sm:$0xff]
      %v2540 = vld [vmem:[%s2509 + $0xf0] sm:$0xff]
      %v2541 = vld [vmem:[%s2509 + $0xf8] sm:$0xff]
      %s2542 = scalar_lea.vmem %s0, 1280
      %v2543 = vld [vmem:[%s2542] sm:$0xff]
      %v2544 = vld [vmem:[%s2542 + $0x8] sm:$0xff]
      %v2545 = vld [vmem:[%s2542 + $0x10] sm:$0xff]
      %v2546 = vld [vmem:[%s2542 + $0x18] sm:$0xff]
      %v2547 = vld [vmem:[%s2542 + $0x20] sm:$0xff]
      %v2548 = vld [vmem:[%s2542 + $0x28] sm:$0xff]
      %v2549 = vld [vmem:[%s2542 + $0x30] sm:$0xff]
      %v2550 = vld [vmem:[%s2542 + $0x38] sm:$0xff]
      %v2551 = vld [vmem:[%s2542 + $0x40] sm:$0xff]
      %v2552 = vld [vmem:[%s2542 + $0x48] sm:$0xff]
      %v2553 = vld [vmem:[%s2542 + $0x50] sm:$0xff]
      %v2554 = vld [vmem:[%s2542 + $0x58] sm:$0xff]
      %v2555 = vld [vmem:[%s2542 + $0x60] sm:$0xff]
      %v2556 = vld [vmem:[%s2542 + $0x68] sm:$0xff]
      %v2557 = vld [vmem:[%s2542 + $0x70] sm:$0xff]
      %v2558 = vld [vmem:[%s2542 + $0x78] sm:$0xff]
      %v2559 = vld [vmem:[%s2542 + $0x80] sm:$0xff]
      %v2560 = vld [vmem:[%s2542 + $0x88] sm:$0xff]
      %v2561 = vld [vmem:[%s2542 + $0x90] sm:$0xff]
      %v2562 = vld [vmem:[%s2542 + $0x98] sm:$0xff]
      %v2563 = vld [vmem:[%s2542 + $0xa0] sm:$0xff]
      %v2564 = vld [vmem:[%s2542 + $0xa8] sm:$0xff]
      %v2565 = vld [vmem:[%s2542 + $0xb0] sm:$0xff]
      %v2566 = vld [vmem:[%s2542 + $0xb8] sm:$0xff]
      %v2567 = vld [vmem:[%s2542 + $0xc0] sm:$0xff]
      %v2568 = vld [vmem:[%s2542 + $0xc8] sm:$0xff]
      %v2569 = vld [vmem:[%s2542 + $0xd0] sm:$0xff]
      %v2570 = vld [vmem:[%s2542 + $0xd8] sm:$0xff]
      %v2571 = vld [vmem:[%s2542 + $0xe0] sm:$0xff]
      %v2572 = vld [vmem:[%s2542 + $0xe8] sm:$0xff]
      %v2573 = vld [vmem:[%s2542 + $0xf0] sm:$0xff]
      %v2574 = vld [vmem:[%s2542 + $0xf8] sm:$0xff]
      %v2607 = vunpack.c.l.b16 %v2510
      %v2608 = vunpack.c.h.b16 %v2510
      %v2609 = vunpack.c.l.b16 %v2511
      %v2610 = vunpack.c.h.b16 %v2511
      %v2611 = vunpack.c.l.b16 %v2512
      %v2612 = vunpack.c.h.b16 %v2512
      %v2613 = vunpack.c.l.b16 %v2513
      %v2614 = vunpack.c.h.b16 %v2513
      %v2615 = vunpack.c.l.b16 %v2514
      %v2616 = vunpack.c.h.b16 %v2514
      %v2617 = vunpack.c.l.b16 %v2515
      %v2618 = vunpack.c.h.b16 %v2515
      %v2619 = vunpack.c.l.b16 %v2516
      %v2620 = vunpack.c.h.b16 %v2516
      %v2621 = vunpack.c.l.b16 %v2517
      %v2622 = vunpack.c.h.b16 %v2517
      %v2623 = vunpack.c.l.b16 %v2518
      %v2624 = vunpack.c.h.b16 %v2518
      %v2625 = vunpack.c.l.b16 %v2519
      %v2626 = vunpack.c.h.b16 %v2519
      %v2627 = vunpack.c.l.b16 %v2520
      %v2628 = vunpack.c.h.b16 %v2520
      %v2629 = vunpack.c.l.b16 %v2521
      %v2630 = vunpack.c.h.b16 %v2521
      %v2631 = vunpack.c.l.b16 %v2522
      %v2632 = vunpack.c.h.b16 %v2522
      %v2633 = vunpack.c.l.b16 %v2523
      %v2634 = vunpack.c.h.b16 %v2523
      %v2635 = vunpack.c.l.b16 %v2524
      %v2636 = vunpack.c.h.b16 %v2524
      %v2637 = vunpack.c.l.b16 %v2525
      %v2638 = vunpack.c.h.b16 %v2525
      %v2639 = vunpack.c.l.b16 %v2526
      %v2640 = vunpack.c.h.b16 %v2526
      %v2641 = vunpack.c.l.b16 %v2527
      %v2642 = vunpack.c.h.b16 %v2527
      %v2643 = vunpack.c.l.b16 %v2528
      %v2644 = vunpack.c.h.b16 %v2528
      %v2645 = vunpack.c.l.b16 %v2529
      %v2646 = vunpack.c.h.b16 %v2529
      %v2647 = vunpack.c.l.b16 %v2530
      %v2648 = vunpack.c.h.b16 %v2530
      %v2649 = vunpack.c.l.b16 %v2531
      %v2650 = vunpack.c.h.b16 %v2531
      %v2651 = vunpack.c.l.b16 %v2532
      %v2652 = vunpack.c.h.b16 %v2532
      %v2653 = vunpack.c.l.b16 %v2533
      %v2654 = vunpack.c.h.b16 %v2533
      %v2655 = vunpack.c.l.b16 %v2534
      %v2656 = vunpack.c.h.b16 %v2534
      %v2657 = vunpack.c.l.b16 %v2535
      %v2658 = vunpack.c.h.b16 %v2535
      %v2659 = vunpack.c.l.b16 %v2536
      %v2660 = vunpack.c.h.b16 %v2536
      %v2661 = vunpack.c.l.b16 %v2537
      %v2662 = vunpack.c.h.b16 %v2537
      %v2663 = vunpack.c.l.b16 %v2538
      %v2664 = vunpack.c.h.b16 %v2538
      %v2665 = vunpack.c.l.b16 %v2539
      %v2666 = vunpack.c.h.b16 %v2539
      %v2667 = vunpack.c.l.b16 %v2540
      %v2668 = vunpack.c.h.b16 %v2540
      %v2669 = vunpack.c.l.b16 %v2541
      %v2670 = vunpack.c.h.b16 %v2541
      %v2671 = vpack.c.b16 %v2609, %v2607
      %v2672 = vpack.c.b16 %v2610, %v2608
      %v2673 = vpack.c.b16 %v2613, %v2611
      %v2674 = vpack.c.b16 %v2614, %v2612
      %v2675 = vpack.c.b16 %v2617, %v2615
      %v2676 = vpack.c.b16 %v2618, %v2616
      %v2677 = vpack.c.b16 %v2621, %v2619
      %v2678 = vpack.c.b16 %v2622, %v2620
      %v2679 = vpack.c.b16 %v2625, %v2623
      %v2680 = vpack.c.b16 %v2626, %v2624
      %v2681 = vpack.c.b16 %v2629, %v2627
      %v2682 = vpack.c.b16 %v2630, %v2628
      %v2683 = vpack.c.b16 %v2633, %v2631
      %v2684 = vpack.c.b16 %v2634, %v2632
      %v2685 = vpack.c.b16 %v2637, %v2635
      %v2686 = vpack.c.b16 %v2638, %v2636
      %v2687 = vpack.c.b16 %v2641, %v2639
      %v2688 = vpack.c.b16 %v2642, %v2640
      %v2689 = vpack.c.b16 %v2645, %v2643
      %v2690 = vpack.c.b16 %v2646, %v2644
      %v2691 = vpack.c.b16 %v2649, %v2647
      %v2692 = vpack.c.b16 %v2650, %v2648
      %v2693 = vpack.c.b16 %v2653, %v2651
      %v2694 = vpack.c.b16 %v2654, %v2652
      %v2695 = vpack.c.b16 %v2657, %v2655
      %v2696 = vpack.c.b16 %v2658, %v2656
      %v2697 = vpack.c.b16 %v2661, %v2659
      %v2698 = vpack.c.b16 %v2662, %v2660
      %v2699 = vpack.c.b16 %v2665, %v2663
      %v2700 = vpack.c.b16 %v2666, %v2664
      %v2701 = vpack.c.b16 %v2669, %v2667
      %v2702 = vpack.c.b16 %v2670, %v2668
      %2735 = vmatprep.subr.bf16.mxu0 0
      %2736 = vmatpush1.bf16.msra.mxu0 %v2500
      %2737 = vmatprep.subr.bf16.mxu0 0
      %2738 = vmatpush1.bf16.msra.mxu0 %v2499
      %2739 = vmatprep.subr.bf16.mxu0 0
      %2740 = vmatpush1.bf16.msra.mxu0 %v2498
      %2741 = vmatprep.subr.bf16.mxu0 0
      %2742 = vmatpush1.bf16.msra.mxu0 %v2497
      %2743 = vmatprep.subr.bf16.mxu0 0
      %2744 = vmatpush1.bf16.msra.mxu0 %v2496
      %2745 = vmatprep.subr.bf16.mxu0 0
      %2746 = vmatpush1.bf16.msra.mxu0 %v2495
      %2747 = vmatprep.subr.bf16.mxu0 0
      %2748 = vmatpush1.bf16.msra.mxu0 %v2494
      %2749 = vmatprep.subr.bf16.mxu0 0
      %2750 = vmatpush1.bf16.msra.mxu0 %v2493
      %2751 = vmatprep.subr.bf16.mxu0 0
      %2752 = vmatpush2.bf16.msra.mxu0 %v2508
      %2753 = vmatprep.subr.bf16.mxu0 0
      %2754 = vmatpush2.bf16.msra.mxu0 %v2507
      %2755 = vmatprep.subr.bf16.mxu0 0
      %2756 = vmatpush2.bf16.msra.mxu0 %v2506
      %2757 = vmatprep.subr.bf16.mxu0 0
      %2758 = vmatpush2.bf16.msra.mxu0 %v2505
      %2759 = vmatprep.subr.bf16.mxu0 0
      %2760 = vmatpush2.bf16.msra.mxu0 %v2504
      %2761 = vmatprep.subr.bf16.mxu0 0
      %2762 = vmatpush2.bf16.msra.mxu0 %v2503
      %2763 = vmatprep.subr.bf16.mxu0 0
      %2764 = vmatpush2.bf16.msra.mxu0 %v2502
      %2765 = vmatprep.subr.bf16.mxu0 0
      %2766 = vmatpush2.bf16.msra.mxu0 %v2501
      %2767 = vmatprep.mubr.bf16.mxu0 %v2672
      %2768 = vmatmul.mubr.bf16.gmra.mxu0 %v2671
      %v2769 = vpop.f32.mrf.mxu0
      %v2770 = vadd.f32 0.0, %v2769
      %v2771 = vpop.f32.mrf.mxu0
      %v2772 = vpop.f32.mrf.mxu0
      %v2773 = vadd.f32 0.0, %v2772
      %v2774 = vpop.f32.mrf.mxu0
      %2775 = vmatprep.mubr.bf16.mxu0 %v2674
      %2776 = vmatmul.mubr.bf16.gmra.mxu0 %v2673
      %v2777 = vpop.f32.mrf.mxu0
      %v2778 = vadd.f32 0.0, %v2777
      %v2779 = vpop.f32.mrf.mxu0
      %v2780 = vpop.f32.mrf.mxu0
      %v2781 = vadd.f32 0.0, %v2780
      %v2782 = vpop.f32.mrf.mxu0
      %2783 = vmatprep.mubr.bf16.mxu0 %v2676
      %2784 = vmatmul.mubr.bf16.gmra.mxu0 %v2675
      %v2785 = vpop.f32.mrf.mxu0
      %v2786 = vadd.f32 0.0, %v2785
      %v2787 = vpop.f32.mrf.mxu0
      %v2788 = vpop.f32.mrf.mxu0
      %v2789 = vadd.f32 0.0, %v2788
      %v2790 = vpop.f32.mrf.mxu0
      %2791 = vmatprep.mubr.bf16.mxu0 %v2678
      %2792 = vmatmul.mubr.bf16.gmra.mxu0 %v2677
      %v2793 = vpop.f32.mrf.mxu0
      %v2794 = vadd.f32 0.0, %v2793
      %v2795 = vpop.f32.mrf.mxu0
      %v2796 = vpop.f32.mrf.mxu0
      %v2797 = vadd.f32 0.0, %v2796
      %v2798 = vpop.f32.mrf.mxu0
      %2799 = vmatprep.mubr.bf16.mxu0 %v2680
      %2800 = vmatmul.mubr.bf16.gmra.mxu0 %v2679
      %v2801 = vpop.f32.mrf.mxu0
      %v2802 = vadd.f32 0.0, %v2801
      %v2803 = vpop.f32.mrf.mxu0
      %v2804 = vpop.f32.mrf.mxu0
      %v2805 = vadd.f32 0.0, %v2804
      %v2806 = vpop.f32.mrf.mxu0
      %2807 = vmatprep.mubr.bf16.mxu0 %v2682
      %2808 = vmatmul.mubr.bf16.gmra.mxu0 %v2681
      %v2809 = vpop.f32.mrf.mxu0
      %v2810 = vadd.f32 0.0, %v2809
      %v2811 = vpop.f32.mrf.mxu0
      %v2812 = vpop.f32.mrf.mxu0
      %v2813 = vadd.f32 0.0, %v2812
      %v2814 = vpop.f32.mrf.mxu0
      %2815 = vmatprep.mubr.bf16.mxu0 %v2684
      %2816 = vmatmul.mubr.bf16.gmra.mxu0 %v2683
      %v2817 = vpop.f32.mrf.mxu0
      %v2818 = vadd.f32 0.0, %v2817
      %v2819 = vpop.f32.mrf.mxu0
      %v2820 = vpop.f32.mrf.mxu0
      %v2821 = vadd.f32 0.0, %v2820
      %v2822 = vpop.f32.mrf.mxu0
      %2823 = vmatprep.mubr.bf16.mxu0 %v2686
      %2824 = vmatmul.mubr.bf16.gmra.mxu0 %v2685
      %v2825 = vpop.f32.mrf.mxu0
      %v2826 = vadd.f32 0.0, %v2825
      %v2827 = vpop.f32.mrf.mxu0
      %v2828 = vpop.f32.mrf.mxu0
      %v2829 = vadd.f32 0.0, %v2828
      %v2830 = vpop.f32.mrf.mxu0
      %2831 = vmatprep.mubr.bf16.mxu0 %v2688
      %2832 = vmatmul.mubr.bf16.gmra.mxu0 %v2687
      %v2833 = vpop.f32.mrf.mxu0
      %v2834 = vadd.f32 0.0, %v2833
      %v2835 = vpop.f32.mrf.mxu0
      %v2836 = vpop.f32.mrf.mxu0
      %v2837 = vadd.f32 0.0, %v2836
      %v2838 = vpop.f32.mrf.mxu0
      %2839 = vmatprep.mubr.bf16.mxu0 %v2690
      %2840 = vmatmul.mubr.bf16.gmra.mxu0 %v2689
      %v2841 = vpop.f32.mrf.mxu0
      %v2842 = vadd.f32 0.0, %v2841
      %v2843 = vpop.f32.mrf.mxu0
      %v2844 = vpop.f32.mrf.mxu0
      %v2845 = vadd.f32 0.0, %v2844
      %v2846 = vpop.f32.mrf.mxu0
      %2847 = vmatprep.mubr.bf16.mxu0 %v2692
      %2848 = vmatmul.mubr.bf16.gmra.mxu0 %v2691
      %v2849 = vpop.f32.mrf.mxu0
      %v2850 = vadd.f32 0.0, %v2849
      %v2851 = vpop.f32.mrf.mxu0
      %v2852 = vpop.f32.mrf.mxu0
      %v2853 = vadd.f32 0.0, %v2852
      %v2854 = vpop.f32.mrf.mxu0
      %2855 = vmatprep.mubr.bf16.mxu0 %v2694
      %2856 = vmatmul.mubr.bf16.gmra.mxu0 %v2693
      %v2857 = vpop.f32.mrf.mxu0
      %v2858 = vadd.f32 0.0, %v2857
      %v2859 = vpop.f32.mrf.mxu0
      %v2860 = vpop.f32.mrf.mxu0
      %v2861 = vadd.f32 0.0, %v2860
      %v2862 = vpop.f32.mrf.mxu0
      %2863 = vmatprep.mubr.bf16.mxu0 %v2696
      %2864 = vmatmul.mubr.bf16.gmra.mxu0 %v2695
      %v2865 = vpop.f32.mrf.mxu0
      %v2866 = vadd.f32 0.0, %v2865
      %v2867 = vpop.f32.mrf.mxu0
      %v2868 = vpop.f32.mrf.mxu0
      %v2869 = vadd.f32 0.0, %v2868
      %v2870 = vpop.f32.mrf.mxu0
      %2871 = vmatprep.mubr.bf16.mxu0 %v2698
      %2872 = vmatmul.mubr.bf16.gmra.mxu0 %v2697
      %v2873 = vpop.f32.mrf.mxu0
      %v2874 = vadd.f32 0.0, %v2873
      %v2875 = vpop.f32.mrf.mxu0
      %v2876 = vpop.f32.mrf.mxu0
      %v2877 = vadd.f32 0.0, %v2876
      %v2878 = vpop.f32.mrf.mxu0
      %2879 = vmatprep.mubr.bf16.mxu0 %v2700
      %2880 = vmatmul.mubr.bf16.gmra.mxu0 %v2699
      %v2881 = vpop.f32.mrf.mxu0
      %v2882 = vadd.f32 0.0, %v2881
      %v2883 = vpop.f32.mrf.mxu0
      %v2884 = vpop.f32.mrf.mxu0
      %v2885 = vadd.f32 0.0, %v2884
      %v2886 = vpop.f32.mrf.mxu0
      %2887 = vmatprep.mubr.bf16.mxu0 %v2702
      %2888 = vmatmul.mubr.bf16.gmra.mxu0 %v2701
      %v2889 = vpop.f32.mrf.mxu0
      %v2890 = vadd.f32 0.0, %v2889
      %v2891 = vpop.f32.mrf.mxu0
      %v2892 = vpop.f32.mrf.mxu0
      %v2893 = vadd.f32 0.0, %v2892
      %v2894 = vpop.f32.mrf.mxu0
      %2895 = vdwg.mxu0
      %2896 = vmatprep.subr.bf16.mxu0 0
      %2897 = vmatpush1.bf16.msra.mxu0 %v2420
      %2898 = vmatprep.subr.bf16.mxu0 0
      %2899 = vmatpush1.bf16.msra.mxu0 %v2419
      %2900 = vmatprep.subr.bf16.mxu0 0
      %2901 = vmatpush1.bf16.msra.mxu0 %v2418
      %2902 = vmatprep.subr.bf16.mxu0 0
      %2903 = vmatpush1.bf16.msra.mxu0 %v2417
      %2904 = vmatprep.subr.bf16.mxu0 0
      %2905 = vmatpush1.bf16.msra.mxu0 %v2416
      %2906 = vmatprep.subr.bf16.mxu0 0
      %2907 = vmatpush1.bf16.msra.mxu0 %v2415
      %2908 = vmatprep.subr.bf16.mxu0 0
      %2909 = vmatpush1.bf16.msra.mxu0 %v2414
      %2910 = vmatprep.subr.bf16.mxu0 0
      %2911 = vmatpush1.bf16.msra.mxu0 %v2413
      %2912 = vmatprep.subr.bf16.mxu0 0
      %2913 = vmatpush2.bf16.msra.mxu0 %v2428
      %2914 = vmatprep.subr.bf16.mxu0 0
      %2915 = vmatpush2.bf16.msra.mxu0 %v2427
      %2916 = vmatprep.subr.bf16.mxu0 0
      %2917 = vmatpush2.bf16.msra.mxu0 %v2426
      %2918 = vmatprep.subr.bf16.mxu0 0
      %2919 = vmatpush2.bf16.msra.mxu0 %v2425
      %2920 = vmatprep.subr.bf16.mxu0 0
      %2921 = vmatpush2.bf16.msra.mxu0 %v2424
      %2922 = vmatprep.subr.bf16.mxu0 0
      %2923 = vmatpush2.bf16.msra.mxu0 %v2423
      %2924 = vmatprep.subr.bf16.mxu0 0
      %2925 = vmatpush2.bf16.msra.mxu0 %v2422
      %2926 = vmatprep.subr.bf16.mxu0 0
      %2927 = vmatpush2.bf16.msra.mxu0 %v2421
      %2928 = vmatprep.mubr.bf16.mxu0 %v2672
      %2929 = vmatmul.mubr.bf16.gmra.mxu0 %v2671
      %v2930 = vpop.f32.mrf.mxu0
      %v2931 = vadd.f32 %v2770, %v2930
      %v2932 = vpop.f32.mrf.mxu0
      %v2933 = vpop.f32.mrf.mxu0
      %v2934 = vadd.f32 %v2773, %v2933
      %v2935 = vpop.f32.mrf.mxu0
      %2936 = vmatprep.mubr.bf16.mxu0 %v2674
      %2937 = vmatmul.mubr.bf16.gmra.mxu0 %v2673
      %v2938 = vpop.f32.mrf.mxu0
      %v2939 = vadd.f32 %v2778, %v2938
      %v2940 = vpop.f32.mrf.mxu0
      %v2941 = vpop.f32.mrf.mxu0
      %v2942 = vadd.f32 %v2781, %v2941
      %v2943 = vpop.f32.mrf.mxu0
      %2944 = vmatprep.mubr.bf16.mxu0 %v2676
      %2945 = vmatmul.mubr.bf16.gmra.mxu0 %v2675
      %v2946 = vpop.f32.mrf.mxu0
      %v2947 = vadd.f32 %v2786, %v2946
      %v2948 = vpop.f32.mrf.mxu0
      %v2949 = vpop.f32.mrf.mxu0
      %v2950 = vadd.f32 %v2789, %v2949
      %v2951 = vpop.f32.mrf.mxu0
      %2952 = vmatprep.mubr.bf16.mxu0 %v2678
      %2953 = vmatmul.mubr.bf16.gmra.mxu0 %v2677
      %v2954 = vpop.f32.mrf.mxu0
      %v2955 = vadd.f32 %v2794, %v2954
      %v2956 = vpop.f32.mrf.mxu0
      %v2957 = vpop.f32.mrf.mxu0
      %v2958 = vadd.f32 %v2797, %v2957
      %v2959 = vpop.f32.mrf.mxu0
      %2960 = vmatprep.mubr.bf16.mxu0 %v2680
      %2961 = vmatmul.mubr.bf16.gmra.mxu0 %v2679
      %v2962 = vpop.f32.mrf.mxu0
      %v2963 = vadd.f32 %v2802, %v2962
      %v2964 = vpop.f32.mrf.mxu0
      %v2965 = vpop.f32.mrf.mxu0
      %v2966 = vadd.f32 %v2805, %v2965
      %v2967 = vpop.f32.mrf.mxu0
      %2968 = vmatprep.mubr.bf16.mxu0 %v2682
      %2969 = vmatmul.mubr.bf16.gmra.mxu0 %v2681
      %v2970 = vpop.f32.mrf.mxu0
      %v2971 = vadd.f32 %v2810, %v2970
      %v2972 = vpop.f32.mrf.mxu0
      %v2973 = vpop.f32.mrf.mxu0
      %v2974 = vadd.f32 %v2813, %v2973
      %v2975 = vpop.f32.mrf.mxu0
      %2976 = vmatprep.mubr.bf16.mxu0 %v2684
      %2977 = vmatmul.mubr.bf16.gmra.mxu0 %v2683
      %v2978 = vpop.f32.mrf.mxu0
      %v2979 = vadd.f32 %v2818, %v2978
      %v2980 = vpop.f32.mrf.mxu0
      %v2981 = vpop.f32.mrf.mxu0
      %v2982 = vadd.f32 %v2821, %v2981
      %v2983 = vpop.f32.mrf.mxu0
      %2984 = vmatprep.mubr.bf16.mxu0 %v2686
      %2985 = vmatmul.mubr.bf16.gmra.mxu0 %v2685
      %v2986 = vpop.f32.mrf.mxu0
      %v2987 = vadd.f32 %v2826, %v2986
      %v2988 = vpop.f32.mrf.mxu0
      %v2989 = vpop.f32.mrf.mxu0
      %v2990 = vadd.f32 %v2829, %v2989
      %v2991 = vpop.f32.mrf.mxu0
      %2992 = vmatprep.mubr.bf16.mxu0 %v2688
      %2993 = vmatmul.mubr.bf16.gmra.mxu0 %v2687
      %v2994 = vpop.f32.mrf.mxu0
      %v2995 = vadd.f32 %v2834, %v2994
      %v2996 = vpop.f32.mrf.mxu0
      %v2997 = vpop.f32.mrf.mxu0
      %v2998 = vadd.f32 %v2837, %v2997
      %v2999 = vpop.f32.mrf.mxu0
      %3000 = vmatprep.mubr.bf16.mxu0 %v2690
      %3001 = vmatmul.mubr.bf16.gmra.mxu0 %v2689
      %v3002 = vpop.f32.mrf.mxu0
      %v3003 = vadd.f32 %v2842, %v3002
      %v3004 = vpop.f32.mrf.mxu0
      %v3005 = vpop.f32.mrf.mxu0
      %v3006 = vadd.f32 %v2845, %v3005
      %v3007 = vpop.f32.mrf.mxu0
      %3008 = vmatprep.mubr.bf16.mxu0 %v2692
      %3009 = vmatmul.mubr.bf16.gmra.mxu0 %v2691
      %v3010 = vpop.f32.mrf.mxu0
      %v3011 = vadd.f32 %v2850, %v3010
      %v3012 = vpop.f32.mrf.mxu0
      %v3013 = vpop.f32.mrf.mxu0
      %v3014 = vadd.f32 %v2853, %v3013
      %v3015 = vpop.f32.mrf.mxu0
      %3016 = vmatprep.mubr.bf16.mxu0 %v2694
      %3017 = vmatmul.mubr.bf16.gmra.mxu0 %v2693
      %v3018 = vpop.f32.mrf.mxu0
      %v3019 = vadd.f32 %v2858, %v3018
      %v3020 = vpop.f32.mrf.mxu0
      %v3021 = vpop.f32.mrf.mxu0
      %v3022 = vadd.f32 %v2861, %v3021
      %v3023 = vpop.f32.mrf.mxu0
      %3024 = vmatprep.mubr.bf16.mxu0 %v2696
      %3025 = vmatmul.mubr.bf16.gmra.mxu0 %v2695
      %v3026 = vpop.f32.mrf.mxu0
      %v3027 = vadd.f32 %v2866, %v3026
      %v3028 = vpop.f32.mrf.mxu0
      %v3029 = vpop.f32.mrf.mxu0
      %v3030 = vadd.f32 %v2869, %v3029
      %v3031 = vpop.f32.mrf.mxu0
      %3032 = vmatprep.mubr.bf16.mxu0 %v2698
      %3033 = vmatmul.mubr.bf16.gmra.mxu0 %v2697
      %v3034 = vpop.f32.mrf.mxu0
      %v3035 = vadd.f32 %v2874, %v3034
      %v3036 = vpop.f32.mrf.mxu0
      %v3037 = vpop.f32.mrf.mxu0
      %v3038 = vadd.f32 %v2877, %v3037
      %v3039 = vpop.f32.mrf.mxu0
      %3040 = vmatprep.mubr.bf16.mxu0 %v2700
      %3041 = vmatmul.mubr.bf16.gmra.mxu0 %v2699
      %v3042 = vpop.f32.mrf.mxu0
      %v3043 = vadd.f32 %v2882, %v3042
      %v3044 = vpop.f32.mrf.mxu0
      %v3045 = vpop.f32.mrf.mxu0
      %v3046 = vadd.f32 %v2885, %v3045
      %v3047 = vpop.f32.mrf.mxu0
      %3048 = vmatprep.mubr.bf16.mxu0 %v2702
      %3049 = vmatmul.mubr.bf16.gmra.mxu0 %v2701
      %v3050 = vpop.f32.mrf.mxu0
      %v3051 = vadd.f32 %v2890, %v3050
      %v3052 = vpop.f32.mrf.mxu0
      %v3053 = vpop.f32.mrf.mxu0
      %v3054 = vadd.f32 %v2893, %v3053
      %v3055 = vpop.f32.mrf.mxu0
      %3056 = vdwg.mxu0
      %v3089 = vunpack.c.l.b16 %v2543
      %v3090 = vunpack.c.h.b16 %v2543
      %v3091 = vunpack.c.l.b16 %v2544
      %v3092 = vunpack.c.h.b16 %v2544
      %v3093 = vunpack.c.l.b16 %v2545
      %v3094 = vunpack.c.h.b16 %v2545
      %v3095 = vunpack.c.l.b16 %v2546
      %v3096 = vunpack.c.h.b16 %v2546
      %v3097 = vunpack.c.l.b16 %v2547
      %v3098 = vunpack.c.h.b16 %v2547
      %v3099 = vunpack.c.l.b16 %v2548
      %v3100 = vunpack.c.h.b16 %v2548
      %v3101 = vunpack.c.l.b16 %v2549
      %v3102 = vunpack.c.h.b16 %v2549
      %v3103 = vunpack.c.l.b16 %v2550
      %v3104 = vunpack.c.h.b16 %v2550
      %v3105 = vunpack.c.l.b16 %v2551
      %v3106 = vunpack.c.h.b16 %v2551
      %v3107 = vunpack.c.l.b16 %v2552
      %v3108 = vunpack.c.h.b16 %v2552
      %v3109 = vunpack.c.l.b16 %v2553
      %v3110 = vunpack.c.h.b16 %v2553
      %v3111 = vunpack.c.l.b16 %v2554
      %v3112 = vunpack.c.h.b16 %v2554
      %v3113 = vunpack.c.l.b16 %v2555
      %v3114 = vunpack.c.h.b16 %v2555
      %v3115 = vunpack.c.l.b16 %v2556
      %v3116 = vunpack.c.h.b16 %v2556
      %v3117 = vunpack.c.l.b16 %v2557
      %v3118 = vunpack.c.h.b16 %v2557
      %v3119 = vunpack.c.l.b16 %v2558
      %v3120 = vunpack.c.h.b16 %v2558
      %v3121 = vunpack.c.l.b16 %v2559
      %v3122 = vunpack.c.h.b16 %v2559
      %v3123 = vunpack.c.l.b16 %v2560
      %v3124 = vunpack.c.h.b16 %v2560
      %v3125 = vunpack.c.l.b16 %v2561
      %v3126 = vunpack.c.h.b16 %v2561
      %v3127 = vunpack.c.l.b16 %v2562
      %v3128 = vunpack.c.h.b16 %v2562
      %v3129 = vunpack.c.l.b16 %v2563
      %v3130 = vunpack.c.h.b16 %v2563
      %v3131 = vunpack.c.l.b16 %v2564
      %v3132 = vunpack.c.h.b16 %v2564
      %v3133 = vunpack.c.l.b16 %v2565
      %v3134 = vunpack.c.h.b16 %v2565
      %v3135 = vunpack.c.l.b16 %v2566
      %v3136 = vunpack.c.h.b16 %v2566
      %v3137 = vunpack.c.l.b16 %v2567
      %v3138 = vunpack.c.h.b16 %v2567
      %v3139 = vunpack.c.l.b16 %v2568
      %v3140 = vunpack.c.h.b16 %v2568
      %v3141 = vunpack.c.l.b16 %v2569
      %v3142 = vunpack.c.h.b16 %v2569
      %v3143 = vunpack.c.l.b16 %v2570
      %v3144 = vunpack.c.h.b16 %v2570
      %v3145 = vunpack.c.l.b16 %v2571
      %v3146 = vunpack.c.h.b16 %v2571
      %v3147 = vunpack.c.l.b16 %v2572
      %v3148 = vunpack.c.h.b16 %v2572
      %v3149 = vunpack.c.l.b16 %v2573
      %v3150 = vunpack.c.h.b16 %v2573
      %v3151 = vunpack.c.l.b16 %v2574
      %v3152 = vunpack.c.h.b16 %v2574
      %v3153 = vpack.c.b16 %v3091, %v3089
      %v3154 = vpack.c.b16 %v3092, %v3090
      %v3155 = vpack.c.b16 %v3095, %v3093
      %v3156 = vpack.c.b16 %v3096, %v3094
      %v3157 = vpack.c.b16 %v3099, %v3097
      %v3158 = vpack.c.b16 %v3100, %v3098
      %v3159 = vpack.c.b16 %v3103, %v3101
      %v3160 = vpack.c.b16 %v3104, %v3102
      %v3161 = vpack.c.b16 %v3107, %v3105
      %v3162 = vpack.c.b16 %v3108, %v3106
      %v3163 = vpack.c.b16 %v3111, %v3109
      %v3164 = vpack.c.b16 %v3112, %v3110
      %v3165 = vpack.c.b16 %v3115, %v3113
      %v3166 = vpack.c.b16 %v3116, %v3114
      %v3167 = vpack.c.b16 %v3119, %v3117
      %v3168 = vpack.c.b16 %v3120, %v3118
      %v3169 = vpack.c.b16 %v3123, %v3121
      %v3170 = vpack.c.b16 %v3124, %v3122
      %v3171 = vpack.c.b16 %v3127, %v3125
      %v3172 = vpack.c.b16 %v3128, %v3126
      %v3173 = vpack.c.b16 %v3131, %v3129
      %v3174 = vpack.c.b16 %v3132, %v3130
      %v3175 = vpack.c.b16 %v3135, %v3133
      %v3176 = vpack.c.b16 %v3136, %v3134
      %v3177 = vpack.c.b16 %v3139, %v3137
      %v3178 = vpack.c.b16 %v3140, %v3138
      %v3179 = vpack.c.b16 %v3143, %v3141
      %v3180 = vpack.c.b16 %v3144, %v3142
      %v3181 = vpack.c.b16 %v3147, %v3145
      %v3182 = vpack.c.b16 %v3148, %v3146
      %v3183 = vpack.c.b16 %v3151, %v3149
      %v3184 = vpack.c.b16 %v3152, %v3150
      %3217 = vmatprep.subr.bf16.mxu0 0
      %3218 = vmatpush1.bf16.msra.mxu0 %v2420
      %3219 = vmatprep.subr.bf16.mxu0 0
      %3220 = vmatpush1.bf16.msra.mxu0 %v2419
      %3221 = vmatprep.subr.bf16.mxu0 0
      %3222 = vmatpush1.bf16.msra.mxu0 %v2418
      %3223 = vmatprep.subr.bf16.mxu0 0
      %3224 = vmatpush1.bf16.msra.mxu0 %v2417
      %3225 = vmatprep.subr.bf16.mxu0 0
      %3226 = vmatpush1.bf16.msra.mxu0 %v2416
      %3227 = vmatprep.subr.bf16.mxu0 0
      %3228 = vmatpush1.bf16.msra.mxu0 %v2415
      %3229 = vmatprep.subr.bf16.mxu0 0
      %3230 = vmatpush1.bf16.msra.mxu0 %v2414
      %3231 = vmatprep.subr.bf16.mxu0 0
      %3232 = vmatpush1.bf16.msra.mxu0 %v2413
      %3233 = vmatprep.subr.bf16.mxu0 0
      %3234 = vmatpush2.bf16.msra.mxu0 %v2428
      %3235 = vmatprep.subr.bf16.mxu0 0
      %3236 = vmatpush2.bf16.msra.mxu0 %v2427
      %3237 = vmatprep.subr.bf16.mxu0 0
      %3238 = vmatpush2.bf16.msra.mxu0 %v2426
      %3239 = vmatprep.subr.bf16.mxu0 0
      %3240 = vmatpush2.bf16.msra.mxu0 %v2425
      %3241 = vmatprep.subr.bf16.mxu0 0
      %3242 = vmatpush2.bf16.msra.mxu0 %v2424
      %3243 = vmatprep.subr.bf16.mxu0 0
      %3244 = vmatpush2.bf16.msra.mxu0 %v2423
      %3245 = vmatprep.subr.bf16.mxu0 0
      %3246 = vmatpush2.bf16.msra.mxu0 %v2422
      %3247 = vmatprep.subr.bf16.mxu0 0
      %3248 = vmatpush2.bf16.msra.mxu0 %v2421
      %3249 = vmatprep.mubr.bf16.mxu0 %v3154
      %3250 = vmatmul.mubr.bf16.gmra.mxu0 %v3153
      %v3251 = vpop.f32.mrf.mxu0
      %v3252 = vadd.f32 0.0, %v3251
      %v3253 = vpop.f32.mrf.mxu0
      %v3254 = vpop.f32.mrf.mxu0
      %v3255 = vadd.f32 0.0, %v3254
      %v3256 = vpop.f32.mrf.mxu0
      %3257 = vmatprep.mubr.bf16.mxu0 %v3156
      %3258 = vmatmul.mubr.bf16.gmra.mxu0 %v3155
      %v3259 = vpop.f32.mrf.mxu0
      %v3260 = vadd.f32 0.0, %v3259
      %v3261 = vpop.f32.mrf.mxu0
      %v3262 = vpop.f32.mrf.mxu0
      %v3263 = vadd.f32 0.0, %v3262
      %v3264 = vpop.f32.mrf.mxu0
      %3265 = vmatprep.mubr.bf16.mxu0 %v3158
      %3266 = vmatmul.mubr.bf16.gmra.mxu0 %v3157
      %v3267 = vpop.f32.mrf.mxu0
      %v3268 = vadd.f32 0.0, %v3267
      %v3269 = vpop.f32.mrf.mxu0
      %v3270 = vpop.f32.mrf.mxu0
      %v3271 = vadd.f32 0.0, %v3270
      %v3272 = vpop.f32.mrf.mxu0
      %3273 = vmatprep.mubr.bf16.mxu0 %v3160
      %3274 = vmatmul.mubr.bf16.gmra.mxu0 %v3159
      %v3275 = vpop.f32.mrf.mxu0
      %v3276 = vadd.f32 0.0, %v3275
      %v3277 = vpop.f32.mrf.mxu0
      %v3278 = vpop.f32.mrf.mxu0
      %v3279 = vadd.f32 0.0, %v3278
      %v3280 = vpop.f32.mrf.mxu0
      %3281 = vmatprep.mubr.bf16.mxu0 %v3162
      %3282 = vmatmul.mubr.bf16.gmra.mxu0 %v3161
      %v3283 = vpop.f32.mrf.mxu0
      %v3284 = vadd.f32 0.0, %v3283
      %v3285 = vpop.f32.mrf.mxu0
      %v3286 = vpop.f32.mrf.mxu0
      %v3287 = vadd.f32 0.0, %v3286
      %v3288 = vpop.f32.mrf.mxu0
      %3289 = vmatprep.mubr.bf16.mxu0 %v3164
      %3290 = vmatmul.mubr.bf16.gmra.mxu0 %v3163
      %v3291 = vpop.f32.mrf.mxu0
      %v3292 = vadd.f32 0.0, %v3291
      %v3293 = vpop.f32.mrf.mxu0
      %v3294 = vpop.f32.mrf.mxu0
      %v3295 = vadd.f32 0.0, %v3294
      %v3296 = vpop.f32.mrf.mxu0
      %3297 = vmatprep.mubr.bf16.mxu0 %v3166
      %3298 = vmatmul.mubr.bf16.gmra.mxu0 %v3165
      %v3299 = vpop.f32.mrf.mxu0
      %v3300 = vadd.f32 0.0, %v3299
      %v3301 = vpop.f32.mrf.mxu0
      %v3302 = vpop.f32.mrf.mxu0
      %v3303 = vadd.f32 0.0, %v3302
      %v3304 = vpop.f32.mrf.mxu0
      %3305 = vmatprep.mubr.bf16.mxu0 %v3168
      %3306 = vmatmul.mubr.bf16.gmra.mxu0 %v3167
      %v3307 = vpop.f32.mrf.mxu0
      %v3308 = vadd.f32 0.0, %v3307
      %v3309 = vpop.f32.mrf.mxu0
      %v3310 = vpop.f32.mrf.mxu0
      %v3311 = vadd.f32 0.0, %v3310
      %v3312 = vpop.f32.mrf.mxu0
      %3313 = vmatprep.mubr.bf16.mxu0 %v3170
      %3314 = vmatmul.mubr.bf16.gmra.mxu0 %v3169
      %v3315 = vpop.f32.mrf.mxu0
      %v3316 = vadd.f32 0.0, %v3315
      %v3317 = vpop.f32.mrf.mxu0
      %v3318 = vpop.f32.mrf.mxu0
      %v3319 = vadd.f32 0.0, %v3318
      %v3320 = vpop.f32.mrf.mxu0
      %3321 = vmatprep.mubr.bf16.mxu0 %v3172
      %3322 = vmatmul.mubr.bf16.gmra.mxu0 %v3171
      %v3323 = vpop.f32.mrf.mxu0
      %v3324 = vadd.f32 0.0, %v3323
      %v3325 = vpop.f32.mrf.mxu0
      %v3326 = vpop.f32.mrf.mxu0
      %v3327 = vadd.f32 0.0, %v3326
      %v3328 = vpop.f32.mrf.mxu0
      %3329 = vmatprep.mubr.bf16.mxu0 %v3174
      %3330 = vmatmul.mubr.bf16.gmra.mxu0 %v3173
      %v3331 = vpop.f32.mrf.mxu0
      %v3332 = vadd.f32 0.0, %v3331
      %v3333 = vpop.f32.mrf.mxu0
      %v3334 = vpop.f32.mrf.mxu0
      %v3335 = vadd.f32 0.0, %v3334
      %v3336 = vpop.f32.mrf.mxu0
      %3337 = vmatprep.mubr.bf16.mxu0 %v3176
      %3338 = vmatmul.mubr.bf16.gmra.mxu0 %v3175
      %v3339 = vpop.f32.mrf.mxu0
      %v3340 = vadd.f32 0.0, %v3339
      %v3341 = vpop.f32.mrf.mxu0
      %v3342 = vpop.f32.mrf.mxu0
      %v3343 = vadd.f32 0.0, %v3342
      %v3344 = vpop.f32.mrf.mxu0
      %3345 = vmatprep.mubr.bf16.mxu0 %v3178
      %3346 = vmatmul.mubr.bf16.gmra.mxu0 %v3177
      %v3347 = vpop.f32.mrf.mxu0
      %v3348 = vadd.f32 0.0, %v3347
      %v3349 = vpop.f32.mrf.mxu0
      %v3350 = vpop.f32.mrf.mxu0
      %v3351 = vadd.f32 0.0, %v3350
      %v3352 = vpop.f32.mrf.mxu0
      %3353 = vmatprep.mubr.bf16.mxu0 %v3180
      %3354 = vmatmul.mubr.bf16.gmra.mxu0 %v3179
      %v3355 = vpop.f32.mrf.mxu0
      %v3356 = vadd.f32 0.0, %v3355
      %v3357 = vpop.f32.mrf.mxu0
      %v3358 = vpop.f32.mrf.mxu0
      %v3359 = vadd.f32 0.0, %v3358
      %v3360 = vpop.f32.mrf.mxu0
      %3361 = vmatprep.mubr.bf16.mxu0 %v3182
      %3362 = vmatmul.mubr.bf16.gmra.mxu0 %v3181
      %v3363 = vpop.f32.mrf.mxu0
      %v3364 = vadd.f32 0.0, %v3363
      %v3365 = vpop.f32.mrf.mxu0
      %v3366 = vpop.f32.mrf.mxu0
      %v3367 = vadd.f32 0.0, %v3366
      %v3368 = vpop.f32.mrf.mxu0
      %3369 = vmatprep.mubr.bf16.mxu0 %v3184
      %3370 = vmatmul.mubr.bf16.gmra.mxu0 %v3183
      %v3371 = vpop.f32.mrf.mxu0
      %v3372 = vadd.f32 0.0, %v3371
      %v3373 = vpop.f32.mrf.mxu0
      %v3374 = vpop.f32.mrf.mxu0
      %v3375 = vadd.f32 0.0, %v3374
      %v3376 = vpop.f32.mrf.mxu0
      %3377 = vdwg.mxu0
      %v3378 = vadd.f32 %v2931, %v3252
      %v3379 = vadd.f32 %v2934, %v3255
      %v3380 = vadd.f32 %v2939, %v3260
      %v3381 = vadd.f32 %v2942, %v3263
      %v3382 = vadd.f32 %v2947, %v3268
      %v3383 = vadd.f32 %v2950, %v3271
      %v3384 = vadd.f32 %v2955, %v3276
      %v3385 = vadd.f32 %v2958, %v3279
      %v3386 = vadd.f32 %v2963, %v3284
      %v3387 = vadd.f32 %v2966, %v3287
      %v3388 = vadd.f32 %v2971, %v3292
      %v3389 = vadd.f32 %v2974, %v3295
      %v3390 = vadd.f32 %v2979, %v3300
      %v3391 = vadd.f32 %v2982, %v3303
      %v3392 = vadd.f32 %v2987, %v3308
      %v3393 = vadd.f32 %v2990, %v3311
      %v3394 = vadd.f32 %v2995, %v3316
      %v3395 = vadd.f32 %v2998, %v3319
      %v3396 = vadd.f32 %v3003, %v3324
      %v3397 = vadd.f32 %v3006, %v3327
      %v3398 = vadd.f32 %v3011, %v3332
      %v3399 = vadd.f32 %v3014, %v3335
      %v3400 = vadd.f32 %v3019, %v3340
      %v3401 = vadd.f32 %v3022, %v3343
      %v3402 = vadd.f32 %v3027, %v3348
      %v3403 = vadd.f32 %v3030, %v3351
      %v3404 = vadd.f32 %v3035, %v3356
      %v3405 = vadd.f32 %v3038, %v3359
      %v3406 = vadd.f32 %v3043, %v3364
      %v3407 = vadd.f32 %v3046, %v3367
      %v3408 = vadd.f32 %v3051, %v3372
      %v3409 = vadd.f32 %v3054, %v3375
      %3410 = vst [vmem:[#allocation3] sm:$0xff] %v3378
      %3411 = vst [vmem:[#allocation3 + $0x10] sm:$0xff] %v3379
      %3412 = vst [vmem:[#allocation3 + $0x20] sm:$0xff] %v3380
      %3413 = vst [vmem:[#allocation3 + $0x30] sm:$0xff] %v3381
      %3414 = vst [vmem:[#allocation3 + $0x40] sm:$0xff] %v3382
      %3415 = vst [vmem:[#allocation3 + $0x50] sm:$0xff] %v3383
      %3416 = vst [vmem:[#allocation3 + $0x60] sm:$0xff] %v3384
      %3417 = vst [vmem:[#allocation3 + $0x70] sm:$0xff] %v3385
      %3418 = vst [vmem:[#allocation3 + $0x80] sm:$0xff] %v3386
      %3419 = vst [vmem:[#allocation3 + $0x90] sm:$0xff] %v3387
      %3420 = vst [vmem:[#allocation3 + $0xa0] sm:$0xff] %v3388
      %3421 = vst [vmem:[#allocation3 + $0xb0] sm:$0xff] %v3389
      %3422 = vst [vmem:[#allocation3 + $0xc0] sm:$0xff] %v3390
      %3423 = vst [vmem:[#allocation3 + $0xd0] sm:$0xff] %v3391
      %3424 = vst [vmem:[#allocation3 + $0xe0] sm:$0xff] %v3392
      %3425 = vst [vmem:[#allocation3 + $0xf0] sm:$0xff] %v3393
      %3426 = vst [vmem:[#allocation3 + $0x8] sm:$0xff] %v3394
      %3427 = vst [vmem:[#allocation3 + $0x18] sm:$0xff] %v3395
      %3428 = vst [vmem:[#allocation3 + $0x28] sm:$0xff] %v3396
      %3429 = vst [vmem:[#allocation3 + $0x38] sm:$0xff] %v3397
      %3430 = vst [vmem:[#allocation3 + $0x48] sm:$0xff] %v3398
      %3431 = vst [vmem:[#allocation3 + $0x58] sm:$0xff] %v3399
      %3432 = vst [vmem:[#allocation3 + $0x68] sm:$0xff] %v3400
      %3433 = vst [vmem:[#allocation3 + $0x78] sm:$0xff] %v3401
      %3434 = vst [vmem:[#allocation3 + $0x88] sm:$0xff] %v3402
      %3435 = vst [vmem:[#allocation3 + $0x98] sm:$0xff] %v3403
      %3436 = vst [vmem:[#allocation3 + $0xa8] sm:$0xff] %v3404
      %3437 = vst [vmem:[#allocation3 + $0xb8] sm:$0xff] %v3405
      %3438 = vst [vmem:[#allocation3 + $0xc8] sm:$0xff] %v3406
      %3439 = vst [vmem:[#allocation3 + $0xd8] sm:$0xff] %v3407
      %3440 = vst [vmem:[#allocation3 + $0xe8] sm:$0xff] %v3408
      %3441 = vst [vmem:[#allocation3 + $0xf8] sm:$0xff] %v3409
      %v3442 = vld [vmem:[#allocation3] sm:$0xff]
      %v3443 = vld [vmem:[#allocation3 + $0x8] sm:$0xff]
      %v3444 = vld [vmem:[#allocation3 + $0x10] sm:$0xff]
      %v3445 = vld [vmem:[#allocation3 + $0x18] sm:$0xff]
      %v3446 = vld [vmem:[#allocation3 + $0x20] sm:$0xff]
      %v3447 = vld [vmem:[#allocation3 + $0x28] sm:$0xff]
      %v3448 = vld [vmem:[#allocation3 + $0x30] sm:$0xff]
      %v3449 = vld [vmem:[#allocation3 + $0x38] sm:$0xff]
      %v3450 = vld [vmem:[#allocation3 + $0x40] sm:$0xff]
      %v3451 = vld [vmem:[#allocation3 + $0x48] sm:$0xff]
      %v3452 = vld [vmem:[#allocation3 + $0x50] sm:$0xff]
      %v3453 = vld [vmem:[#allocation3 + $0x58] sm:$0xff]
      %v3454 = vld [vmem:[#allocation3 + $0x60] sm:$0xff]
      %v3455 = vld [vmem:[#allocation3 + $0x68] sm:$0xff]
      %v3456 = vld [vmem:[#allocation3 + $0x70] sm:$0xff]
      %v3457 = vld [vmem:[#allocation3 + $0x78] sm:$0xff]
      %v3458 = vld [vmem:[#allocation3 + $0x80] sm:$0xff]
      %v3459 = vld [vmem:[#allocation3 + $0x88] sm:$0xff]
      %v3460 = vld [vmem:[#allocation3 + $0x90] sm:$0xff]
      %v3461 = vld [vmem:[#allocation3 + $0x98] sm:$0xff]
      %v3462 = vld [vmem:[#allocation3 + $0xa0] sm:$0xff]
      %v3463 = vld [vmem:[#allocation3 + $0xa8] sm:$0xff]
      %v3464 = vld [vmem:[#allocation3 + $0xb0] sm:$0xff]
      %v3465 = vld [vmem:[#allocation3 + $0xb8] sm:$0xff]
      %v3466 = vld [vmem:[#allocation3 + $0xc0] sm:$0xff]
      %v3467 = vld [vmem:[#allocation3 + $0xc8] sm:$0xff]
      %v3468 = vld [vmem:[#allocation3 + $0xd0] sm:$0xff]
      %v3469 = vld [vmem:[#allocation3 + $0xd8] sm:$0xff]
      %v3470 = vld [vmem:[#allocation3 + $0xe0] sm:$0xff]
      %v3471 = vld [vmem:[#allocation3 + $0xe8] sm:$0xff]
      %v3472 = vld [vmem:[#allocation3 + $0xf0] sm:$0xff]
      %v3473 = vld [vmem:[#allocation3 + $0xf8] sm:$0xff]
      %v3474 = vpack.c.bf16 %v3444, %v3442
      %v3475 = vpack.c.bf16 %v3445, %v3443
      %v3476 = vpack.c.bf16 %v3448, %v3446
      %v3477 = vpack.c.bf16 %v3449, %v3447
      %v3478 = vpack.c.bf16 %v3452, %v3450
      %v3479 = vpack.c.bf16 %v3453, %v3451
      %v3480 = vpack.c.bf16 %v3456, %v3454
      %v3481 = vpack.c.bf16 %v3457, %v3455
      %v3482 = vpack.c.bf16 %v3460, %v3458
      %v3483 = vpack.c.bf16 %v3461, %v3459
      %v3484 = vpack.c.bf16 %v3464, %v3462
      %v3485 = vpack.c.bf16 %v3465, %v3463
      %v3486 = vpack.c.bf16 %v3468, %v3466
      %v3487 = vpack.c.bf16 %v3469, %v3467
      %v3488 = vpack.c.bf16 %v3472, %v3470
      %v3489 = vpack.c.bf16 %v3473, %v3471
      %v3490 = vunpack.c.l.bf16 %v3474
      %v3491 = vunpack.c.l.bf16 %v3475
      %v3492 = vunpack.c.h.bf16 %v3474
      %v3493 = vunpack.c.h.bf16 %v3475
      %v3494 = vunpack.c.l.bf16 %v3476
      %v3495 = vunpack.c.l.bf16 %v3477
      %v3496 = vunpack.c.h.bf16 %v3476
      %v3497 = vunpack.c.h.bf16 %v3477
      %v3498 = vunpack.c.l.bf16 %v3478
      %v3499 = vunpack.c.l.bf16 %v3479
      %v3500 = vunpack.c.h.bf16 %v3478
      %v3501 = vunpack.c.h.bf16 %v3479
      %v3502 = vunpack.c.l.bf16 %v3480
      %v3503 = vunpack.c.l.bf16 %v3481
      %v3504 = vunpack.c.h.bf16 %v3480
      %v3505 = vunpack.c.h.bf16 %v3481
      %v3506 = vunpack.c.l.bf16 %v3482
      %v3507 = vunpack.c.l.bf16 %v3483
      %v3508 = vunpack.c.h.bf16 %v3482
      %v3509 = vunpack.c.h.bf16 %v3483
      %v3510 = vunpack.c.l.bf16 %v3484
      %v3511 = vunpack.c.l.bf16 %v3485
      %v3512 = vunpack.c.h.bf16 %v3484
      %v3513 = vunpack.c.h.bf16 %v3485
      %v3514 = vunpack.c.l.bf16 %v3486
      %v3515 = vunpack.c.l.bf16 %v3487
      %v3516 = vunpack.c.h.bf16 %v3486
      %v3517 = vunpack.c.h.bf16 %v3487
      %v3518 = vunpack.c.l.bf16 %v3488
      %v3519 = vunpack.c.l.bf16 %v3489
      %v3520 = vunpack.c.h.bf16 %v3488
      %v3521 = vunpack.c.h.bf16 %v3489
      %v3522 = vsub.f32 %v3442, %v3490
      %v3523 = vsub.f32 %v3443, %v3491
      %v3524 = vsub.f32 %v3444, %v3492
      %v3525 = vsub.f32 %v3445, %v3493
      %v3526 = vsub.f32 %v3446, %v3494
      %v3527 = vsub.f32 %v3447, %v3495
      %v3528 = vsub.f32 %v3448, %v3496
      %v3529 = vsub.f32 %v3449, %v3497
      %v3530 = vsub.f32 %v3450, %v3498
      %v3531 = vsub.f32 %v3451, %v3499
      %v3532 = vsub.f32 %v3452, %v3500
      %v3533 = vsub.f32 %v3453, %v3501
      %v3534 = vsub.f32 %v3454, %v3502
      %v3535 = vsub.f32 %v3455, %v3503
      %v3536 = vsub.f32 %v3456, %v3504
      %v3537 = vsub.f32 %v3457, %v3505
      %v3538 = vsub.f32 %v3458, %v3506
      %v3539 = vsub.f32 %v3459, %v3507
      %v3540 = vsub.f32 %v3460, %v3508
      %v3541 = vsub.f32 %v3461, %v3509
      %v3542 = vsub.f32 %v3462, %v3510
      %v3543 = vsub.f32 %v3463, %v3511
      %v3544 = vsub.f32 %v3464, %v3512
      %v3545 = vsub.f32 %v3465, %v3513
      %v3546 = vsub.f32 %v3466, %v3514
      %v3547 = vsub.f32 %v3467, %v3515
      %v3548 = vsub.f32 %v3468, %v3516
      %v3549 = vsub.f32 %v3469, %v3517
      %v3550 = vsub.f32 %v3470, %v3518
      %v3551 = vsub.f32 %v3471, %v3519
      %v3552 = vsub.f32 %v3472, %v3520
      %v3553 = vsub.f32 %v3473, %v3521
      %v3554 = vpack.c.bf16 %v3524, %v3522
      %v3555 = vpack.c.bf16 %v3525, %v3523
      %v3556 = vpack.c.bf16 %v3528, %v3526
      %v3557 = vpack.c.bf16 %v3529, %v3527
      %v3558 = vpack.c.bf16 %v3532, %v3530
      %v3559 = vpack.c.bf16 %v3533, %v3531
      %v3560 = vpack.c.bf16 %v3536, %v3534
      %v3561 = vpack.c.bf16 %v3537, %v3535
      %v3562 = vpack.c.bf16 %v3540, %v3538
      %v3563 = vpack.c.bf16 %v3541, %v3539
      %v3564 = vpack.c.bf16 %v3544, %v3542
      %v3565 = vpack.c.bf16 %v3545, %v3543
      %v3566 = vpack.c.bf16 %v3548, %v3546
      %v3567 = vpack.c.bf16 %v3549, %v3547
      %v3568 = vpack.c.bf16 %v3552, %v3550
      %v3569 = vpack.c.bf16 %v3553, %v3551
      %s3570 = scalar_lea.vmem %s0, 1536
      %v3571 = vld [vmem:[%s3570] sm:$0xff]
      %v3572 = vld [vmem:[%s3570 + $0x8] sm:$0xff]
      %v3573 = vld [vmem:[%s3570 + $0x10] sm:$0xff]
      %v3574 = vld [vmem:[%s3570 + $0x18] sm:$0xff]
      %v3575 = vld [vmem:[%s3570 + $0x20] sm:$0xff]
      %v3576 = vld [vmem:[%s3570 + $0x28] sm:$0xff]
      %v3577 = vld [vmem:[%s3570 + $0x30] sm:$0xff]
      %v3578 = vld [vmem:[%s3570 + $0x38] sm:$0xff]
      %v3579 = vld [vmem:[%s3570 + $0x40] sm:$0xff]
      %v3580 = vld [vmem:[%s3570 + $0x48] sm:$0xff]
      %v3581 = vld [vmem:[%s3570 + $0x50] sm:$0xff]
      %v3582 = vld [vmem:[%s3570 + $0x58] sm:$0xff]
      %v3583 = vld [vmem:[%s3570 + $0x60] sm:$0xff]
      %v3584 = vld [vmem:[%s3570 + $0x68] sm:$0xff]
      %v3585 = vld [vmem:[%s3570 + $0x70] sm:$0xff]
      %v3586 = vld [vmem:[%s3570 + $0x78] sm:$0xff]
      %v3587 = vld [vmem:[%s3570 + $0x80] sm:$0xff]
      %v3588 = vld [vmem:[%s3570 + $0x88] sm:$0xff]
      %v3589 = vld [vmem:[%s3570 + $0x90] sm:$0xff]
      %v3590 = vld [vmem:[%s3570 + $0x98] sm:$0xff]
      %v3591 = vld [vmem:[%s3570 + $0xa0] sm:$0xff]
      %v3592 = vld [vmem:[%s3570 + $0xa8] sm:$0xff]
      %v3593 = vld [vmem:[%s3570 + $0xb0] sm:$0xff]
      %v3594 = vld [vmem:[%s3570 + $0xb8] sm:$0xff]
      %v3595 = vld [vmem:[%s3570 + $0xc0] sm:$0xff]
      %v3596 = vld [vmem:[%s3570 + $0xc8] sm:$0xff]
      %v3597 = vld [vmem:[%s3570 + $0xd0] sm:$0xff]
      %v3598 = vld [vmem:[%s3570 + $0xd8] sm:$0xff]
      %v3599 = vld [vmem:[%s3570 + $0xe0] sm:$0xff]
      %v3600 = vld [vmem:[%s3570 + $0xe8] sm:$0xff]
      %v3601 = vld [vmem:[%s3570 + $0xf0] sm:$0xff]
      %v3602 = vld [vmem:[%s3570 + $0xf8] sm:$0xff]
      %s3603 = scalar_lea.vmem %s0, 1792
      %v3604 = vld [vmem:[%s3603] sm:$0xff]
      %v3605 = vld [vmem:[%s3603 + $0x8] sm:$0xff]
      %v3606 = vld [vmem:[%s3603 + $0x10] sm:$0xff]
      %v3607 = vld [vmem:[%s3603 + $0x18] sm:$0xff]
      %v3608 = vld [vmem:[%s3603 + $0x20] sm:$0xff]
      %v3609 = vld [vmem:[%s3603 + $0x28] sm:$0xff]
      %v3610 = vld [vmem:[%s3603 + $0x30] sm:$0xff]
      %v3611 = vld [vmem:[%s3603 + $0x38] sm:$0xff]
      %v3612 = vld [vmem:[%s3603 + $0x40] sm:$0xff]
      %v3613 = vld [vmem:[%s3603 + $0x48] sm:$0xff]
      %v3614 = vld [vmem:[%s3603 + $0x50] sm:$0xff]
      %v3615 = vld [vmem:[%s3603 + $0x58] sm:$0xff]
      %v3616 = vld [vmem:[%s3603 + $0x60] sm:$0xff]
      %v3617 = vld [vmem:[%s3603 + $0x68] sm:$0xff]
      %v3618 = vld [vmem:[%s3603 + $0x70] sm:$0xff]
      %v3619 = vld [vmem:[%s3603 + $0x78] sm:$0xff]
      %v3620 = vld [vmem:[%s3603 + $0x80] sm:$0xff]
      %v3621 = vld [vmem:[%s3603 + $0x88] sm:$0xff]
      %v3622 = vld [vmem:[%s3603 + $0x90] sm:$0xff]
      %v3623 = vld [vmem:[%s3603 + $0x98] sm:$0xff]
      %v3624 = vld [vmem:[%s3603 + $0xa0] sm:$0xff]
      %v3625 = vld [vmem:[%s3603 + $0xa8] sm:$0xff]
      %v3626 = vld [vmem:[%s3603 + $0xb0] sm:$0xff]
      %v3627 = vld [vmem:[%s3603 + $0xb8] sm:$0xff]
      %v3628 = vld [vmem:[%s3603 + $0xc0] sm:$0xff]
      %v3629 = vld [vmem:[%s3603 + $0xc8] sm:$0xff]
      %v3630 = vld [vmem:[%s3603 + $0xd0] sm:$0xff]
      %v3631 = vld [vmem:[%s3603 + $0xd8] sm:$0xff]
      %v3632 = vld [vmem:[%s3603 + $0xe0] sm:$0xff]
      %v3633 = vld [vmem:[%s3603 + $0xe8] sm:$0xff]
      %v3634 = vld [vmem:[%s3603 + $0xf0] sm:$0xff]
      %v3635 = vld [vmem:[%s3603 + $0xf8] sm:$0xff]
      %v3668 = vunpack.c.l.b16 %v3604
      %v3669 = vunpack.c.h.b16 %v3604
      %v3670 = vunpack.c.l.b16 %v3605
      %v3671 = vunpack.c.h.b16 %v3605
      %v3672 = vunpack.c.l.b16 %v3606
      %v3673 = vunpack.c.h.b16 %v3606
      %v3674 = vunpack.c.l.b16 %v3607
      %v3675 = vunpack.c.h.b16 %v3607
      %v3676 = vunpack.c.l.b16 %v3608
      %v3677 = vunpack.c.h.b16 %v3608
      %v3678 = vunpack.c.l.b16 %v3609
      %v3679 = vunpack.c.h.b16 %v3609
      %v3680 = vunpack.c.l.b16 %v3610
      %v3681 = vunpack.c.h.b16 %v3610
      %v3682 = vunpack.c.l.b16 %v3611
      %v3683 = vunpack.c.h.b16 %v3611
      %v3684 = vunpack.c.l.b16 %v3612
      %v3685 = vunpack.c.h.b16 %v3612
      %v3686 = vunpack.c.l.b16 %v3613
      %v3687 = vunpack.c.h.b16 %v3613
      %v3688 = vunpack.c.l.b16 %v3614
      %v3689 = vunpack.c.h.b16 %v3614
      %v3690 = vunpack.c.l.b16 %v3615
      %v3691 = vunpack.c.h.b16 %v3615
      %v3692 = vunpack.c.l.b16 %v3616
      %v3693 = vunpack.c.h.b16 %v3616
      %v3694 = vunpack.c.l.b16 %v3617
      %v3695 = vunpack.c.h.b16 %v3617
      %v3696 = vunpack.c.l.b16 %v3618
      %v3697 = vunpack.c.h.b16 %v3618
      %v3698 = vunpack.c.l.b16 %v3619
      %v3699 = vunpack.c.h.b16 %v3619
      %v3700 = vunpack.c.l.b16 %v3620
      %v3701 = vunpack.c.h.b16 %v3620
      %v3702 = vunpack.c.l.b16 %v3621
      %v3703 = vunpack.c.h.b16 %v3621
      %v3704 = vunpack.c.l.b16 %v3622
      %v3705 = vunpack.c.h.b16 %v3622
      %v3706 = vunpack.c.l.b16 %v3623
      %v3707 = vunpack.c.h.b16 %v3623
      %v3708 = vunpack.c.l.b16 %v3624
      %v3709 = vunpack.c.h.b16 %v3624
      %v3710 = vunpack.c.l.b16 %v3625
      %v3711 = vunpack.c.h.b16 %v3625
      %v3712 = vunpack.c.l.b16 %v3626
      %v3713 = vunpack.c.h.b16 %v3626
      %v3714 = vunpack.c.l.b16 %v3627
      %v3715 = vunpack.c.h.b16 %v3627
      %v3716 = vunpack.c.l.b16 %v3628
      %v3717 = vunpack.c.h.b16 %v3628
      %v3718 = vunpack.c.l.b16 %v3629
      %v3719 = vunpack.c.h.b16 %v3629
      %v3720 = vunpack.c.l.b16 %v3630
      %v3721 = vunpack.c.h.b16 %v3630
      %v3722 = vunpack.c.l.b16 %v3631
      %v3723 = vunpack.c.h.b16 %v3631
      %v3724 = vunpack.c.l.b16 %v3632
      %v3725 = vunpack.c.h.b16 %v3632
      %v3726 = vunpack.c.l.b16 %v3633
      %v3727 = vunpack.c.h.b16 %v3633
      %v3728 = vunpack.c.l.b16 %v3634
      %v3729 = vunpack.c.h.b16 %v3634
      %v3730 = vunpack.c.l.b16 %v3635
      %v3731 = vunpack.c.h.b16 %v3635
      %v3732 = vpack.c.b16 %v3670, %v3668
      %v3733 = vpack.c.b16 %v3671, %v3669
      %v3734 = vpack.c.b16 %v3674, %v3672
      %v3735 = vpack.c.b16 %v3675, %v3673
      %v3736 = vpack.c.b16 %v3678, %v3676
      %v3737 = vpack.c.b16 %v3679, %v3677
      %v3738 = vpack.c.b16 %v3682, %v3680
      %v3739 = vpack.c.b16 %v3683, %v3681
      %v3740 = vpack.c.b16 %v3686, %v3684
      %v3741 = vpack.c.b16 %v3687, %v3685
      %v3742 = vpack.c.b16 %v3690, %v3688
      %v3743 = vpack.c.b16 %v3691, %v3689
      %v3744 = vpack.c.b16 %v3694, %v3692
      %v3745 = vpack.c.b16 %v3695, %v3693
      %v3746 = vpack.c.b16 %v3698, %v3696
      %v3747 = vpack.c.b16 %v3699, %v3697
      %v3748 = vpack.c.b16 %v3702, %v3700
      %v3749 = vpack.c.b16 %v3703, %v3701
      %v3750 = vpack.c.b16 %v3706, %v3704
      %v3751 = vpack.c.b16 %v3707, %v3705
      %v3752 = vpack.c.b16 %v3710, %v3708
      %v3753 = vpack.c.b16 %v3711, %v3709
      %v3754 = vpack.c.b16 %v3714, %v3712
      %v3755 = vpack.c.b16 %v3715, %v3713
      %v3756 = vpack.c.b16 %v3718, %v3716
      %v3757 = vpack.c.b16 %v3719, %v3717
      %v3758 = vpack.c.b16 %v3722, %v3720
      %v3759 = vpack.c.b16 %v3723, %v3721
      %v3760 = vpack.c.b16 %v3726, %v3724
      %v3761 = vpack.c.b16 %v3727, %v3725
      %v3762 = vpack.c.b16 %v3730, %v3728
      %v3763 = vpack.c.b16 %v3731, %v3729
      %3796 = vmatprep.subr.bf16.mxu0 %v3747
      %3797 = vmatpush1.bf16.msra.mxu0 %v3746
      %3798 = vmatprep.subr.bf16.mxu0 %v3745
      %3799 = vmatpush1.bf16.msra.mxu0 %v3744
      %3800 = vmatprep.subr.bf16.mxu0 %v3743
      %3801 = vmatpush1.bf16.msra.mxu0 %v3742
      %3802 = vmatprep.subr.bf16.mxu0 %v3741
      %3803 = vmatpush1.bf16.msra.mxu0 %v3740
      %3804 = vmatprep.subr.bf16.mxu0 %v3739
      %3805 = vmatpush1.bf16.msra.mxu0 %v3738
      %3806 = vmatprep.subr.bf16.mxu0 %v3737
      %3807 = vmatpush1.bf16.msra.mxu0 %v3736
      %3808 = vmatprep.subr.bf16.mxu0 %v3735
      %3809 = vmatpush1.bf16.msra.mxu0 %v3734
      %3810 = vmatprep.subr.bf16.mxu0 %v3733
      %3811 = vmatpush1.bf16.msra.mxu0 %v3732
      %3812 = vmatprep.subr.bf16.mxu0 %v3763
      %3813 = vmatpush2.bf16.msra.mxu0 %v3762
      %3814 = vmatprep.subr.bf16.mxu0 %v3761
      %3815 = vmatpush2.bf16.msra.mxu0 %v3760
      %3816 = vmatprep.subr.bf16.mxu0 %v3759
      %3817 = vmatpush2.bf16.msra.mxu0 %v3758
      %3818 = vmatprep.subr.bf16.mxu0 %v3757
      %3819 = vmatpush2.bf16.msra.mxu0 %v3756
      %3820 = vmatprep.subr.bf16.mxu0 %v3755
      %3821 = vmatpush2.bf16.msra.mxu0 %v3754
      %3822 = vmatprep.subr.bf16.mxu0 %v3753
      %3823 = vmatpush2.bf16.msra.mxu0 %v3752
      %3824 = vmatprep.subr.bf16.mxu0 %v3751
      %3825 = vmatpush2.bf16.msra.mxu0 %v3750
      %3826 = vmatprep.subr.bf16.mxu0 %v3749
      %3827 = vmatpush2.bf16.msra.mxu0 %v3748
      %3828 = vmatprep.mubr.bf16.mxu0 %v3475
      %3829 = vmatmul.mubr.bf16.gmra.mxu0 %v3474
      %v3830 = vpop.f32.mrf.mxu0
      %v3831 = vadd.f32 0.0, %v3830
      %v3832 = vpop.f32.mrf.mxu0
      %v3833 = vadd.f32 0.0, %v3832
      %v3834 = vpop.f32.mrf.mxu0
      %v3835 = vadd.f32 0.0, %v3834
      %v3836 = vpop.f32.mrf.mxu0
      %v3837 = vadd.f32 0.0, %v3836
      %3838 = vmatprep.mubr.bf16.mxu0 %v3477
      %3839 = vmatmul.mubr.bf16.gmra.mxu0 %v3476
      %v3840 = vpop.f32.mrf.mxu0
      %v3841 = vadd.f32 0.0, %v3840
      %v3842 = vpop.f32.mrf.mxu0
      %v3843 = vadd.f32 0.0, %v3842
      %v3844 = vpop.f32.mrf.mxu0
      %v3845 = vadd.f32 0.0, %v3844
      %v3846 = vpop.f32.mrf.mxu0
      %v3847 = vadd.f32 0.0, %v3846
      %3848 = vmatprep.mubr.bf16.mxu0 %v3479
      %3849 = vmatmul.mubr.bf16.gmra.mxu0 %v3478
      %v3850 = vpop.f32.mrf.mxu0
      %v3851 = vadd.f32 0.0, %v3850
      %v3852 = vpop.f32.mrf.mxu0
      %v3853 = vadd.f32 0.0, %v3852
      %v3854 = vpop.f32.mrf.mxu0
      %v3855 = vadd.f32 0.0, %v3854
      %v3856 = vpop.f32.mrf.mxu0
      %v3857 = vadd.f32 0.0, %v3856
      %3858 = vmatprep.mubr.bf16.mxu0 %v3481
      %3859 = vmatmul.mubr.bf16.gmra.mxu0 %v3480
      %v3860 = vpop.f32.mrf.mxu0
      %v3861 = vadd.f32 0.0, %v3860
      %v3862 = vpop.f32.mrf.mxu0
      %v3863 = vadd.f32 0.0, %v3862
      %v3864 = vpop.f32.mrf.mxu0
      %v3865 = vadd.f32 0.0, %v3864
      %v3866 = vpop.f32.mrf.mxu0
      %v3867 = vadd.f32 0.0, %v3866
      %3868 = vmatprep.mubr.bf16.mxu0 %v3483
      %3869 = vmatmul.mubr.bf16.gmra.mxu0 %v3482
      %v3870 = vpop.f32.mrf.mxu0
      %v3871 = vadd.f32 0.0, %v3870
      %v3872 = vpop.f32.mrf.mxu0
      %v3873 = vadd.f32 0.0, %v3872
      %v3874 = vpop.f32.mrf.mxu0
      %v3875 = vadd.f32 0.0, %v3874
      %v3876 = vpop.f32.mrf.mxu0
      %v3877 = vadd.f32 0.0, %v3876
      %3878 = vmatprep.mubr.bf16.mxu0 %v3485
      %3879 = vmatmul.mubr.bf16.gmra.mxu0 %v3484
      %v3880 = vpop.f32.mrf.mxu0
      %v3881 = vadd.f32 0.0, %v3880
      %v3882 = vpop.f32.mrf.mxu0
      %v3883 = vadd.f32 0.0, %v3882
      %v3884 = vpop.f32.mrf.mxu0
      %v3885 = vadd.f32 0.0, %v3884
      %v3886 = vpop.f32.mrf.mxu0
      %v3887 = vadd.f32 0.0, %v3886
      %3888 = vmatprep.mubr.bf16.mxu0 %v3487
      %3889 = vmatmul.mubr.bf16.gmra.mxu0 %v3486
      %v3890 = vpop.f32.mrf.mxu0
      %v3891 = vadd.f32 0.0, %v3890
      %v3892 = vpop.f32.mrf.mxu0
      %v3893 = vadd.f32 0.0, %v3892
      %v3894 = vpop.f32.mrf.mxu0
      %v3895 = vadd.f32 0.0, %v3894
      %v3896 = vpop.f32.mrf.mxu0
      %v3897 = vadd.f32 0.0, %v3896
      %3898 = vmatprep.mubr.bf16.mxu0 %v3489
      %3899 = vmatmul.mubr.bf16.gmra.mxu0 %v3488
      %v3900 = vpop.f32.mrf.mxu0
      %v3901 = vadd.f32 0.0, %v3900
      %v3902 = vpop.f32.mrf.mxu0
      %v3903 = vadd.f32 0.0, %v3902
      %v3904 = vpop.f32.mrf.mxu0
      %v3905 = vadd.f32 0.0, %v3904
      %v3906 = vpop.f32.mrf.mxu0
      %v3907 = vadd.f32 0.0, %v3906
      %3908 = vdwg.mxu0
      %v3941 = vunpack.c.l.b16 %v3571
      %v3942 = vunpack.c.h.b16 %v3571
      %v3943 = vunpack.c.l.b16 %v3572
      %v3944 = vunpack.c.h.b16 %v3572
      %v3945 = vunpack.c.l.b16 %v3573
      %v3946 = vunpack.c.h.b16 %v3573
      %v3947 = vunpack.c.l.b16 %v3574
      %v3948 = vunpack.c.h.b16 %v3574
      %v3949 = vunpack.c.l.b16 %v3575
      %v3950 = vunpack.c.h.b16 %v3575
      %v3951 = vunpack.c.l.b16 %v3576
      %v3952 = vunpack.c.h.b16 %v3576
      %v3953 = vunpack.c.l.b16 %v3577
      %v3954 = vunpack.c.h.b16 %v3577
      %v3955 = vunpack.c.l.b16 %v3578
      %v3956 = vunpack.c.h.b16 %v3578
      %v3957 = vunpack.c.l.b16 %v3579
      %v3958 = vunpack.c.h.b16 %v3579
      %v3959 = vunpack.c.l.b16 %v3580
      %v3960 = vunpack.c.h.b16 %v3580
      %v3961 = vunpack.c.l.b16 %v3581
      %v3962 = vunpack.c.h.b16 %v3581
      %v3963 = vunpack.c.l.b16 %v3582
      %v3964 = vunpack.c.h.b16 %v3582
      %v3965 = vunpack.c.l.b16 %v3583
      %v3966 = vunpack.c.h.b16 %v3583
      %v3967 = vunpack.c.l.b16 %v3584
      %v3968 = vunpack.c.h.b16 %v3584
      %v3969 = vunpack.c.l.b16 %v3585
      %v3970 = vunpack.c.h.b16 %v3585
      %v3971 = vunpack.c.l.b16 %v3586
      %v3972 = vunpack.c.h.b16 %v3586
      %v3973 = vunpack.c.l.b16 %v3587
      %v3974 = vunpack.c.h.b16 %v3587
      %v3975 = vunpack.c.l.b16 %v3588
      %v3976 = vunpack.c.h.b16 %v3588
      %v3977 = vunpack.c.l.b16 %v3589
      %v3978 = vunpack.c.h.b16 %v3589
      %v3979 = vunpack.c.l.b16 %v3590
      %v3980 = vunpack.c.h.b16 %v3590
      %v3981 = vunpack.c.l.b16 %v3591
      %v3982 = vunpack.c.h.b16 %v3591
      %v3983 = vunpack.c.l.b16 %v3592
      %v3984 = vunpack.c.h.b16 %v3592
      %v3985 = vunpack.c.l.b16 %v3593
      %v3986 = vunpack.c.h.b16 %v3593
      %v3987 = vunpack.c.l.b16 %v3594
      %v3988 = vunpack.c.h.b16 %v3594
      %v3989 = vunpack.c.l.b16 %v3595
      %v3990 = vunpack.c.h.b16 %v3595
      %v3991 = vunpack.c.l.b16 %v3596
      %v3992 = vunpack.c.h.b16 %v3596
      %v3993 = vunpack.c.l.b16 %v3597
      %v3994 = vunpack.c.h.b16 %v3597
      %v3995 = vunpack.c.l.b16 %v3598
      %v3996 = vunpack.c.h.b16 %v3598
      %v3997 = vunpack.c.l.b16 %v3599
      %v3998 = vunpack.c.h.b16 %v3599
      %v3999 = vunpack.c.l.b16 %v3600
      %v4000 = vunpack.c.h.b16 %v3600
      %v4001 = vunpack.c.l.b16 %v3601
      %v4002 = vunpack.c.h.b16 %v3601
      %v4003 = vunpack.c.l.b16 %v3602
      %v4004 = vunpack.c.h.b16 %v3602
      %v4005 = vpack.c.b16 %v3943, %v3941
      %v4006 = vpack.c.b16 %v3944, %v3942
      %v4007 = vpack.c.b16 %v3947, %v3945
      %v4008 = vpack.c.b16 %v3948, %v3946
      %v4009 = vpack.c.b16 %v3951, %v3949
      %v4010 = vpack.c.b16 %v3952, %v3950
      %v4011 = vpack.c.b16 %v3955, %v3953
      %v4012 = vpack.c.b16 %v3956, %v3954
      %v4013 = vpack.c.b16 %v3959, %v3957
      %v4014 = vpack.c.b16 %v3960, %v3958
      %v4015 = vpack.c.b16 %v3963, %v3961
      %v4016 = vpack.c.b16 %v3964, %v3962
      %v4017 = vpack.c.b16 %v3967, %v3965
      %v4018 = vpack.c.b16 %v3968, %v3966
      %v4019 = vpack.c.b16 %v3971, %v3969
      %v4020 = vpack.c.b16 %v3972, %v3970
      %v4021 = vpack.c.b16 %v3975, %v3973
      %v4022 = vpack.c.b16 %v3976, %v3974
      %v4023 = vpack.c.b16 %v3979, %v3977
      %v4024 = vpack.c.b16 %v3980, %v3978
      %v4025 = vpack.c.b16 %v3983, %v3981
      %v4026 = vpack.c.b16 %v3984, %v3982
      %v4027 = vpack.c.b16 %v3987, %v3985
      %v4028 = vpack.c.b16 %v3988, %v3986
      %v4029 = vpack.c.b16 %v3991, %v3989
      %v4030 = vpack.c.b16 %v3992, %v3990
      %v4031 = vpack.c.b16 %v3995, %v3993
      %v4032 = vpack.c.b16 %v3996, %v3994
      %v4033 = vpack.c.b16 %v3999, %v3997
      %v4034 = vpack.c.b16 %v4000, %v3998
      %v4035 = vpack.c.b16 %v4003, %v4001
      %v4036 = vpack.c.b16 %v4004, %v4002
      %4069 = vmatprep.subr.bf16.mxu0 %v4020
      %4070 = vmatpush1.bf16.msra.mxu0 %v4019
      %4071 = vmatprep.subr.bf16.mxu0 %v4018
      %4072 = vmatpush1.bf16.msra.mxu0 %v4017
      %4073 = vmatprep.subr.bf16.mxu0 %v4016
      %4074 = vmatpush1.bf16.msra.mxu0 %v4015
      %4075 = vmatprep.subr.bf16.mxu0 %v4014
      %4076 = vmatpush1.bf16.msra.mxu0 %v4013
      %4077 = vmatprep.subr.bf16.mxu0 %v4012
      %4078 = vmatpush1.bf16.msra.mxu0 %v4011
      %4079 = vmatprep.subr.bf16.mxu0 %v4010
      %4080 = vmatpush1.bf16.msra.mxu0 %v4009
      %4081 = vmatprep.subr.bf16.mxu0 %v4008
      %4082 = vmatpush1.bf16.msra.mxu0 %v4007
      %4083 = vmatprep.subr.bf16.mxu0 %v4006
      %4084 = vmatpush1.bf16.msra.mxu0 %v4005
      %4085 = vmatprep.subr.bf16.mxu0 %v4036
      %4086 = vmatpush2.bf16.msra.mxu0 %v4035
      %4087 = vmatprep.subr.bf16.mxu0 %v4034
      %4088 = vmatpush2.bf16.msra.mxu0 %v4033
      %4089 = vmatprep.subr.bf16.mxu0 %v4032
      %4090 = vmatpush2.bf16.msra.mxu0 %v4031
      %4091 = vmatprep.subr.bf16.mxu0 %v4030
      %4092 = vmatpush2.bf16.msra.mxu0 %v4029
      %4093 = vmatprep.subr.bf16.mxu0 %v4028
      %4094 = vmatpush2.bf16.msra.mxu0 %v4027
      %4095 = vmatprep.subr.bf16.mxu0 %v4026
      %4096 = vmatpush2.bf16.msra.mxu0 %v4025
      %4097 = vmatprep.subr.bf16.mxu0 %v4024
      %4098 = vmatpush2.bf16.msra.mxu0 %v4023
      %4099 = vmatprep.subr.bf16.mxu0 %v4022
      %4100 = vmatpush2.bf16.msra.mxu0 %v4021
      %4101 = vmatprep.mubr.bf16.mxu0 %v3475
      %4102 = vmatmul.mubr.bf16.gmra.mxu0 %v3474
      %v4103 = vpop.f32.mrf.mxu0
      %v4104 = vadd.f32 %v3831, %v4103
      %v4105 = vpop.f32.mrf.mxu0
      %v4106 = vadd.f32 %v3833, %v4105
      %v4107 = vpop.f32.mrf.mxu0
      %v4108 = vadd.f32 %v3835, %v4107
      %v4109 = vpop.f32.mrf.mxu0
      %v4110 = vadd.f32 %v3837, %v4109
      %4111 = vmatprep.mubr.bf16.mxu0 %v3477
      %4112 = vmatmul.mubr.bf16.gmra.mxu0 %v3476
      %v4113 = vpop.f32.mrf.mxu0
      %v4114 = vadd.f32 %v3841, %v4113
      %v4115 = vpop.f32.mrf.mxu0
      %v4116 = vadd.f32 %v3843, %v4115
      %v4117 = vpop.f32.mrf.mxu0
      %v4118 = vadd.f32 %v3845, %v4117
      %v4119 = vpop.f32.mrf.mxu0
      %v4120 = vadd.f32 %v3847, %v4119
      %4121 = vmatprep.mubr.bf16.mxu0 %v3479
      %4122 = vmatmul.mubr.bf16.gmra.mxu0 %v3478
      %v4123 = vpop.f32.mrf.mxu0
      %v4124 = vadd.f32 %v3851, %v4123
      %v4125 = vpop.f32.mrf.mxu0
      %v4126 = vadd.f32 %v3853, %v4125
      %v4127 = vpop.f32.mrf.mxu0
      %v4128 = vadd.f32 %v3855, %v4127
      %v4129 = vpop.f32.mrf.mxu0
      %v4130 = vadd.f32 %v3857, %v4129
      %4131 = vmatprep.mubr.bf16.mxu0 %v3481
      %4132 = vmatmul.mubr.bf16.gmra.mxu0 %v3480
      %v4133 = vpop.f32.mrf.mxu0
      %v4134 = vadd.f32 %v3861, %v4133
      %v4135 = vpop.f32.mrf.mxu0
      %v4136 = vadd.f32 %v3863, %v4135
      %v4137 = vpop.f32.mrf.mxu0
      %v4138 = vadd.f32 %v3865, %v4137
      %v4139 = vpop.f32.mrf.mxu0
      %v4140 = vadd.f32 %v3867, %v4139
      %4141 = vmatprep.mubr.bf16.mxu0 %v3483
      %4142 = vmatmul.mubr.bf16.gmra.mxu0 %v3482
      %v4143 = vpop.f32.mrf.mxu0
      %v4144 = vadd.f32 %v3871, %v4143
      %v4145 = vpop.f32.mrf.mxu0
      %v4146 = vadd.f32 %v3873, %v4145
      %v4147 = vpop.f32.mrf.mxu0
      %v4148 = vadd.f32 %v3875, %v4147
      %v4149 = vpop.f32.mrf.mxu0
      %v4150 = vadd.f32 %v3877, %v4149
      %4151 = vmatprep.mubr.bf16.mxu0 %v3485
      %4152 = vmatmul.mubr.bf16.gmra.mxu0 %v3484
      %v4153 = vpop.f32.mrf.mxu0
      %v4154 = vadd.f32 %v3881, %v4153
      %v4155 = vpop.f32.mrf.mxu0
      %v4156 = vadd.f32 %v3883, %v4155
      %v4157 = vpop.f32.mrf.mxu0
      %v4158 = vadd.f32 %v3885, %v4157
      %v4159 = vpop.f32.mrf.mxu0
      %v4160 = vadd.f32 %v3887, %v4159
      %4161 = vmatprep.mubr.bf16.mxu0 %v3487
      %4162 = vmatmul.mubr.bf16.gmra.mxu0 %v3486
      %v4163 = vpop.f32.mrf.mxu0
      %v4164 = vadd.f32 %v3891, %v4163
      %v4165 = vpop.f32.mrf.mxu0
      %v4166 = vadd.f32 %v3893, %v4165
      %v4167 = vpop.f32.mrf.mxu0
      %v4168 = vadd.f32 %v3895, %v4167
      %v4169 = vpop.f32.mrf.mxu0
      %v4170 = vadd.f32 %v3897, %v4169
      %4171 = vmatprep.mubr.bf16.mxu0 %v3489
      %4172 = vmatmul.mubr.bf16.gmra.mxu0 %v3488
      %v4173 = vpop.f32.mrf.mxu0
      %v4174 = vadd.f32 %v3901, %v4173
      %v4175 = vpop.f32.mrf.mxu0
      %v4176 = vadd.f32 %v3903, %v4175
      %v4177 = vpop.f32.mrf.mxu0
      %v4178 = vadd.f32 %v3905, %v4177
      %v4179 = vpop.f32.mrf.mxu0
      %v4180 = vadd.f32 %v3907, %v4179
      %4181 = vdwg.mxu0
      %4182 = vmatprep.subr.bf16.mxu0 %v4020
      %4183 = vmatpush1.bf16.msra.mxu0 %v4019
      %4184 = vmatprep.subr.bf16.mxu0 %v4018
      %4185 = vmatpush1.bf16.msra.mxu0 %v4017
      %4186 = vmatprep.subr.bf16.mxu0 %v4016
      %4187 = vmatpush1.bf16.msra.mxu0 %v4015
      %4188 = vmatprep.subr.bf16.mxu0 %v4014
      %4189 = vmatpush1.bf16.msra.mxu0 %v4013
      %4190 = vmatprep.subr.bf16.mxu0 %v4012
      %4191 = vmatpush1.bf16.msra.mxu0 %v4011
      %4192 = vmatprep.subr.bf16.mxu0 %v4010
      %4193 = vmatpush1.bf16.msra.mxu0 %v4009
      %4194 = vmatprep.subr.bf16.mxu0 %v4008
      %4195 = vmatpush1.bf16.msra.mxu0 %v4007
      %4196 = vmatprep.subr.bf16.mxu0 %v4006
      %4197 = vmatpush1.bf16.msra.mxu0 %v4005
      %4198 = vmatprep.subr.bf16.mxu0 %v4036
      %4199 = vmatpush2.bf16.msra.mxu0 %v4035
      %4200 = vmatprep.subr.bf16.mxu0 %v4034
      %4201 = vmatpush2.bf16.msra.mxu0 %v4033
      %4202 = vmatprep.subr.bf16.mxu0 %v4032
      %4203 = vmatpush2.bf16.msra.mxu0 %v4031
      %4204 = vmatprep.subr.bf16.mxu0 %v4030
      %4205 = vmatpush2.bf16.msra.mxu0 %v4029
      %4206 = vmatprep.subr.bf16.mxu0 %v4028
      %4207 = vmatpush2.bf16.msra.mxu0 %v4027
      %4208 = vmatprep.subr.bf16.mxu0 %v4026
      %4209 = vmatpush2.bf16.msra.mxu0 %v4025
      %4210 = vmatprep.subr.bf16.mxu0 %v4024
      %4211 = vmatpush2.bf16.msra.mxu0 %v4023
      %4212 = vmatprep.subr.bf16.mxu0 %v4022
      %4213 = vmatpush2.bf16.msra.mxu0 %v4021
      %4214 = vmatprep.mubr.bf16.mxu0 %v3555
      %4215 = vmatmul.mubr.bf16.gmra.mxu0 %v3554
      %v4216 = vpop.f32.mrf.mxu0
      %v4217 = vadd.f32 0.0, %v4216
      %v4218 = vpop.f32.mrf.mxu0
      %v4219 = vadd.f32 0.0, %v4218
      %v4220 = vpop.f32.mrf.mxu0
      %v4221 = vadd.f32 0.0, %v4220
      %v4222 = vpop.f32.mrf.mxu0
      %v4223 = vadd.f32 0.0, %v4222
      %4224 = vmatprep.mubr.bf16.mxu0 %v3557
      %4225 = vmatmul.mubr.bf16.gmra.mxu0 %v3556
      %v4226 = vpop.f32.mrf.mxu0
      %v4227 = vadd.f32 0.0, %v4226
      %v4228 = vpop.f32.mrf.mxu0
      %v4229 = vadd.f32 0.0, %v4228
      %v4230 = vpop.f32.mrf.mxu0
      %v4231 = vadd.f32 0.0, %v4230
      %v4232 = vpop.f32.mrf.mxu0
      %v4233 = vadd.f32 0.0, %v4232
      %4234 = vmatprep.mubr.bf16.mxu0 %v3559
      %4235 = vmatmul.mubr.bf16.gmra.mxu0 %v3558
      %v4236 = vpop.f32.mrf.mxu0
      %v4237 = vadd.f32 0.0, %v4236
      %v4238 = vpop.f32.mrf.mxu0
      %v4239 = vadd.f32 0.0, %v4238
      %v4240 = vpop.f32.mrf.mxu0
      %v4241 = vadd.f32 0.0, %v4240
      %v4242 = vpop.f32.mrf.mxu0
      %v4243 = vadd.f32 0.0, %v4242
      %4244 = vmatprep.mubr.bf16.mxu0 %v3561
      %4245 = vmatmul.mubr.bf16.gmra.mxu0 %v3560
      %v4246 = vpop.f32.mrf.mxu0
      %v4247 = vadd.f32 0.0, %v4246
      %v4248 = vpop.f32.mrf.mxu0
      %v4249 = vadd.f32 0.0, %v4248
      %v4250 = vpop.f32.mrf.mxu0
      %v4251 = vadd.f32 0.0, %v4250
      %v4252 = vpop.f32.mrf.mxu0
      %v4253 = vadd.f32 0.0, %v4252
      %4254 = vmatprep.mubr.bf16.mxu0 %v3563
      %4255 = vmatmul.mubr.bf16.gmra.mxu0 %v3562
      %v4256 = vpop.f32.mrf.mxu0
      %v4257 = vadd.f32 0.0, %v4256
      %v4258 = vpop.f32.mrf.mxu0
      %v4259 = vadd.f32 0.0, %v4258
      %v4260 = vpop.f32.mrf.mxu0
      %v4261 = vadd.f32 0.0, %v4260
      %v4262 = vpop.f32.mrf.mxu0
      %v4263 = vadd.f32 0.0, %v4262
      %4264 = vmatprep.mubr.bf16.mxu0 %v3565
      %4265 = vmatmul.mubr.bf16.gmra.mxu0 %v3564
      %v4266 = vpop.f32.mrf.mxu0
      %v4267 = vadd.f32 0.0, %v4266
      %v4268 = vpop.f32.mrf.mxu0
      %v4269 = vadd.f32 0.0, %v4268
      %v4270 = vpop.f32.mrf.mxu0
      %v4271 = vadd.f32 0.0, %v4270
      %v4272 = vpop.f32.mrf.mxu0
      %v4273 = vadd.f32 0.0, %v4272
      %4274 = vmatprep.mubr.bf16.mxu0 %v3567
      %4275 = vmatmul.mubr.bf16.gmra.mxu0 %v3566
      %v4276 = vpop.f32.mrf.mxu0
      %v4277 = vadd.f32 0.0, %v4276
      %v4278 = vpop.f32.mrf.mxu0
      %v4279 = vadd.f32 0.0, %v4278
      %v4280 = vpop.f32.mrf.mxu0
      %v4281 = vadd.f32 0.0, %v4280
      %v4282 = vpop.f32.mrf.mxu0
      %v4283 = vadd.f32 0.0, %v4282
      %4284 = vmatprep.mubr.bf16.mxu0 %v3569
      %4285 = vmatmul.mubr.bf16.gmra.mxu0 %v3568
      %v4286 = vpop.f32.mrf.mxu0
      %v4287 = vadd.f32 0.0, %v4286
      %v4288 = vpop.f32.mrf.mxu0
      %v4289 = vadd.f32 0.0, %v4288
      %v4290 = vpop.f32.mrf.mxu0
      %v4291 = vadd.f32 0.0, %v4290
      %v4292 = vpop.f32.mrf.mxu0
      %v4293 = vadd.f32 0.0, %v4292
      %4294 = vdwg.mxu0
      %v4295 = vadd.f32 %v4104, %v4217
      %v4296 = vadd.f32 %v4106, %v4219
      %v4297 = vadd.f32 %v4108, %v4221
      %v4298 = vadd.f32 %v4110, %v4223
      %v4299 = vadd.f32 %v4114, %v4227
      %v4300 = vadd.f32 %v4116, %v4229
      %v4301 = vadd.f32 %v4118, %v4231
      %v4302 = vadd.f32 %v4120, %v4233
      %v4303 = vadd.f32 %v4124, %v4237
      %v4304 = vadd.f32 %v4126, %v4239
      %v4305 = vadd.f32 %v4128, %v4241
      %v4306 = vadd.f32 %v4130, %v4243
      %v4307 = vadd.f32 %v4134, %v4247
      %v4308 = vadd.f32 %v4136, %v4249
      %v4309 = vadd.f32 %v4138, %v4251
      %v4310 = vadd.f32 %v4140, %v4253
      %v4311 = vadd.f32 %v4144, %v4257
      %v4312 = vadd.f32 %v4146, %v4259
      %v4313 = vadd.f32 %v4148, %v4261
      %v4314 = vadd.f32 %v4150, %v4263
      %v4315 = vadd.f32 %v4154, %v4267
      %v4316 = vadd.f32 %v4156, %v4269
      %v4317 = vadd.f32 %v4158, %v4271
      %v4318 = vadd.f32 %v4160, %v4273
      %v4319 = vadd.f32 %v4164, %v4277
      %v4320 = vadd.f32 %v4166, %v4279
      %v4321 = vadd.f32 %v4168, %v4281
      %v4322 = vadd.f32 %v4170, %v4283
      %v4323 = vadd.f32 %v4174, %v4287
      %v4324 = vadd.f32 %v4176, %v4289
      %v4325 = vadd.f32 %v4178, %v4291
      %v4326 = vadd.f32 %v4180, %v4293
      %4327 = vst [vmem:[%s204] sm:$0xff] %v4295
      %4328 = vst [vmem:[%s204 + $0x8] sm:$0xff] %v4297
      %4329 = vst [vmem:[%s204 + $0x10] sm:$0xff] %v4299
      %4330 = vst [vmem:[%s204 + $0x18] sm:$0xff] %v4301
      %4331 = vst [vmem:[%s204 + $0x20] sm:$0xff] %v4303
      %4332 = vst [vmem:[%s204 + $0x28] sm:$0xff] %v4305
      %4333 = vst [vmem:[%s204 + $0x30] sm:$0xff] %v4307
      %4334 = vst [vmem:[%s204 + $0x38] sm:$0xff] %v4309
      %4335 = vst [vmem:[%s204 + $0x40] sm:$0xff] %v4311
      %4336 = vst [vmem:[%s204 + $0x48] sm:$0xff] %v4313
      %4337 = vst [vmem:[%s204 + $0x50] sm:$0xff] %v4315
      %4338 = vst [vmem:[%s204 + $0x58] sm:$0xff] %v4317
      %4339 = vst [vmem:[%s204 + $0x60] sm:$0xff] %v4319
      %4340 = vst [vmem:[%s204 + $0x68] sm:$0xff] %v4321
      %4341 = vst [vmem:[%s204 + $0x70] sm:$0xff] %v4323
      %4342 = vst [vmem:[%s204 + $0x78] sm:$0xff] %v4325
      %s4343 = scalar_lea.vmem %s204, 128
      %4344 = vst [vmem:[%s4343] sm:$0xff] %v4296
      %4345 = vst [vmem:[%s4343 + $0x8] sm:$0xff] %v4298
      %4346 = vst [vmem:[%s4343 + $0x10] sm:$0xff] %v4300
      %4347 = vst [vmem:[%s4343 + $0x18] sm:$0xff] %v4302
      %4348 = vst [vmem:[%s4343 + $0x20] sm:$0xff] %v4304
      %4349 = vst [vmem:[%s4343 + $0x28] sm:$0xff] %v4306
      %4350 = vst [vmem:[%s4343 + $0x30] sm:$0xff] %v4308
      %4351 = vst [vmem:[%s4343 + $0x38] sm:$0xff] %v4310
      %4352 = vst [vmem:[%s4343 + $0x40] sm:$0xff] %v4312
      %4353 = vst [vmem:[%s4343 + $0x48] sm:$0xff] %v4314
      %4354 = vst [vmem:[%s4343 + $0x50] sm:$0xff] %v4316
      %4355 = vst [vmem:[%s4343 + $0x58] sm:$0xff] %v4318
      %4356 = vst [vmem:[%s4343 + $0x60] sm:$0xff] %v4320
      %4357 = vst [vmem:[%s4343 + $0x68] sm:$0xff] %v4322
      %4358 = vst [vmem:[%s4343 + $0x70] sm:$0xff] %v4324
      %4359 = vst [vmem:[%s4343 + $0x78] sm:$0xff] %v4326
      %p4360 = scmp.lt.s32.totalorder %s15, 3
      // Predicated region
      $region41: #{optic_forward.1} parent=35 // pred_check
        %p4361 = pneg %p4360
      $region42: #{optic_forward.1} parent=35 // pred_check_branch
        %4363 = sbr.rel (%p4361) target = $region44
      $region43: #{optic_forward.1} parent=35 // pred_region
        %v4364 = vld [vmem:[%s197] sm:$0xff]
        %v4365 = vld [vmem:[%s197 + $0x8] sm:$0xff]
        %v4366 = vld [vmem:[%s197 + $0x10] sm:$0xff]
        %v4367 = vld [vmem:[%s197 + $0x18] sm:$0xff]
        %v4368 = vld [vmem:[%s197 + $0x20] sm:$0xff]
        %v4369 = vld [vmem:[%s197 + $0x28] sm:$0xff]
        %v4370 = vld [vmem:[%s197 + $0x30] sm:$0xff]
        %v4371 = vld [vmem:[%s197 + $0x38] sm:$0xff]
        %v4372 = vld [vmem:[%s197 + $0x40] sm:$0xff]
        %v4373 = vld [vmem:[%s197 + $0x48] sm:$0xff]
        %v4374 = vld [vmem:[%s197 + $0x50] sm:$0xff]
        %v4375 = vld [vmem:[%s197 + $0x58] sm:$0xff]
        %v4376 = vld [vmem:[%s197 + $0x60] sm:$0xff]
        %v4377 = vld [vmem:[%s197 + $0x68] sm:$0xff]
        %v4378 = vld [vmem:[%s197 + $0x70] sm:$0xff]
        %v4379 = vld [vmem:[%s197 + $0x78] sm:$0xff]
        %s4380 = scalar_lea.vmem %s197, 128
        %v4381 = vld [vmem:[%s4380] sm:$0xff]
        %v4382 = vld [vmem:[%s4380 + $0x8] sm:$0xff]
        %v4383 = vld [vmem:[%s4380 + $0x10] sm:$0xff]
        %v4384 = vld [vmem:[%s4380 + $0x18] sm:$0xff]
        %v4385 = vld [vmem:[%s4380 + $0x20] sm:$0xff]
        %v4386 = vld [vmem:[%s4380 + $0x28] sm:$0xff]
        %v4387 = vld [vmem:[%s4380 + $0x30] sm:$0xff]
        %v4388 = vld [vmem:[%s4380 + $0x38] sm:$0xff]
        %v4389 = vld [vmem:[%s4380 + $0x40] sm:$0xff]
        %v4390 = vld [vmem:[%s4380 + $0x48] sm:$0xff]
        %v4391 = vld [vmem:[%s4380 + $0x50] sm:$0xff]
        %v4392 = vld [vmem:[%s4380 + $0x58] sm:$0xff]
        %v4393 = vld [vmem:[%s4380 + $0x60] sm:$0xff]
        %v4394 = vld [vmem:[%s4380 + $0x68] sm:$0xff]
        %v4395 = vld [vmem:[%s4380 + $0x70] sm:$0xff]
        %v4396 = vld [vmem:[%s4380 + $0x78] sm:$0xff]
        %v4397 = vmul.f32 %v4295, %v4364
        %v4398 = vmul.f32 %v4297, %v4365
        %v4399 = vmul.f32 %v4299, %v4366
        %v4400 = vmul.f32 %v4301, %v4367
        %v4401 = vmul.f32 %v4303, %v4368
        %v4402 = vmul.f32 %v4305, %v4369
        %v4403 = vmul.f32 %v4307, %v4370
        %v4404 = vmul.f32 %v4309, %v4371
        %v4405 = vmul.f32 %v4311, %v4372
        %v4406 = vmul.f32 %v4313, %v4373
        %v4407 = vmul.f32 %v4315, %v4374
        %v4408 = vmul.f32 %v4317, %v4375
        %v4409 = vmul.f32 %v4319, %v4376
        %v4410 = vmul.f32 %v4321, %v4377
        %v4411 = vmul.f32 %v4323, %v4378
        %v4412 = vmul.f32 %v4325, %v4379
        %v4413 = vmul.f32 %v4296, %v4381
        %v4414 = vmul.f32 %v4298, %v4382
        %v4415 = vmul.f32 %v4300, %v4383
        %v4416 = vmul.f32 %v4302, %v4384
        %v4417 = vmul.f32 %v4304, %v4385
        %v4418 = vmul.f32 %v4306, %v4386
        %v4419 = vmul.f32 %v4308, %v4387
        %v4420 = vmul.f32 %v4310, %v4388
        %v4421 = vmul.f32 %v4312, %v4389
        %v4422 = vmul.f32 %v4314, %v4390
        %v4423 = vmul.f32 %v4316, %v4391
        %v4424 = vmul.f32 %v4318, %v4392
        %v4425 = vmul.f32 %v4320, %v4393
        %v4426 = vmul.f32 %v4322, %v4394
        %v4427 = vmul.f32 %v4324, %v4395
        %v4428 = vmul.f32 %v4326, %v4396
        %v4429 = vsub.f32 %v4397, %v4413
        %v4430 = vsub.f32 %v4398, %v4414
        %v4431 = vsub.f32 %v4399, %v4415
        %v4432 = vsub.f32 %v4400, %v4416
        %v4433 = vsub.f32 %v4401, %v4417
        %v4434 = vsub.f32 %v4402, %v4418
        %v4435 = vsub.f32 %v4403, %v4419
        %v4436 = vsub.f32 %v4404, %v4420
        %v4437 = vsub.f32 %v4405, %v4421
        %v4438 = vsub.f32 %v4406, %v4422
        %v4439 = vsub.f32 %v4407, %v4423
        %v4440 = vsub.f32 %v4408, %v4424
        %v4441 = vsub.f32 %v4409, %v4425
        %v4442 = vsub.f32 %v4410, %v4426
        %v4443 = vsub.f32 %v4411, %v4427
        %v4444 = vsub.f32 %v4412, %v4428
        %v4445 = vmul.f32 %v4295, %v4381
        %v4446 = vmul.f32 %v4297, %v4382
        %v4447 = vmul.f32 %v4299, %v4383
        %v4448 = vmul.f32 %v4301, %v4384
        %v4449 = vmul.f32 %v4303, %v4385
        %v4450 = vmul.f32 %v4305, %v4386
        %v4451 = vmul.f32 %v4307, %v4387
        %v4452 = vmul.f32 %v4309, %v4388
        %v4453 = vmul.f32 %v4311, %v4389
        %v4454 = vmul.f32 %v4313, %v4390
        %v4455 = vmul.f32 %v4315, %v4391
        %v4456 = vmul.f32 %v4317, %v4392
        %v4457 = vmul.f32 %v4319, %v4393
        %v4458 = vmul.f32 %v4321, %v4394
        %v4459 = vmul.f32 %v4323, %v4395
        %v4460 = vmul.f32 %v4325, %v4396
        %v4461 = vmul.f32 %v4296, %v4364
        %v4462 = vmul.f32 %v4298, %v4365
        %v4463 = vmul.f32 %v4300, %v4366
        %v4464 = vmul.f32 %v4302, %v4367
        %v4465 = vmul.f32 %v4304, %v4368
        %v4466 = vmul.f32 %v4306, %v4369
        %v4467 = vmul.f32 %v4308, %v4370
        %v4468 = vmul.f32 %v4310, %v4371
        %v4469 = vmul.f32 %v4312, %v4372
        %v4470 = vmul.f32 %v4314, %v4373
        %v4471 = vmul.f32 %v4316, %v4374
        %v4472 = vmul.f32 %v4318, %v4375
        %v4473 = vmul.f32 %v4320, %v4376
        %v4474 = vmul.f32 %v4322, %v4377
        %v4475 = vmul.f32 %v4324, %v4378
        %v4476 = vmul.f32 %v4326, %v4379
        %v4477 = vadd.f32 %v4445, %v4461
        %v4478 = vadd.f32 %v4446, %v4462
        %v4479 = vadd.f32 %v4447, %v4463
        %v4480 = vadd.f32 %v4448, %v4464
        %v4481 = vadd.f32 %v4449, %v4465
        %v4482 = vadd.f32 %v4450, %v4466
        %v4483 = vadd.f32 %v4451, %v4467
        %v4484 = vadd.f32 %v4452, %v4468
        %v4485 = vadd.f32 %v4453, %v4469
        %v4486 = vadd.f32 %v4454, %v4470
        %v4487 = vadd.f32 %v4455, %v4471
        %v4488 = vadd.f32 %v4456, %v4472
        %v4489 = vadd.f32 %v4457, %v4473
        %v4490 = vadd.f32 %v4458, %v4474
        %v4491 = vadd.f32 %v4459, %v4475
        %v4492 = vadd.f32 %v4460, %v4476
        %s4493 = scalar_lea.vmem %s204, 256
        %4494 = vst [vmem:[%s4493] sm:$0xff] %v4429
        %4495 = vst [vmem:[%s4493 + $0x8] sm:$0xff] %v4430
        %4496 = vst [vmem:[%s4493 + $0x10] sm:$0xff] %v4431
        %4497 = vst [vmem:[%s4493 + $0x18] sm:$0xff] %v4432
        %4498 = vst [vmem:[%s4493 + $0x20] sm:$0xff] %v4433
        %4499 = vst [vmem:[%s4493 + $0x28] sm:$0xff] %v4434
        %4500 = vst [vmem:[%s4493 + $0x30] sm:$0xff] %v4435
        %4501 = vst [vmem:[%s4493 + $0x38] sm:$0xff] %v4436
        %4502 = vst [vmem:[%s4493 + $0x40] sm:$0xff] %v4437
        %4503 = vst [vmem:[%s4493 + $0x48] sm:$0xff] %v4438
        %4504 = vst [vmem:[%s4493 + $0x50] sm:$0xff] %v4439
        %4505 = vst [vmem:[%s4493 + $0x58] sm:$0xff] %v4440
        %4506 = vst [vmem:[%s4493 + $0x60] sm:$0xff] %v4441
        %4507 = vst [vmem:[%s4493 + $0x68] sm:$0xff] %v4442
        %4508 = vst [vmem:[%s4493 + $0x70] sm:$0xff] %v4443
        %4509 = vst [vmem:[%s4493 + $0x78] sm:$0xff] %v4444
        %s4510 = scalar_lea.vmem %s204, 384
        %4511 = vst [vmem:[%s4510] sm:$0xff] %v4477
        %4512 = vst [vmem:[%s4510 + $0x8] sm:$0xff] %v4478
        %4513 = vst [vmem:[%s4510 + $0x10] sm:$0xff] %v4479
        %4514 = vst [vmem:[%s4510 + $0x18] sm:$0xff] %v4480
        %4515 = vst [vmem:[%s4510 + $0x20] sm:$0xff] %v4481
        %4516 = vst [vmem:[%s4510 + $0x28] sm:$0xff] %v4482
        %4517 = vst [vmem:[%s4510 + $0x30] sm:$0xff] %v4483
        %4518 = vst [vmem:[%s4510 + $0x38] sm:$0xff] %v4484
        %4519 = vst [vmem:[%s4510 + $0x40] sm:$0xff] %v4485
        %4520 = vst [vmem:[%s4510 + $0x48] sm:$0xff] %v4486
        %4521 = vst [vmem:[%s4510 + $0x50] sm:$0xff] %v4487
        %4522 = vst [vmem:[%s4510 + $0x58] sm:$0xff] %v4488
        %4523 = vst [vmem:[%s4510 + $0x60] sm:$0xff] %v4489
        %4524 = vst [vmem:[%s4510 + $0x68] sm:$0xff] %v4490
        %4525 = vst [vmem:[%s4510 + $0x70] sm:$0xff] %v4491
        %4526 = vst [vmem:[%s4510 + $0x78] sm:$0xff] %v4492
        %4527 = vst [vmem:[#allocation2] sm:$0xff] %v4429
        %4528 = vst [vmem:[#allocation2 + $0x8] sm:$0xff] %v4430
        %4529 = vst [vmem:[#allocation2 + $0x10] sm:$0xff] %v4431
        %4530 = vst [vmem:[#allocation2 + $0x18] sm:$0xff] %v4432
        %4531 = vst [vmem:[#allocation2 + $0x20] sm:$0xff] %v4433
        %4532 = vst [vmem:[#allocation2 + $0x28] sm:$0xff] %v4434
        %4533 = vst [vmem:[#allocation2 + $0x30] sm:$0xff] %v4435
        %4534 = vst [vmem:[#allocation2 + $0x38] sm:$0xff] %v4436
        %4535 = vst [vmem:[#allocation2 + $0x40] sm:$0xff] %v4437
        %4536 = vst [vmem:[#allocation2 + $0x48] sm:$0xff] %v4438
        %4537 = vst [vmem:[#allocation2 + $0x50] sm:$0xff] %v4439
        %4538 = vst [vmem:[#allocation2 + $0x58] sm:$0xff] %v4440
        %4539 = vst [vmem:[#allocation2 + $0x60] sm:$0xff] %v4441
        %4540 = vst [vmem:[#allocation2 + $0x68] sm:$0xff] %v4442
        %4541 = vst [vmem:[#allocation2 + $0x70] sm:$0xff] %v4443
        %4542 = vst [vmem:[#allocation2 + $0x78] sm:$0xff] %v4444
        %4543 = vst [vmem:[#allocation2 + $0x80] sm:$0xff] %v4477
        %4544 = vst [vmem:[#allocation2 + $0x88] sm:$0xff] %v4478
        %4545 = vst [vmem:[#allocation2 + $0x90] sm:$0xff] %v4479
        %4546 = vst [vmem:[#allocation2 + $0x98] sm:$0xff] %v4480
        %4547 = vst [vmem:[#allocation2 + $0xa0] sm:$0xff] %v4481
        %4548 = vst [vmem:[#allocation2 + $0xa8] sm:$0xff] %v4482
        %4549 = vst [vmem:[#allocation2 + $0xb0] sm:$0xff] %v4483
        %4550 = vst [vmem:[#allocation2 + $0xb8] sm:$0xff] %v4484
        %4551 = vst [vmem:[#allocation2 + $0xc0] sm:$0xff] %v4485
        %4552 = vst [vmem:[#allocation2 + $0xc8] sm:$0xff] %v4486
        %4553 = vst [vmem:[#allocation2 + $0xd0] sm:$0xff] %v4487
        %4554 = vst [vmem:[#allocation2 + $0xd8] sm:$0xff] %v4488
        %4555 = vst [vmem:[#allocation2 + $0xe0] sm:$0xff] %v4489
        %4556 = vst [vmem:[#allocation2 + $0xe8] sm:$0xff] %v4490
        %4557 = vst [vmem:[#allocation2 + $0xf0] sm:$0xff] %v4491
        %4558 = vst [vmem:[#allocation2 + $0xf8] sm:$0xff] %v4492
      $region44: #{optic_forward.1} parent=35 // pred_fallthru
        _
      %p4559 = scmp.eq.s32.totalorder %s15, 3
      // Predicated region
      $region45: #{optic_forward.1} parent=35 // pred_check
        %p4560 = pneg %p4559
      $region46: #{optic_forward.1} parent=35 // pred_check_branch
        %4562 = sbr.rel (%p4560) target = $region48
      $region47: #{optic_forward.1} parent=35 // pred_region
        %v4563 = vmul.f32 %v4295, %v4295
        %v4564 = vmul.f32 %v4297, %v4297
        %v4565 = vmul.f32 %v4299, %v4299
        %v4566 = vmul.f32 %v4301, %v4301
        %v4567 = vmul.f32 %v4303, %v4303
        %v4568 = vmul.f32 %v4305, %v4305
        %v4569 = vmul.f32 %v4307, %v4307
        %v4570 = vmul.f32 %v4309, %v4309
        %v4571 = vmul.f32 %v4311, %v4311
        %v4572 = vmul.f32 %v4313, %v4313
        %v4573 = vmul.f32 %v4315, %v4315
        %v4574 = vmul.f32 %v4317, %v4317
        %v4575 = vmul.f32 %v4319, %v4319
        %v4576 = vmul.f32 %v4321, %v4321
        %v4577 = vmul.f32 %v4323, %v4323
        %v4578 = vmul.f32 %v4325, %v4325
        %v4579 = vmul.f32 %v4296, %v4296
        %v4580 = vmul.f32 %v4298, %v4298
        %v4581 = vmul.f32 %v4300, %v4300
        %v4582 = vmul.f32 %v4302, %v4302
        %v4583 = vmul.f32 %v4304, %v4304
        %v4584 = vmul.f32 %v4306, %v4306
        %v4585 = vmul.f32 %v4308, %v4308
        %v4586 = vmul.f32 %v4310, %v4310
        %v4587 = vmul.f32 %v4312, %v4312
        %v4588 = vmul.f32 %v4314, %v4314
        %v4589 = vmul.f32 %v4316, %v4316
        %v4590 = vmul.f32 %v4318, %v4318
        %v4591 = vmul.f32 %v4320, %v4320
        %v4592 = vmul.f32 %v4322, %v4322
        %v4593 = vmul.f32 %v4324, %v4324
        %v4594 = vmul.f32 %v4326, %v4326
        %v4595 = vadd.f32 %v4563, %v4579
        %v4596 = vadd.f32 %v4564, %v4580
        %v4597 = vadd.f32 %v4565, %v4581
        %v4598 = vadd.f32 %v4566, %v4582
        %v4599 = vadd.f32 %v4567, %v4583
        %v4600 = vadd.f32 %v4568, %v4584
        %v4601 = vadd.f32 %v4569, %v4585
        %v4602 = vadd.f32 %v4570, %v4586
        %v4603 = vadd.f32 %v4571, %v4587
        %v4604 = vadd.f32 %v4572, %v4588
        %v4605 = vadd.f32 %v4573, %v4589
        %v4606 = vadd.f32 %v4574, %v4590
        %v4607 = vadd.f32 %v4575, %v4591
        %v4608 = vadd.f32 %v4576, %v4592
        %v4609 = vadd.f32 %v4577, %v4593
        %v4610 = vadd.f32 %v4578, %v4594
        %s4611 = scalar_lea.vmem %s204, 256
        %4612 = vst [vmem:[%s4611] sm:$0xff] %v4595
        %4613 = vst [vmem:[%s4611 + $0x8] sm:$0xff] %v4596
        %4614 = vst [vmem:[%s4611 + $0x10] sm:$0xff] %v4597
        %4615 = vst [vmem:[%s4611 + $0x18] sm:$0xff] %v4598
        %4616 = vst [vmem:[%s4611 + $0x20] sm:$0xff] %v4599
        %4617 = vst [vmem:[%s4611 + $0x28] sm:$0xff] %v4600
        %4618 = vst [vmem:[%s4611 + $0x30] sm:$0xff] %v4601
        %4619 = vst [vmem:[%s4611 + $0x38] sm:$0xff] %v4602
        %4620 = vst [vmem:[%s4611 + $0x40] sm:$0xff] %v4603
        %4621 = vst [vmem:[%s4611 + $0x48] sm:$0xff] %v4604
        %4622 = vst [vmem:[%s4611 + $0x50] sm:$0xff] %v4605
        %4623 = vst [vmem:[%s4611 + $0x58] sm:$0xff] %v4606
        %4624 = vst [vmem:[%s4611 + $0x60] sm:$0xff] %v4607
        %4625 = vst [vmem:[%s4611 + $0x68] sm:$0xff] %v4608
        %4626 = vst [vmem:[%s4611 + $0x70] sm:$0xff] %v4609
        %4627 = vst [vmem:[%s4611 + $0x78] sm:$0xff] %v4610
        %s4628 = scalar_lea.vmem %s204, 384
        %4629 = vst [vmem:[%s4628] sm:$0xff] 0.0
        %4630 = vst [vmem:[%s4628 + $0x8] sm:$0xff] 0.0
        %4631 = vst [vmem:[%s4628 + $0x10] sm:$0xff] 0.0
        %4632 = vst [vmem:[%s4628 + $0x18] sm:$0xff] 0.0
        %4633 = vst [vmem:[%s4628 + $0x20] sm:$0xff] 0.0
        %4634 = vst [vmem:[%s4628 + $0x28] sm:$0xff] 0.0
        %4635 = vst [vmem:[%s4628 + $0x30] sm:$0xff] 0.0
        %4636 = vst [vmem:[%s4628 + $0x38] sm:$0xff] 0.0
        %4637 = vst [vmem:[%s4628 + $0x40] sm:$0xff] 0.0
        %4638 = vst [vmem:[%s4628 + $0x48] sm:$0xff] 0.0
        %4639 = vst [vmem:[%s4628 + $0x50] sm:$0xff] 0.0
        %4640 = vst [vmem:[%s4628 + $0x58] sm:$0xff] 0.0
        %4641 = vst [vmem:[%s4628 + $0x60] sm:$0xff] 0.0
        %4642 = vst [vmem:[%s4628 + $0x68] sm:$0xff] 0.0
        %4643 = vst [vmem:[%s4628 + $0x70] sm:$0xff] 0.0
        %4644 = vst [vmem:[%s4628 + $0x78] sm:$0xff] 0.0
      $region48: #{optic_forward.1} parent=35 // pred_fallthru
        _
      %s4645 = smul.u32 4, %s15
      %p4646 = scmp.lt.s32.totalorder %s4645, 15
      %s4647 = scalar_select %p4646, %s4645, 15
      %s4648 = smul.addr %s4647, 16
      %s4649 = smul.addr %s4648, 8
      %s4650 = scalar_lea.vmem %s4, %s4649
      // Predicated region
      $region49: #{optic_forward.1} parent=35 // pred_check
        %p4651 = pneg %p122
      $region50: #{optic_forward.1} parent=35 // pred_check_branch
        %4653 = sbr.rel (%p4651) target = $region52
      $region51: #{optic_forward.1} parent=35 // pred_region
        %s4654 = smul.u32 4, %s15
      $region52: #{optic_forward.1} parent=35 // pred_fallthru
        _
    $region36: #{optic_forward.1} parent=5 // pred_fallthru
      _
    %p4655 = scmp.le.s32.totalorder 2, %s10
    // Predicated region
    $region53: #{optic_forward.1} parent=5 // pred_check
      %p4656 = pneg %p4655
    $region54: #{optic_forward.1} parent=5 // pred_check_branch
      %4658 = sbr.rel (%p4656) target = $region56
    $region55: #{optic_forward.1} parent=5 // pred_region
      %s4659 = ssub.s32 %s10, 2
      // Predicated region
      $region57: #{optic_forward.1} parent=55 // pred_check
        %p4660 = pneg %p128
      $region58: #{optic_forward.1} parent=55 // pred_check_branch
        %4662 = sbr.rel (%p4660) target = $region60
      $region59: #{optic_forward.1} parent=55 // pred_region
        %s4663 = smul.u32 4, %s16
        %p4664 = scmp.lt.s32.totalorder %s4663, 15
        %s4665 = scalar_select %p4664, %s4663, 15
        %s4666 = smul.addr %s4665, 16
        %s4667 = smul.addr %s4666, 8
        %s4668 = scalar_lea.vmem %s4, %s4667
      $region60: #{optic_forward.1} parent=55 // pred_fallthru
        _
    $region56: #{optic_forward.1} parent=5 // pred_fallthru
      _
  $region6: #{optic_forward.1} parent=0 // loop_footer
    %s14 = sadd.s32 1, %s10
  $region7: #{optic_forward.1} parent=0 // loop_footer_branch
    %9 = sbr.rel target = $region3
  $region8: #{optic_forward.1} parent=0 // loop_exit
    _

</llo_original>
